<compile_context>
chip_gen: v7x
topology: tpu7x:2x2x1
jax: 0.10.0
libtpu: 0.0.40
codegen_flags: <defaults>
</compile_context>

<pallas_src>
import functools

import jax
import jax.numpy as jnp
from jax.experimental import pallas as pl
from jax.experimental.pallas import tpu as pltpu

EPS = 1e-5
_VMEM_LIMIT = 32 * 1024 * 1024  # explicit scoped-VMEM budget, safe on v5e / v6e / v7x


def _make_conv_stats_kernel(TR, H, W, C, prenorm):
    """3x3 stride-1 pad-1 conv over one (TR, W, C) NHWC row-tile.

    The conv is 9 accumulated (TR*W, C) @ (C, C) bf16 matmuls (f32 accumulation)
    over shifted views of a (TR+2, W+2, C) halo slice of the resident padded
    sample.  If `prenorm`, the halo is first pushed through the previous layer's
    folded BatchNorm affine (x*scale + bias) + ReLU, and the spatial padding ring
    is forced back to zero with an iota mask (so stored pad values never matter).
    Besides the conv tile the kernel emits per-channel (sum, sum^2) partials used
    to build the global BatchNorm statistics outside the kernel.
    """

    def kernel(*refs):
        if prenorm:
            xp_ref, w_ref, scale_ref, bias_ref, z_ref, ps_ref = refs
        else:
            xp_ref, w_ref, z_ref, ps_ref = refs

        t = pl.program_id(1)
        r0 = pl.multiple_of(t * TR, TR)
        halo = xp_ref[0, pl.ds(r0, TR + 2), :, :]              # (TR+2, W+2, C)

        if prenorm:
            y = jnp.maximum(
                halo.astype(jnp.float32) * scale_ref[...] + bias_ref[...], 0.0)
            row = r0 + jax.lax.broadcasted_iota(jnp.int32, (TR + 2, W + 2, C), 0)
            col = jax.lax.broadcasted_iota(jnp.int32, (TR + 2, W + 2, C), 1)
            valid = (row >= 1) & (row <= H) & (col >= 1) & (col <= W)
            halo = jnp.where(valid, y, 0.0)                    # zero the padding ring

        halo_b = halo.astype(jnp.bfloat16)                     # MXU inputs in bf16
        acc = jnp.zeros((TR * W, C), jnp.float32)
        for dh in range(3):                                    # static unroll: 9 matmuls
            for dw in range(3):
                patch = halo_b[dh:dh + TR, dw:dw + W, :].reshape(TR * W, C)
                acc = acc + jnp.dot(patch, w_ref[dh * 3 + dw],
                                    preferred_element_type=jnp.float32)

        z_ref[...] = acc.reshape(1, TR, W, C).astype(z_ref.dtype)
        ps_ref[0, 0, 0:1, :] = jnp.sum(acc, axis=0, keepdims=True)        # sum
        ps_ref[0, 0, 1:2, :] = jnp.sum(acc * acc, axis=0, keepdims=True)  # sum of squares

    return kernel


def _conv3x3_stats(xp, w9, *, TR, H, W, C, scale=None, bias=None,
                   z_dtype=jnp.float32):
    """One conv layer (optionally fused with the previous BN+ReLU) over all tiles."""
    prenorm = scale is not None
    N = xp.shape[0]
    n_t = H // TR
    kernel = _make_conv_stats_kernel(TR, H, W, C, prenorm)

    in_specs = [
        # Padded sample is resident across the row-tile axis (constant block index).
        pl.BlockSpec((1, H + 2, W + 2, C), lambda n, t: (n, 0, 0, 0)),
        pl.BlockSpec((9, C, C), lambda n, t: (0, 0, 0)),
    ]
    args = [xp, w9]
    if prenorm:
        in_specs += [pl.BlockSpec((1, C), lambda n, t: (0, 0)),
                     pl.BlockSpec((1, C), lambda n, t: (0, 0))]
        args += [scale, bias]

    return pl.pallas_call(
        kernel,
        out_shape=(jax.ShapeDtypeStruct((N, H, W, C), z_dtype),
                   jax.ShapeDtypeStruct((N, n_t, 2, C), jnp.float32)),
        grid=(N, n_t),
        in_specs=in_specs,
        out_specs=(pl.BlockSpec((1, TR, W, C), lambda n, t: (n, t, 0, 0)),
                   pl.BlockSpec((1, 1, 2, C), lambda n, t: (n, t, 0, 0))),
        compiler_params=pltpu.CompilerParams(
            dimension_semantics=("parallel", "parallel"),
            vmem_limit_bytes=_VMEM_LIMIT),
    )(*args)


def _bn_add_relu_kernel(z_ref, scale_ref, bias_ref, sc_ref, out_ref):
    # Folded BN affine (scale/bias precomputed from global stats) + shortcut + ReLU.
    y = z_ref[...].astype(jnp.float32) * scale_ref[...] + bias_ref[...] + sc_ref[...]
    out_ref[...] = jnp.maximum(y, 0.0)


def _bn_add_relu(z, scale, bias, shortcut, *, TR):
    N, H, W, C = z.shape
    n_t = H // TR
    tile = pl.BlockSpec((1, TR, W, C), lambda n, t: (n, t, 0, 0))
    vec = pl.BlockSpec((1, C), lambda n, t: (0, 0))
    return pl.pallas_call(
        _bn_add_relu_kernel,
        out_shape=jax.ShapeDtypeStruct((N, H, W, C), jnp.float32),
        grid=(N, n_t),
        in_specs=[tile, vec, vec, tile],
        out_specs=tile,
        compiler_params=pltpu.CompilerParams(
            dimension_semantics=("parallel", "parallel"),
            vmem_limit_bytes=_VMEM_LIMIT),
    )(z, scale, bias, shortcut)


def _fold_bn(ps, gamma, beta, m):
    """Global (biased) batch statistics from per-tile partials -> folded scale/bias."""
    sums = jnp.sum(ps, axis=(0, 1))                      # (2, C): [sum, sum of squares]
    mean = sums[0] / m
    var = jnp.maximum(sums[1] / m - mean * mean, 0.0)    # biased variance (training BN)
    scale = gamma * jax.lax.rsqrt(var + EPS)
    bias = beta - mean * scale
    return (scale.reshape(1, -1).astype(jnp.float32),
            bias.reshape(1, -1).astype(jnp.float32))


@functools.partial(jax.jit, static_argnames=("tile_rows",))
def res_block(x_nchw, w1, w2, gamma1, beta1, gamma2, beta2, tile_rows=None):
    """Forward pass of resBlock.  Conv weights w1/w2 are (kh, kw, cin, cout) = HWIO."""
    N, C, H, W = x_nchw.shape
    TR = tile_rows if tile_rows is not None else (8 if H % 8 == 0 else H)
    assert H % TR == 0, "tile_rows must divide H"

    x = jnp.transpose(x_nchw, (0, 2, 3, 1)).astype(jnp.float32)        # NHWC, f32
    m = N * H * W
    w1b = w1.reshape(9, C, C).astype(jnp.bfloat16)
    w2b = w2.reshape(9, C, C).astype(jnp.bfloat16)
    g1, b1 = gamma1.astype(jnp.float32), beta1.astype(jnp.float32)
    g2, b2 = gamma2.astype(jnp.float32), beta2.astype(jnp.float32)

    # conv1: raw output (bf16) + per-tile per-channel (sum, sum^2).  No shortcut
    # tensor and no BN yet (global stats unknown until all tiles are done).
    xp = jnp.pad(x, ((0, 0), (1, 1), (1, 1), (0, 0))).astype(jnp.bfloat16)
    z1, ps1 = _conv3x3_stats(xp, w1b, TR=TR, H=H, W=W, C=C, z_dtype=jnp.bfloat16)
    scale1, bias1 = _fold_bn(ps1, g1, b1, m)

    # conv2: BN1 (folded affine) + ReLU applied to the halo tile inside the kernel,
    # so the post-BN activation y1 never round-trips HBM.
    z1p = jnp.pad(z1, ((0, 0), (1, 1), (1, 1), (0, 0)))
    z2, ps2 = _conv3x3_stats(z1p, w2b, TR=TR, H=H, W=W, C=C,
                             scale=scale1, bias=bias1, z_dtype=jnp.float32)
    scale2, bias2 = _fold_bn(ps2, g2, b2, m)

    # BN2 (folded affine) + residual shortcut + ReLU.
    out = _bn_add_relu(z2, scale2, bias2, x, TR=TR)
    return jnp.transpose(out, (0, 3, 1, 2))                            # back to NCHW


def _reference(x_nchw, w1, w2, g1, b1, g2, b2):
    # pure-JAX (f32) reference of the PyTorch forward (training-mode BatchNorm)
    def conv(x, w):
        return jax.lax.conv_general_dilated(
            x, w, window_strides=(1, 1), padding="SAME",
            dimension_numbers=("NCHW", "HWIO", "NCHW"))

    def bn(x, g, b):
        mean = jnp.mean(x, axis=(0, 2, 3), keepdims=True)
        var = jnp.mean((x - mean) ** 2, axis=(0, 2, 3), keepdims=True)
        return (x - mean) * jax.lax.rsqrt(var + EPS) * g.reshape(1, -1, 1, 1) \
            + b.reshape(1, -1, 1, 1)

    y = jax.nn.relu(bn(conv(x_nchw, w1), g1, b1))
    y = bn(conv(y, w2), g2, b2)
    return jax.nn.relu(y + x_nchw)


if __name__ == "__main__":
    key = jax.random.PRNGKey(0)
    kx, k1, k2 = jax.random.split(key, 3)

    N, C, H, W = 2, 4, 16, 16
    x = jax.random.normal(kx, (N, C, H, W), jnp.float32)

    # deterministic synthetic parameters (BN defaults gamma=1, beta=0)
    w1 = jax.random.normal(k1, (3, 3, C, C), jnp.float32) * 0.2
    w2 = jax.random.normal(k2, (3, 3, C, C), jnp.float32) * 0.2
    gamma1 = jnp.ones((C,), jnp.float32)
    beta1 = jnp.zeros((C,), jnp.float32)
    gamma2 = jnp.ones((C,), jnp.float32)
    beta2 = jnp.zeros((C,), jnp.float32)

    out = res_block(x, w1, w2, gamma1, beta1, gamma2, beta2)
    jax.block_until_ready(out)

    ref = _reference(x, w1, w2, gamma1, beta1, gamma2, beta2)
    assert out.shape == (N, C, H, W)
    assert bool(jnp.all(out >= 0.0))
    # bf16 MXU inputs / bf16 intermediate (f32 accumulation & BN math) => 2e-2 tolerance.
    assert bool(jnp.allclose(out, ref, rtol=2e-2, atol=2e-2))

    print("KERNEL_OK")
</pallas_src>

<mosaic_0001>
module attributes {stable_mosaic.version = 11 : i64} {
  func.func @_bn_add_relu_kernel(%arg0: i32, %arg1: i32, %arg2: memref<1x8x16x4xf32, #tpu.memory_space<vmem>>, %arg3: memref<1x4xf32, #tpu.memory_space<vmem>>, %arg4: memref<1x4xf32, #tpu.memory_space<vmem>>, %arg5: memref<1x8x16x4xf32, #tpu.memory_space<vmem>>, %arg6: memref<1x8x16x4xf32, #tpu.memory_space<vmem>>) attributes {dimension_semantics = [#tpu.dimension_semantics<parallel>, #tpu.dimension_semantics<parallel>], iteration_bounds = array<i64: 2, 2>, scalar_prefetch = 0 : i64, scratch_operands = 0 : i64, tpu.core_type = #tpu.core_type<tc>, window_params = [{transform_indices = @transform_0, window_bounds = array<i64: 1, 8, 16, 4>}, {pipeline_mode = #tpu.pipeline_mode<synchronous>, transform_indices = @transform_1, window_bounds = array<i64: 1, 4>}, {pipeline_mode = #tpu.pipeline_mode<synchronous>, transform_indices = @transform_2, window_bounds = array<i64: 1, 4>}, {transform_indices = @transform_3, window_bounds = array<i64: 1, 8, 16, 4>}, {transform_indices = @transform_4, window_bounds = array<i64: 1, 8, 16, 4>}]} {
    %c0 = arith.constant 0 : index
    %c0_0 = arith.constant 0 : index
    %c0_1 = arith.constant 0 : index
    %c0_2 = arith.constant 0 : index
    %0 = vector.load %arg2[%c0, %c0_0, %c0_1, %c0_2] : memref<1x8x16x4xf32, #tpu.memory_space<vmem>>, vector<1x8x16x4xf32>
    %c0_3 = arith.constant 0 : index
    %c0_4 = arith.constant 0 : index
    %1 = vector.load %arg3[%c0_3, %c0_4] : memref<1x4xf32, #tpu.memory_space<vmem>>, vector<1x4xf32>
    %2 = vector.shape_cast %1 : vector<1x4xf32> to vector<1x1x1x4xf32>
    %3 = vector.broadcast %2 : vector<1x1x1x4xf32> to vector<1x8x16x4xf32>
    %4 = arith.mulf %0, %3 : vector<1x8x16x4xf32>
    %c0_5 = arith.constant 0 : index
    %c0_6 = arith.constant 0 : index
    %5 = vector.load %arg4[%c0_5, %c0_6] : memref<1x4xf32, #tpu.memory_space<vmem>>, vector<1x4xf32>
    %6 = vector.shape_cast %5 : vector<1x4xf32> to vector<1x1x1x4xf32>
    %7 = vector.broadcast %6 : vector<1x1x1x4xf32> to vector<1x8x16x4xf32>
    %8 = arith.addf %4, %7 : vector<1x8x16x4xf32>
    %c0_7 = arith.constant 0 : index
    %c0_8 = arith.constant 0 : index
    %c0_9 = arith.constant 0 : index
    %c0_10 = arith.constant 0 : index
    %9 = vector.load %arg5[%c0_7, %c0_8, %c0_9, %c0_10] : memref<1x8x16x4xf32, #tpu.memory_space<vmem>>, vector<1x8x16x4xf32>
    %10 = arith.addf %8, %9 : vector<1x8x16x4xf32>
    %cst = arith.constant 0.000000e+00 : f32
    %11 = vector.broadcast %cst : f32 to vector<1x8x16x4xf32>
    %12 = arith.maximumf %10, %11 : vector<1x8x16x4xf32>
    %c0_11 = arith.constant 0 : index
    %c0_12 = arith.constant 0 : index
    %c0_13 = arith.constant 0 : index
    %c0_14 = arith.constant 0 : index
    %13 = vector.load %arg6[%c0_11, %c0_12, %c0_13, %c0_14] : memref<1x8x16x4xf32, #tpu.memory_space<vmem>>, vector<1x8x16x4xf32>
    tpu.vector_store %arg6[%c0_11, %c0_12, %c0_13, %c0_14], %12 {strides = array<i32>} : memref<1x8x16x4xf32, #tpu.memory_space<vmem>>, vector<1x8x16x4xf32>,
    return
  }
  func.func @transform_0(%arg0: i32, %arg1: i32) -> (i32, i32, i32, i32) {
    %c0_i32 = arith.constant 0 : i32
    %c0_i32_0 = arith.constant 0 : i32
    %c0_i32_1 = arith.constant 0 : i32
    return %arg0, %arg1, %c0_i32, %c0_i32_0 : i32, i32, i32, i32
  }
  func.func @transform_1(%arg0: i32, %arg1: i32) -> (i32, i32) {
    %c0_i32 = arith.constant 0 : i32
    %c0_i32_0 = arith.constant 0 : i32
    %c0_i32_1 = arith.constant 0 : i32
    return %c0_i32, %c0_i32_0 : i32, i32
  }
  func.func @transform_2(%arg0: i32, %arg1: i32) -> (i32, i32) {
    %c0_i32 = arith.constant 0 : i32
    %c0_i32_0 = arith.constant 0 : i32
    %c0_i32_1 = arith.constant 0 : i32
    return %c0_i32, %c0_i32_0 : i32, i32
  }
  func.func @transform_3(%arg0: i32, %arg1: i32) -> (i32, i32, i32, i32) {
    %c0_i32 = arith.constant 0 : i32
    %c0_i32_0 = arith.constant 0 : i32
    %c0_i32_1 = arith.constant 0 : i32
    return %arg0, %arg1, %c0_i32, %c0_i32_0 : i32, i32, i32, i32
  }
  func.func @transform_4(%arg0: i32, %arg1: i32) -> (i32, i32, i32, i32) {
    %c0_i32 = arith.constant 0 : i32
    %c0_i32_0 = arith.constant 0 : i32
    %c0_i32_1 = arith.constant 0 : i32
    return %arg0, %arg1, %c0_i32, %c0_i32_0 : i32, i32, i32, i32
  }
}

module attributes {stable_mosaic.version = 11 : i64} {
  func.func @kernel(%arg0: i32, %arg1: i32, %arg2: memref<1x18x18x4xbf16, #tpu.memory_space<vmem>>, %arg3: memref<9x4x4xbf16, #tpu.memory_space<vmem>>, %arg4: memref<1x4xf32, #tpu.memory_space<vmem>>, %arg5: memref<1x4xf32, #tpu.memory_space<vmem>>, %arg6: memref<1x8x16x4xf32, #tpu.memory_space<vmem>>, %arg7: memref<1x1x2x4xf32, #tpu.memory_space<vmem>>) attributes {dimension_semantics = [#tpu.dimension_semantics<parallel>, #tpu.dimension_semantics<parallel>], iteration_bounds = array<i64: 2, 2>, scalar_prefetch = 0 : i64, scratch_operands = 0 : i64, tpu.core_type = #tpu.core_type<tc>, window_params = [{transform_indices = @transform_0, window_bounds = array<i64: 1, 18, 18, 4>}, {pipeline_mode = #tpu.pipeline_mode<synchronous>, transform_indices = @transform_1, window_bounds = array<i64: 9, 4, 4>}, {pipeline_mode = #tpu.pipeline_mode<synchronous>, transform_indices = @transform_2, window_bounds = array<i64: 1, 4>}, {pipeline_mode = #tpu.pipeline_mode<synchronous>, transform_indices = @transform_3, window_bounds = array<i64: 1, 4>}, {transform_indices = @transform_4, window_bounds = array<i64: 1, 8, 16, 4>}, {transform_indices = @transform_5, window_bounds = array<i64: 1, 1, 2, 4>}]} {
    %c8_i32 = arith.constant 8 : i32
    %0 = arith.muli %arg1, %c8_i32 : i32
    %1 = tpu.assume_multiple %0, 8 : i32
    %c0 = arith.constant 0 : index
    %2 = arith.index_cast %1 : i32 to index
    %c0_0 = arith.constant 0 : index
    %c0_1 = arith.constant 0 : index
    %3 = vector.load %arg2[%c0, %2, %c0_0, %c0_1] : memref<1x18x18x4xbf16, #tpu.memory_space<vmem>>, vector<1x10x18x4xbf16>
    %4 = vector.shape_cast %3 : vector<1x10x18x4xbf16> to vector<10x18x4xbf16>
    %5 = arith.extf %4 : vector<10x18x4xbf16> to vector<10x18x4xf32>
    %c0_2 = arith.constant 0 : index
    %c0_3 = arith.constant 0 : index
    %6 = vector.load %arg4[%c0_2, %c0_3] : memref<1x4xf32, #tpu.memory_space<vmem>>, vector<1x4xf32>
    %7 = vector.shape_cast %6 : vector<1x4xf32> to vector<1x1x4xf32>
    %8 = vector.broadcast %7 : vector<1x1x4xf32> to vector<10x18x4xf32>
    %9 = arith.mulf %5, %8 : vector<10x18x4xf32>
    %c0_4 = arith.constant 0 : index
    %c0_5 = arith.constant 0 : index
    %10 = vector.load %arg5[%c0_4, %c0_5] : memref<1x4xf32, #tpu.memory_space<vmem>>, vector<1x4xf32>
    %11 = vector.shape_cast %10 : vector<1x4xf32> to vector<1x1x4xf32>
    %12 = vector.broadcast %11 : vector<1x1x4xf32> to vector<10x18x4xf32>
    %13 = arith.addf %9, %12 : vector<10x18x4xf32>
    %cst = arith.constant 0.000000e+00 : f32
    %14 = vector.broadcast %cst : f32 to vector<10x18x4xf32>
    %15 = arith.maximumf %13, %14 : vector<10x18x4xf32>
    %16 = tpu.iota {dimensions = array<i32: 0>} : vector<10x18x4xi32>
    %17 = vector.broadcast %1 : i32 to vector<10x18x4xi32>
    %18 = arith.addi %17, %16 : vector<10x18x4xi32>
    %19 = tpu.iota {dimensions = array<i32: 1>} : vector<10x18x4xi32>
    %c1_i32 = arith.constant 1 : i32
    %20 = vector.broadcast %c1_i32 : i32 to vector<10x18x4xi32>
    %21 = arith.cmpi sge, %18, %20 : vector<10x18x4xi32>
    %c16_i32 = arith.constant 16 : i32
    %22 = vector.broadcast %c16_i32 : i32 to vector<10x18x4xi32>
    %23 = arith.cmpi sle, %18, %22 : vector<10x18x4xi32>
    %24 = arith.andi %21, %23 : vector<10x18x4xi1>
    %c1_i32_6 = arith.constant 1 : i32
    %25 = vector.broadcast %c1_i32_6 : i32 to vector<10x18x4xi32>
    %26 = arith.cmpi sge, %19, %25 : vector<10x18x4xi32>
    %27 = arith.andi %24, %26 : vector<10x18x4xi1>
    %c16_i32_7 = arith.constant 16 : i32
    %28 = vector.broadcast %c16_i32_7 : i32 to vector<10x18x4xi32>
    %29 = arith.cmpi sle, %19, %28 : vector<10x18x4xi32>
    %30 = arith.andi %27, %29 : vector<10x18x4xi1>
    %cst_8 = arith.constant 0.000000e+00 : f32
    %31 = vector.broadcast %cst_8 : f32 to vector<10x18x4xf32>
    %32 = arith.select %30, %15, %31 : vector<10x18x4xi1>, vector<10x18x4xf32>
    %33 = arith.truncf %32 : vector<10x18x4xf32> to vector<10x18x4xbf16>
    %cst_9 = arith.constant 0.000000e+00 : f32
    %34 = vector.broadcast %cst_9 : f32 to vector<128x4xf32>
    %35 = vector.extract_strided_slice %33 {offsets = [0, 0, 0], sizes = [8, 16, 4], strides = [1, 1, 1]} : vector<10x18x4xbf16> to vector<8x16x4xbf16>
    %36 = vector.shape_cast %35 : vector<8x16x4xbf16> to vector<128x4xbf16>
    %c0_10 = arith.constant 0 : index
    %c0_11 = arith.constant 0 : index
    %c0_12 = arith.constant 0 : index
    %37 = vector.load %arg3[%c0_10, %c0_11, %c0_12] : memref<9x4x4xbf16, #tpu.memory_space<vmem>>, vector<1x4x4xbf16>
    %38 = vector.shape_cast %37 : vector<1x4x4xbf16> to vector<4x4xbf16>
    %cst_13 = arith.constant dense<0.000000e+00> : vector<128x4xf32>
    %39 = tpu.matmul %36, %38, %cst_13 {dimension_numbers = #tpu.dot_dimension_numbers<[1], [0], [0], [1], [0, 0, 1, 1], [], []>} : vector<128x4xbf16>, vector<4x4xbf16>, vector<128x4xf32> -> vector<128x4xf32>
    %40 = arith.addf %34, %39 : vector<128x4xf32>
    %41 = vector.extract_strided_slice %33 {offsets = [0, 1, 0], sizes = [8, 16, 4], strides = [1, 1, 1]} : vector<10x18x4xbf16> to vector<8x16x4xbf16>
    %42 = vector.shape_cast %41 : vector<8x16x4xbf16> to vector<128x4xbf16>
    %c1 = arith.constant 1 : index
    %c0_14 = arith.constant 0 : index
    %c0_15 = arith.constant 0 : index
    %43 = vector.load %arg3[%c1, %c0_14, %c0_15] : memref<9x4x4xbf16, #tpu.memory_space<vmem>>, vector<1x4x4xbf16>
    %44 = vector.shape_cast %43 : vector<1x4x4xbf16> to vector<4x4xbf16>
    %cst_16 = arith.constant dense<0.000000e+00> : vector<128x4xf32>
    %45 = tpu.matmul %42, %44, %cst_16 {dimension_numbers = #tpu.dot_dimension_numbers<[1], [0], [0], [1], [0, 0, 1, 1], [], []>} : vector<128x4xbf16>, vector<4x4xbf16>, vector<128x4xf32> -> vector<128x4xf32>
    %46 = arith.addf %40, %45 : vector<128x4xf32>
    %47 = vector.extract_strided_slice %33 {offsets = [0, 2, 0], sizes = [8, 16, 4], strides = [1, 1, 1]} : vector<10x18x4xbf16> to vector<8x16x4xbf16>
    %48 = vector.shape_cast %47 : vector<8x16x4xbf16> to vector<128x4xbf16>
    %c2 = arith.constant 2 : index
    %c0_17 = arith.constant 0 : index
    %c0_18 = arith.constant 0 : index
    %49 = vector.load %arg3[%c2, %c0_17, %c0_18] : memref<9x4x4xbf16, #tpu.memory_space<vmem>>, vector<1x4x4xbf16>
    %50 = vector.shape_cast %49 : vector<1x4x4xbf16> to vector<4x4xbf16>
    %cst_19 = arith.constant dense<0.000000e+00> : vector<128x4xf32>
    %51 = tpu.matmul %48, %50, %cst_19 {dimension_numbers = #tpu.dot_dimension_numbers<[1], [0], [0], [1], [0, 0, 1, 1], [], []>} : vector<128x4xbf16>, vector<4x4xbf16>, vector<128x4xf32> -> vector<128x4xf32>
    %52 = arith.addf %46, %51 : vector<128x4xf32>
    %53 = vector.extract_strided_slice %33 {offsets = [1, 0, 0], sizes = [8, 16, 4], strides = [1, 1, 1]} : vector<10x18x4xbf16> to vector<8x16x4xbf16>
    %54 = vector.shape_cast %53 : vector<8x16x4xbf16> to vector<128x4xbf16>
    %c3 = arith.constant 3 : index
    %c0_20 = arith.constant 0 : index
    %c0_21 = arith.constant 0 : index
    %55 = vector.load %arg3[%c3, %c0_20, %c0_21] : memref<9x4x4xbf16, #tpu.memory_space<vmem>>, vector<1x4x4xbf16>
    %56 = vector.shape_cast %55 : vector<1x4x4xbf16> to vector<4x4xbf16>
    %cst_22 = arith.constant dense<0.000000e+00> : vector<128x4xf32>
    %57 = tpu.matmul %54, %56, %cst_22 {dimension_numbers = #tpu.dot_dimension_numbers<[1], [0], [0], [1], [0, 0, 1, 1], [], []>} : vector<128x4xbf16>, vector<4x4xbf16>, vector<128x4xf32> -> vector<128x4xf32>
    %58 = arith.addf %52, %57 : vector<128x4xf32>
    %59 = vector.extract_strided_slice %33 {offsets = [1, 1, 0], sizes = [8, 16, 4], strides = [1, 1, 1]} : vector<10x18x4xbf16> to vector<8x16x4xbf16>
    %60 = vector.shape_cast %59 : vector<8x16x4xbf16> to vector<128x4xbf16>
    %c4 = arith.constant 4 : index
    %c0_23 = arith.constant 0 : index
    %c0_24 = arith.constant 0 : index
    %61 = vector.load %arg3[%c4, %c0_23, %c0_24] : memref<9x4x4xbf16, #tpu.memory_space<vmem>>, vector<1x4x4xbf16>
    %62 = vector.shape_cast %61 : vector<1x4x4xbf16> to vector<4x4xbf16>
    %cst_25 = arith.constant dense<0.000000e+00> : vector<128x4xf32>
    %63 = tpu.matmul %60, %62, %cst_25 {dimension_numbers = #tpu.dot_dimension_numbers<[1], [0], [0], [1], [0, 0, 1, 1], [], []>} : vector<128x4xbf16>, vector<4x4xbf16>, vector<128x4xf32> -> vector<128x4xf32>
    %64 = arith.addf %58, %63 : vector<128x4xf32>
    %65 = vector.extract_strided_slice %33 {offsets = [1, 2, 0], sizes = [8, 16, 4], strides = [1, 1, 1]} : vector<10x18x4xbf16> to vector<8x16x4xbf16>
    %66 = vector.shape_cast %65 : vector<8x16x4xbf16> to vector<128x4xbf16>
    %c5 = arith.constant 5 : index
    %c0_26 = arith.constant 0 : index
    %c0_27 = arith.constant 0 : index
    %67 = vector.load %arg3[%c5, %c0_26, %c0_27] : memref<9x4x4xbf16, #tpu.memory_space<vmem>>, vector<1x4x4xbf16>
    %68 = vector.shape_cast %67 : vector<1x4x4xbf16> to vector<4x4xbf16>
    %cst_28 = arith.constant dense<0.000000e+00> : vector<128x4xf32>
    %69 = tpu.matmul %66, %68, %cst_28 {dimension_numbers = #tpu.dot_dimension_numbers<[1], [0], [0], [1], [0, 0, 1, 1], [], []>} : vector<128x4xbf16>, vector<4x4xbf16>, vector<128x4xf32> -> vector<128x4xf32>
    %70 = arith.addf %64, %69 : vector<128x4xf32>
    %71 = vector.extract_strided_slice %33 {offsets = [2, 0, 0], sizes = [8, 16, 4], strides = [1, 1, 1]} : vector<10x18x4xbf16> to vector<8x16x4xbf16>
    %72 = vector.shape_cast %71 : vector<8x16x4xbf16> to vector<128x4xbf16>
    %c6 = arith.constant 6 : index
    %c0_29 = arith.constant 0 : index
    %c0_30 = arith.constant 0 : index
    %73 = vector.load %arg3[%c6, %c0_29, %c0_30] : memref<9x4x4xbf16, #tpu.memory_space<vmem>>, vector<1x4x4xbf16>
    %74 = vector.shape_cast %73 : vector<1x4x4xbf16> to vector<4x4xbf16>
    %cst_31 = arith.constant dense<0.000000e+00> : vector<128x4xf32>
    %75 = tpu.matmul %72, %74, %cst_31 {dimension_numbers = #tpu.dot_dimension_numbers<[1], [0], [0], [1], [0, 0, 1, 1], [], []>} : vector<128x4xbf16>, vector<4x4xbf16>, vector<128x4xf32> -> vector<128x4xf32>
    %76 = arith.addf %70, %75 : vector<128x4xf32>
    %77 = vector.extract_strided_slice %33 {offsets = [2, 1, 0], sizes = [8, 16, 4], strides = [1, 1, 1]} : vector<10x18x4xbf16> to vector<8x16x4xbf16>
    %78 = vector.shape_cast %77 : vector<8x16x4xbf16> to vector<128x4xbf16>
    %c7 = arith.constant 7 : index
    %c0_32 = arith.constant 0 : index
    %c0_33 = arith.constant 0 : index
    %79 = vector.load %arg3[%c7, %c0_32, %c0_33] : memref<9x4x4xbf16, #tpu.memory_space<vmem>>, vector<1x4x4xbf16>
    %80 = vector.shape_cast %79 : vector<1x4x4xbf16> to vector<4x4xbf16>
    %cst_34 = arith.constant dense<0.000000e+00> : vector<128x4xf32>
    %81 = tpu.matmul %78, %80, %cst_34 {dimension_numbers = #tpu.dot_dimension_numbers<[1], [0], [0], [1], [0, 0, 1, 1], [], []>} : vector<128x4xbf16>, vector<4x4xbf16>, vector<128x4xf32> -> vector<128x4xf32>
    %82 = arith.addf %76, %81 : vector<128x4xf32>
    %83 = vector.extract_strided_slice %33 {offsets = [2, 2, 0], sizes = [8, 16, 4], strides = [1, 1, 1]} : vector<10x18x4xbf16> to vector<8x16x4xbf16>
    %84 = vector.shape_cast %83 : vector<8x16x4xbf16> to vector<128x4xbf16>
    %c8 = arith.constant 8 : index
    %c0_35 = arith.constant 0 : index
    %c0_36 = arith.constant 0 : index
    %85 = vector.load %arg3[%c8, %c0_35, %c0_36] : memref<9x4x4xbf16, #tpu.memory_space<vmem>>, vector<1x4x4xbf16>
    %86 = vector.shape_cast %85 : vector<1x4x4xbf16> to vector<4x4xbf16>
    %cst_37 = arith.constant dense<0.000000e+00> : vector<128x4xf32>
    %87 = tpu.matmul %84, %86, %cst_37 {dimension_numbers = #tpu.dot_dimension_numbers<[1], [0], [0], [1], [0, 0, 1, 1], [], []>} : vector<128x4xbf16>, vector<4x4xbf16>, vector<128x4xf32> -> vector<128x4xf32>
    %88 = arith.addf %82, %87 : vector<128x4xf32>
    %89 = vector.shape_cast %88 : vector<128x4xf32> to vector<1x8x16x4xf32>
    %c0_38 = arith.constant 0 : index
    %c0_39 = arith.constant 0 : index
    %c0_40 = arith.constant 0 : index
    %c0_41 = arith.constant 0 : index
    %90 = vector.load %arg6[%c0_38, %c0_39, %c0_40, %c0_41] : memref<1x8x16x4xf32, #tpu.memory_space<vmem>>, vector<1x8x16x4xf32>
    tpu.vector_store %arg6[%c0_38, %c0_39, %c0_40, %c0_41], %89 {strides = array<i32>} : memref<1x8x16x4xf32, #tpu.memory_space<vmem>>, vector<1x8x16x4xf32>,
    %cst_42 = arith.constant dense<0.000000e+00> : vector<4xf32>
    %91 = vector.multi_reduction <add>, %88, %cst_42 [0] : vector<128x4xf32> to vector<4xf32>
    %92 = vector.shape_cast %91 : vector<4xf32> to vector<1x4xf32>
    %c0_43 = arith.constant 0 : index
    %c0_44 = arith.constant 0 : index
    %c0_45 = arith.constant 0 : index
    %c0_46 = arith.constant 0 : index
    %93 = vector.load %arg7[%c0_43, %c0_44, %c0_45, %c0_46] : memref<1x1x2x4xf32, #tpu.memory_space<vmem>>, vector<1x1x1x4xf32>
    %94 = vector.shape_cast %93 : vector<1x1x1x4xf32> to vector<1x4xf32>
    %95 = vector.shape_cast %92 : vector<1x4xf32> to vector<1x1x1x4xf32>
    tpu.vector_store %arg7[%c0_43, %c0_44, %c0_45, %c0_46], %95 {strides = array<i32>} : memref<1x1x2x4xf32, #tpu.memory_space<vmem>>, vector<1x1x1x4xf32>,
    %96 = arith.mulf %88, %88 : vector<128x4xf32>
    %cst_47 = arith.constant dense<0.000000e+00> : vector<4xf32>
    %97 = vector.multi_reduction <add>, %96, %cst_47 [0] : vector<128x4xf32> to vector<4xf32>
    %98 = vector.shape_cast %97 : vector<4xf32> to vector<1x4xf32>
    %c0_48 = arith.constant 0 : index
    %c0_49 = arith.constant 0 : index
    %c1_50 = arith.constant 1 : index
    %c0_51 = arith.constant 0 : index
    %99 = vector.load %arg7[%c0_48, %c0_49, %c1_50, %c0_51] : memref<1x1x2x4xf32, #tpu.memory_space<vmem>>, vector<1x1x1x4xf32>
    %100 = vector.shape_cast %99 : vector<1x1x1x4xf32> to vector<1x4xf32>
    %101 = vector.shape_cast %98 : vector<1x4xf32> to vector<1x1x1x4xf32>
    tpu.vector_store %arg7[%c0_48, %c0_49, %c1_50, %c0_51], %101 {strides = array<i32>} : memref<1x1x2x4xf32, #tpu.memory_space<vmem>>, vector<1x1x1x4xf32>,
    return
  }
  func.func @transform_0(%arg0: i32, %arg1: i32) -> (i32, i32, i32, i32) {
    %c0_i32 = arith.constant 0 : i32
    %c0_i32_0 = arith.constant 0 : i32
    %c0_i32_1 = arith.constant 0 : i32
    %c0_i32_2 = arith.constant 0 : i32
    return %arg0, %c0_i32, %c0_i32_0, %c0_i32_1 : i32, i32, i32, i32
  }
  func.func @transform_1(%arg0: i32, %arg1: i32) -> (i32, i32, i32) {
    %c0_i32 = arith.constant 0 : i32
    %c0_i32_0 = arith.constant 0 : i32
    %c0_i32_1 = arith.constant 0 : i32
    %c0_i32_2 = arith.constant 0 : i32
    return %c0_i32, %c0_i32_0, %c0_i32_1 : i32, i32, i32
  }
  func.func @transform_2(%arg0: i32, %arg1: i32) -> (i32, i32) {
    %c0_i32 = arith.constant 0 : i32
    %c0_i32_0 = arith.constant 0 : i32
    %c0_i32_1 = arith.constant 0 : i32
    return %c0_i32, %c0_i32_0 : i32, i32
  }
  func.func @transform_3(%arg0: i32, %arg1: i32) -> (i32, i32) {
    %c0_i32 = arith.constant 0 : i32
    %c0_i32_0 = arith.constant 0 : i32
    %c0_i32_1 = arith.constant 0 : i32
    return %c0_i32, %c0_i32_0 : i32, i32
  }
  func.func @transform_4(%arg0: i32, %arg1: i32) -> (i32, i32, i32, i32) {
    %c0_i32 = arith.constant 0 : i32
    %c0_i32_0 = arith.constant 0 : i32
    %c0_i32_1 = arith.constant 0 : i32
    return %arg0, %arg1, %c0_i32, %c0_i32_0 : i32, i32, i32, i32
  }
  func.func @transform_5(%arg0: i32, %arg1: i32) -> (i32, i32, i32, i32) {
    %c0_i32 = arith.constant 0 : i32
    %c0_i32_0 = arith.constant 0 : i32
    %c0_i32_1 = arith.constant 0 : i32
    return %arg0, %arg1, %c0_i32, %c0_i32_0 : i32, i32, i32, i32
  }
}

module attributes {stable_mosaic.version = 11 : i64} {
  func.func @kernel(%arg0: i32, %arg1: i32, %arg2: memref<1x18x18x4xbf16, #tpu.memory_space<vmem>>, %arg3: memref<9x4x4xbf16, #tpu.memory_space<vmem>>, %arg4: memref<1x8x16x4xbf16, #tpu.memory_space<vmem>>, %arg5: memref<1x1x2x4xf32, #tpu.memory_space<vmem>>) attributes {dimension_semantics = [#tpu.dimension_semantics<parallel>, #tpu.dimension_semantics<parallel>], iteration_bounds = array<i64: 2, 2>, scalar_prefetch = 0 : i64, scratch_operands = 0 : i64, tpu.core_type = #tpu.core_type<tc>, window_params = [{transform_indices = @transform_0, window_bounds = array<i64: 1, 18, 18, 4>}, {pipeline_mode = #tpu.pipeline_mode<synchronous>, transform_indices = @transform_1, window_bounds = array<i64: 9, 4, 4>}, {transform_indices = @transform_2, window_bounds = array<i64: 1, 8, 16, 4>}, {transform_indices = @transform_3, window_bounds = array<i64: 1, 1, 2, 4>}]} {
    %c8_i32 = arith.constant 8 : i32
    %0 = arith.muli %arg1, %c8_i32 : i32
    %1 = tpu.assume_multiple %0, 8 : i32
    %c0 = arith.constant 0 : index
    %2 = arith.index_cast %1 : i32 to index
    %c0_0 = arith.constant 0 : index
    %c0_1 = arith.constant 0 : index
    %3 = vector.load %arg2[%c0, %2, %c0_0, %c0_1] : memref<1x18x18x4xbf16, #tpu.memory_space<vmem>>, vector<1x10x18x4xbf16>
    %4 = vector.shape_cast %3 : vector<1x10x18x4xbf16> to vector<10x18x4xbf16>
    %cst = arith.constant 0.000000e+00 : f32
    %5 = vector.broadcast %cst : f32 to vector<128x4xf32>
    %6 = vector.extract_strided_slice %4 {offsets = [0, 0, 0], sizes = [8, 16, 4], strides = [1, 1, 1]} : vector<10x18x4xbf16> to vector<8x16x4xbf16>
    %7 = vector.shape_cast %6 : vector<8x16x4xbf16> to vector<128x4xbf16>
    %c0_2 = arith.constant 0 : index
    %c0_3 = arith.constant 0 : index
    %c0_4 = arith.constant 0 : index
    %8 = vector.load %arg3[%c0_2, %c0_3, %c0_4] : memref<9x4x4xbf16, #tpu.memory_space<vmem>>, vector<1x4x4xbf16>
    %9 = vector.shape_cast %8 : vector<1x4x4xbf16> to vector<4x4xbf16>
    %cst_5 = arith.constant dense<0.000000e+00> : vector<128x4xf32>
    %10 = tpu.matmul %7, %9, %cst_5 {dimension_numbers = #tpu.dot_dimension_numbers<[1], [0], [0], [1], [0, 0, 1, 1], [], []>} : vector<128x4xbf16>, vector<4x4xbf16>, vector<128x4xf32> -> vector<128x4xf32>
    %11 = arith.addf %5, %10 : vector<128x4xf32>
    %12 = vector.extract_strided_slice %4 {offsets = [0, 1, 0], sizes = [8, 16, 4], strides = [1, 1, 1]} : vector<10x18x4xbf16> to vector<8x16x4xbf16>
    %13 = vector.shape_cast %12 : vector<8x16x4xbf16> to vector<128x4xbf16>
    %c1 = arith.constant 1 : index
    %c0_6 = arith.constant 0 : index
    %c0_7 = arith.constant 0 : index
    %14 = vector.load %arg3[%c1, %c0_6, %c0_7] : memref<9x4x4xbf16, #tpu.memory_space<vmem>>, vector<1x4x4xbf16>
    %15 = vector.shape_cast %14 : vector<1x4x4xbf16> to vector<4x4xbf16>
    %cst_8 = arith.constant dense<0.000000e+00> : vector<128x4xf32>
    %16 = tpu.matmul %13, %15, %cst_8 {dimension_numbers = #tpu.dot_dimension_numbers<[1], [0], [0], [1], [0, 0, 1, 1], [], []>} : vector<128x4xbf16>, vector<4x4xbf16>, vector<128x4xf32> -> vector<128x4xf32>
    %17 = arith.addf %11, %16 : vector<128x4xf32>
    %18 = vector.extract_strided_slice %4 {offsets = [0, 2, 0], sizes = [8, 16, 4], strides = [1, 1, 1]} : vector<10x18x4xbf16> to vector<8x16x4xbf16>
    %19 = vector.shape_cast %18 : vector<8x16x4xbf16> to vector<128x4xbf16>
    %c2 = arith.constant 2 : index
    %c0_9 = arith.constant 0 : index
    %c0_10 = arith.constant 0 : index
    %20 = vector.load %arg3[%c2, %c0_9, %c0_10] : memref<9x4x4xbf16, #tpu.memory_space<vmem>>, vector<1x4x4xbf16>
    %21 = vector.shape_cast %20 : vector<1x4x4xbf16> to vector<4x4xbf16>
    %cst_11 = arith.constant dense<0.000000e+00> : vector<128x4xf32>
    %22 = tpu.matmul %19, %21, %cst_11 {dimension_numbers = #tpu.dot_dimension_numbers<[1], [0], [0], [1], [0, 0, 1, 1], [], []>} : vector<128x4xbf16>, vector<4x4xbf16>, vector<128x4xf32> -> vector<128x4xf32>
    %23 = arith.addf %17, %22 : vector<128x4xf32>
    %24 = vector.extract_strided_slice %4 {offsets = [1, 0, 0], sizes = [8, 16, 4], strides = [1, 1, 1]} : vector<10x18x4xbf16> to vector<8x16x4xbf16>
    %25 = vector.shape_cast %24 : vector<8x16x4xbf16> to vector<128x4xbf16>
    %c3 = arith.constant 3 : index
    %c0_12 = arith.constant 0 : index
    %c0_13 = arith.constant 0 : index
    %26 = vector.load %arg3[%c3, %c0_12, %c0_13] : memref<9x4x4xbf16, #tpu.memory_space<vmem>>, vector<1x4x4xbf16>
    %27 = vector.shape_cast %26 : vector<1x4x4xbf16> to vector<4x4xbf16>
    %cst_14 = arith.constant dense<0.000000e+00> : vector<128x4xf32>
    %28 = tpu.matmul %25, %27, %cst_14 {dimension_numbers = #tpu.dot_dimension_numbers<[1], [0], [0], [1], [0, 0, 1, 1], [], []>} : vector<128x4xbf16>, vector<4x4xbf16>, vector<128x4xf32> -> vector<128x4xf32>
    %29 = arith.addf %23, %28 : vector<128x4xf32>
    %30 = vector.extract_strided_slice %4 {offsets = [1, 1, 0], sizes = [8, 16, 4], strides = [1, 1, 1]} : vector<10x18x4xbf16> to vector<8x16x4xbf16>
    %31 = vector.shape_cast %30 : vector<8x16x4xbf16> to vector<128x4xbf16>
    %c4 = arith.constant 4 : index
    %c0_15 = arith.constant 0 : index
    %c0_16 = arith.constant 0 : index
    %32 = vector.load %arg3[%c4, %c0_15, %c0_16] : memref<9x4x4xbf16, #tpu.memory_space<vmem>>, vector<1x4x4xbf16>
    %33 = vector.shape_cast %32 : vector<1x4x4xbf16> to vector<4x4xbf16>
    %cst_17 = arith.constant dense<0.000000e+00> : vector<128x4xf32>
    %34 = tpu.matmul %31, %33, %cst_17 {dimension_numbers = #tpu.dot_dimension_numbers<[1], [0], [0], [1], [0, 0, 1, 1], [], []>} : vector<128x4xbf16>, vector<4x4xbf16>, vector<128x4xf32> -> vector<128x4xf32>
    %35 = arith.addf %29, %34 : vector<128x4xf32>
    %36 = vector.extract_strided_slice %4 {offsets = [1, 2, 0], sizes = [8, 16, 4], strides = [1, 1, 1]} : vector<10x18x4xbf16> to vector<8x16x4xbf16>
    %37 = vector.shape_cast %36 : vector<8x16x4xbf16> to vector<128x4xbf16>
    %c5 = arith.constant 5 : index
    %c0_18 = arith.constant 0 : index
    %c0_19 = arith.constant 0 : index
    %38 = vector.load %arg3[%c5, %c0_18, %c0_19] : memref<9x4x4xbf16, #tpu.memory_space<vmem>>, vector<1x4x4xbf16>
    %39 = vector.shape_cast %38 : vector<1x4x4xbf16> to vector<4x4xbf16>
    %cst_20 = arith.constant dense<0.000000e+00> : vector<128x4xf32>
    %40 = tpu.matmul %37, %39, %cst_20 {dimension_numbers = #tpu.dot_dimension_numbers<[1], [0], [0], [1], [0, 0, 1, 1], [], []>} : vector<128x4xbf16>, vector<4x4xbf16>, vector<128x4xf32> -> vector<128x4xf32>
    %41 = arith.addf %35, %40 : vector<128x4xf32>
    %42 = vector.extract_strided_slice %4 {offsets = [2, 0, 0], sizes = [8, 16, 4], strides = [1, 1, 1]} : vector<10x18x4xbf16> to vector<8x16x4xbf16>
    %43 = vector.shape_cast %42 : vector<8x16x4xbf16> to vector<128x4xbf16>
    %c6 = arith.constant 6 : index
    %c0_21 = arith.constant 0 : index
    %c0_22 = arith.constant 0 : index
    %44 = vector.load %arg3[%c6, %c0_21, %c0_22] : memref<9x4x4xbf16, #tpu.memory_space<vmem>>, vector<1x4x4xbf16>
    %45 = vector.shape_cast %44 : vector<1x4x4xbf16> to vector<4x4xbf16>
    %cst_23 = arith.constant dense<0.000000e+00> : vector<128x4xf32>
    %46 = tpu.matmul %43, %45, %cst_23 {dimension_numbers = #tpu.dot_dimension_numbers<[1], [0], [0], [1], [0, 0, 1, 1], [], []>} : vector<128x4xbf16>, vector<4x4xbf16>, vector<128x4xf32> -> vector<128x4xf32>
    %47 = arith.addf %41, %46 : vector<128x4xf32>
    %48 = vector.extract_strided_slice %4 {offsets = [2, 1, 0], sizes = [8, 16, 4], strides = [1, 1, 1]} : vector<10x18x4xbf16> to vector<8x16x4xbf16>
    %49 = vector.shape_cast %48 : vector<8x16x4xbf16> to vector<128x4xbf16>
    %c7 = arith.constant 7 : index
    %c0_24 = arith.constant 0 : index
    %c0_25 = arith.constant 0 : index
    %50 = vector.load %arg3[%c7, %c0_24, %c0_25] : memref<9x4x4xbf16, #tpu.memory_space<vmem>>, vector<1x4x4xbf16>
    %51 = vector.shape_cast %50 : vector<1x4x4xbf16> to vector<4x4xbf16>
    %cst_26 = arith.constant dense<0.000000e+00> : vector<128x4xf32>
    %52 = tpu.matmul %49, %51, %cst_26 {dimension_numbers = #tpu.dot_dimension_numbers<[1], [0], [0], [1], [0, 0, 1, 1], [], []>} : vector<128x4xbf16>, vector<4x4xbf16>, vector<128x4xf32> -> vector<128x4xf32>
    %53 = arith.addf %47, %52 : vector<128x4xf32>
    %54 = vector.extract_strided_slice %4 {offsets = [2, 2, 0], sizes = [8, 16, 4], strides = [1, 1, 1]} : vector<10x18x4xbf16> to vector<8x16x4xbf16>
    %55 = vector.shape_cast %54 : vector<8x16x4xbf16> to vector<128x4xbf16>
    %c8 = arith.constant 8 : index
    %c0_27 = arith.constant 0 : index
    %c0_28 = arith.constant 0 : index
    %56 = vector.load %arg3[%c8, %c0_27, %c0_28] : memref<9x4x4xbf16, #tpu.memory_space<vmem>>, vector<1x4x4xbf16>
    %57 = vector.shape_cast %56 : vector<1x4x4xbf16> to vector<4x4xbf16>
    %cst_29 = arith.constant dense<0.000000e+00> : vector<128x4xf32>
    %58 = tpu.matmul %55, %57, %cst_29 {dimension_numbers = #tpu.dot_dimension_numbers<[1], [0], [0], [1], [0, 0, 1, 1], [], []>} : vector<128x4xbf16>, vector<4x4xbf16>, vector<128x4xf32> -> vector<128x4xf32>
    %59 = arith.addf %53, %58 : vector<128x4xf32>
    %60 = vector.shape_cast %59 : vector<128x4xf32> to vector<1x8x16x4xf32>
    %61 = arith.truncf %60 : vector<1x8x16x4xf32> to vector<1x8x16x4xbf16>
    %c0_30 = arith.constant 0 : index
    %c0_31 = arith.constant 0 : index
    %c0_32 = arith.constant 0 : index
    %c0_33 = arith.constant 0 : index
    %62 = vector.load %arg4[%c0_30, %c0_31, %c0_32, %c0_33] : memref<1x8x16x4xbf16, #tpu.memory_space<vmem>>, vector<1x8x16x4xbf16>
    tpu.vector_store %arg4[%c0_30, %c0_31, %c0_32, %c0_33], %61 {strides = array<i32>} : memref<1x8x16x4xbf16, #tpu.memory_space<vmem>>, vector<1x8x16x4xbf16>,
    %cst_34 = arith.constant dense<0.000000e+00> : vector<4xf32>
    %63 = vector.multi_reduction <add>, %59, %cst_34 [0] : vector<128x4xf32> to vector<4xf32>
    %64 = vector.shape_cast %63 : vector<4xf32> to vector<1x4xf32>
    %c0_35 = arith.constant 0 : index
    %c0_36 = arith.constant 0 : index
    %c0_37 = arith.constant 0 : index
    %c0_38 = arith.constant 0 : index
    %65 = vector.load %arg5[%c0_35, %c0_36, %c0_37, %c0_38] : memref<1x1x2x4xf32, #tpu.memory_space<vmem>>, vector<1x1x1x4xf32>
    %66 = vector.shape_cast %65 : vector<1x1x1x4xf32> to vector<1x4xf32>
    %67 = vector.shape_cast %64 : vector<1x4xf32> to vector<1x1x1x4xf32>
    tpu.vector_store %arg5[%c0_35, %c0_36, %c0_37, %c0_38], %67 {strides = array<i32>} : memref<1x1x2x4xf32, #tpu.memory_space<vmem>>, vector<1x1x1x4xf32>,
    %68 = arith.mulf %59, %59 : vector<128x4xf32>
    %cst_39 = arith.constant dense<0.000000e+00> : vector<4xf32>
    %69 = vector.multi_reduction <add>, %68, %cst_39 [0] : vector<128x4xf32> to vector<4xf32>
    %70 = vector.shape_cast %69 : vector<4xf32> to vector<1x4xf32>
    %c0_40 = arith.constant 0 : index
    %c0_41 = arith.constant 0 : index
    %c1_42 = arith.constant 1 : index
    %c0_43 = arith.constant 0 : index
    %71 = vector.load %arg5[%c0_40, %c0_41, %c1_42, %c0_43] : memref<1x1x2x4xf32, #tpu.memory_space<vmem>>, vector<1x1x1x4xf32>
    %72 = vector.shape_cast %71 : vector<1x1x1x4xf32> to vector<1x4xf32>
    %73 = vector.shape_cast %70 : vector<1x4xf32> to vector<1x1x1x4xf32>
    tpu.vector_store %arg5[%c0_40, %c0_41, %c1_42, %c0_43], %73 {strides = array<i32>} : memref<1x1x2x4xf32, #tpu.memory_space<vmem>>, vector<1x1x1x4xf32>,
    return
  }
  func.func @transform_0(%arg0: i32, %arg1: i32) -> (i32, i32, i32, i32) {
    %c0_i32 = arith.constant 0 : i32
    %c0_i32_0 = arith.constant 0 : i32
    %c0_i32_1 = arith.constant 0 : i32
    %c0_i32_2 = arith.constant 0 : i32
    return %arg0, %c0_i32, %c0_i32_0, %c0_i32_1 : i32, i32, i32, i32
  }
  func.func @transform_1(%arg0: i32, %arg1: i32) -> (i32, i32, i32) {
    %c0_i32 = arith.constant 0 : i32
    %c0_i32_0 = arith.constant 0 : i32
    %c0_i32_1 = arith.constant 0 : i32
    %c0_i32_2 = arith.constant 0 : i32
    return %c0_i32, %c0_i32_0, %c0_i32_1 : i32, i32, i32
  }
  func.func @transform_2(%arg0: i32, %arg1: i32) -> (i32, i32, i32, i32) {
    %c0_i32 = arith.constant 0 : i32
    %c0_i32_0 = arith.constant 0 : i32
    %c0_i32_1 = arith.constant 0 : i32
    return %arg0, %arg1, %c0_i32, %c0_i32_0 : i32, i32, i32, i32
  }
  func.func @transform_3(%arg0: i32, %arg1: i32) -> (i32, i32, i32, i32) {
    %c0_i32 = arith.constant 0 : i32
    %c0_i32_0 = arith.constant 0 : i32
    %c0_i32_1 = arith.constant 0 : i32
    return %arg0, %arg1, %c0_i32, %c0_i32_0 : i32, i32, i32, i32
  }
}

</mosaic_0001>

<llo_original>
// kernel: res_block.5
$region0: #{res_block.5}
  #allocation0 [shape = 'u32[]', space=smem, size = 0x4, offset = 0x4, fixed_abs, tag = 'smem constant byte address 0x4 - core index']
  #allocation1 [shape = 'u32[144,128]{1,0:T(1,128)}', space=vmem, size = 0x12000, scoped, tag = 'internal scratch']
  %s0 = inlined_call_operand.vmem [shape: f32[2,16,16,4], index: 0, kind: input, shape index: {}]
  %s1 = inlined_call_operand.vmem [shape: f32[1,4], index: 1, kind: input, shape index: {}]
  %s2 = inlined_call_operand.vmem [shape: f32[1,4], index: 2, kind: input, shape index: {}]
  %s3 = inlined_call_operand.vmem [shape: f32[2,16,16,4], index: 3, kind: input, shape index: {}]
  %s4 = inlined_call_operand.vmem [shape: f32[2,16,16,4], index: 4, kind: output, shape index: {}]
  %s5 = sld [smem:[#allocation0]]
  $region49: #{res_block.5} parent=0
    _
  %s7 = ssub.s32 1, %s5
  %s8 = scalar_select 0, %s7, %s5
  loop: start=0, step=1, limit=6
  $region2: #{res_block.5} parent=0 // loop_pre_header
    _
  $region3: #{res_block.5} parent=0 // loop_header
    %s10 = sphi 0, %s14
    %p11 = scmp.ge.s32.totalorder %s10, 6
    %s17 = sphi 0, %s29
    %s18 = sphi 0, %s25
    %s19 = sphi 0, %s17
    %s20 = sphi 0, %s18
    %s21 = sphi 0, %s19
    %s22 = sphi 0, %s20
    %s34 = sphi 0, %s36
    %s37 = sphi 0, %s34
    %s38 = sphi 0, %s37
    %s54 = sphi 0, %s38
    %s58 = sphi 0, %s58
    %s60 = sphi 0, %s58
    %s61 = sphi 0, %s60
    %s75 = sphi 0, %s61
    %s79 = sphi 0, %s79
    %s81 = sphi 0, %s79
    %s82 = sphi 0, %s81
    %s96 = sphi 0, %s82
    %s104 = sphi 0, %s106
    %s107 = sphi 0, %s104
    %s108 = sphi 0, %s107
    %s124 = sphi 0, %s108
    %s132 = sphi 0, %s134
    %s135 = sphi 0, %s132
    %s136 = sphi 0, %s135
    %s152 = sphi 0, %s136
  $region4: #{res_block.5} parent=0 // loop_header_branch
    %13 = sbr.rel (%p11) target = $region8
  $region5: #{res_block.5} parent=0 // loop_body
    %s15 = ssub.s32 %s10, 1
    %s16 = ssub.s32 %s10, 2
    %s23 = sadd.s32 1, %s18
    %p24 = scmp.ge.s32.totalorder %s23, 2
    %s25 = scalar_select %p24, 0, %s23
    %s26 = sadd.s32 1, %s17
    %s27 = scalar_select %p24, %s26, %s17
    %p28 = scmp.ge.s32.totalorder %s27, 2
    %s29 = scalar_select %p28, 0, %s27
    %s30 = ssub.s32 %s17, %s29
    %s31 = ssub.s32 %s18, %s25
    %s32 = sor.u32 %s30, %s31
    %p33 = scmp.eq.s32.totalorder %s32, 0
    %s35 = sadd.s32 %s34, 1
    %s36 = scalar_select %p33, %s34, %s35
    %p39 = pneg %p33
    %p40 = scmp.eq.s32.totalorder %s10, 3
    %p41 = por %p39, %p40
    %p42 = scmp.ne.s32.totalorder %s34, %s37
    %p43 = scmp.eq.s32.totalorder %s10, 0
    %p44 = por %p42, %p43
    %p45 = scmp.ne.s32.totalorder %s34, %s37
    %p46 = scmp.eq.s32.totalorder %s15, 3
    %p47 = por %p45, %p46
    %p48 = scmp.ne.s32.totalorder %s37, %s38
    %p49 = scmp.eq.s32.totalorder %s15, 0
    %p50 = por %p48, %p49
    %p51 = scmp.ne.s32.totalorder %s37, %s38
    %p52 = scmp.eq.s32.totalorder %s16, 3
    %p53 = por %p51, %p52
    %p55 = scmp.ne.s32.totalorder %s38, %s54
    %p56 = scmp.eq.s32.totalorder %s16, 0
    %p57 = por %p55, %p56
    %s59 = sadd.s32 %s58, 1
    %p62 = scmp.eq.s32.totalorder %s10, 3
    %p63 = scmp.ne.s32.totalorder %s58, %s60
    %p64 = scmp.eq.s32.totalorder %s10, 0
    %p65 = por %p63, %p64
    %p66 = scmp.ne.s32.totalorder %s58, %s60
    %p67 = scmp.eq.s32.totalorder %s15, 3
    %p68 = por %p66, %p67
    %p69 = scmp.ne.s32.totalorder %s60, %s61
    %p70 = scmp.eq.s32.totalorder %s15, 0
    %p71 = por %p69, %p70
    %p72 = scmp.ne.s32.totalorder %s60, %s61
    %p73 = scmp.eq.s32.totalorder %s16, 3
    %p74 = por %p72, %p73
    %p76 = scmp.ne.s32.totalorder %s61, %s75
    %p77 = scmp.eq.s32.totalorder %s16, 0
    %p78 = por %p76, %p77
    %s80 = sadd.s32 %s79, 1
    %p83 = scmp.eq.s32.totalorder %s10, 3
    %p84 = scmp.ne.s32.totalorder %s79, %s81
    %p85 = scmp.eq.s32.totalorder %s10, 0
    %p86 = por %p84, %p85
    %p87 = scmp.ne.s32.totalorder %s79, %s81
    %p88 = scmp.eq.s32.totalorder %s15, 3
    %p89 = por %p87, %p88
    %p90 = scmp.ne.s32.totalorder %s81, %s82
    %p91 = scmp.eq.s32.totalorder %s15, 0
    %p92 = por %p90, %p91
    %p93 = scmp.ne.s32.totalorder %s81, %s82
    %p94 = scmp.eq.s32.totalorder %s16, 3
    %p95 = por %p93, %p94
    %p97 = scmp.ne.s32.totalorder %s82, %s96
    %p98 = scmp.eq.s32.totalorder %s16, 0
    %p99 = por %p97, %p98
    %s100 = ssub.s32 %s17, %s29
    %s101 = ssub.s32 %s18, %s25
    %s102 = sor.u32 %s100, %s101
    %p103 = scmp.eq.s32.totalorder %s102, 0
    %s105 = sadd.s32 %s104, 1
    %s106 = scalar_select %p103, %s104, %s105
    %p109 = pneg %p103
    %p110 = scmp.eq.s32.totalorder %s10, 3
    %p111 = por %p109, %p110
    %p112 = scmp.ne.s32.totalorder %s104, %s107
    %p113 = scmp.eq.s32.totalorder %s10, 0
    %p114 = por %p112, %p113
    %p115 = scmp.ne.s32.totalorder %s104, %s107
    %p116 = scmp.eq.s32.totalorder %s15, 3
    %p117 = por %p115, %p116
    %p118 = scmp.ne.s32.totalorder %s107, %s108
    %p119 = scmp.eq.s32.totalorder %s15, 0
    %p120 = por %p118, %p119
    %p121 = scmp.ne.s32.totalorder %s107, %s108
    %p122 = scmp.eq.s32.totalorder %s16, 3
    %p123 = por %p121, %p122
    %p125 = scmp.ne.s32.totalorder %s108, %s124
    %p126 = scmp.eq.s32.totalorder %s16, 0
    %p127 = por %p125, %p126
    %s128 = ssub.s32 %s17, %s29
    %s129 = ssub.s32 %s18, %s25
    %s130 = sor.u32 %s128, %s129
    %p131 = scmp.eq.s32.totalorder %s130, 0
    %s133 = sadd.s32 %s132, 1
    %s134 = scalar_select %p131, %s132, %s133
    %p137 = pneg %p131
    %p138 = scmp.eq.s32.totalorder %s10, 3
    %p139 = por %p137, %p138
    %p140 = scmp.ne.s32.totalorder %s132, %s135
    %p141 = scmp.eq.s32.totalorder %s10, 0
    %p142 = por %p140, %p141
    %p143 = scmp.ne.s32.totalorder %s132, %s135
    %p144 = scmp.eq.s32.totalorder %s15, 3
    %p145 = por %p143, %p144
    %p146 = scmp.ne.s32.totalorder %s135, %s136
    %p147 = scmp.eq.s32.totalorder %s15, 0
    %p148 = por %p146, %p147
    %p149 = scmp.ne.s32.totalorder %s135, %s136
    %p150 = scmp.eq.s32.totalorder %s16, 3
    %p151 = por %p149, %p150
    %p153 = scmp.ne.s32.totalorder %s136, %s152
    %p154 = scmp.eq.s32.totalorder %s16, 0
    %p155 = por %p153, %p154
    %p156 = scmp.le.s32.totalorder 1, %s10
    %p157 = scmp.lt.s32.totalorder %s10, 5
    %p158 = pnand %p156, %p157
    %p159 = pneg %p158
    // Predicated region
    $region9: #{res_block.5} parent=5 // pred_check
      _
    $region10: #{res_block.5} parent=5 // pred_check_branch
      %161 = sbr.rel (%p158) target = $region12
    $region11: #{res_block.5} parent=5 // pred_region
      %s162 = ssub.s32 %s10, 1
      // Predicated region
      $region13: #{res_block.5} parent=11 // pred_check
        %p163 = pneg %p71
      $region14: #{res_block.5} parent=11 // pred_check_branch
        %165 = sbr.rel (%p163) target = $region16
      $region15: #{res_block.5} parent=11 // pred_region
        _
      $region16: #{res_block.5} parent=11 // pred_fallthru
        _
      // Predicated region
      $region17: #{res_block.5} parent=11 // pred_check
        %p166 = pneg %p92
      $region18: #{res_block.5} parent=11 // pred_check_branch
        %168 = sbr.rel (%p166) target = $region20
      $region19: #{res_block.5} parent=11 // pred_region
        _
      $region20: #{res_block.5} parent=11 // pred_fallthru
        _
    $region12: #{res_block.5} parent=5 // pred_fallthru
      _
    %p169 = scmp.lt.s32.totalorder %s10, 4
    // Predicated region
    $region21: #{res_block.5} parent=5 // pred_check
      %p170 = pneg %p169
    $region22: #{res_block.5} parent=5 // pred_check_branch
      %172 = sbr.rel (%p170) target = $region24
    $region23: #{res_block.5} parent=5 // pred_region
      // Predicated region
      $region25: #{res_block.5} parent=23 // pred_check
        %p173 = pneg %p44
      $region26: #{res_block.5} parent=23 // pred_check_branch
        %175 = sbr.rel (%p173) target = $region28
      $region27: #{res_block.5} parent=23 // pred_region
        %s176 = smul.u32 8, %s18
        %p177 = scmp.lt.s32.totalorder %s17, 1
        %s178 = scalar_select %p177, %s17, 1
        %p179 = scmp.lt.s32.totalorder %s176, 15
        %s180 = scalar_select %p179, %s176, 15
        %s181 = smul.addr %s180, 2
        %s182 = smul.addr %s178, 32
        %s183 = sadd.s32 %s181, %s182
        %s184 = smul.addr %s183, 8
        %s185 = scalar_lea.vmem %s0, %s184
        %s186 = smul.u32 8, %s18
      $region28: #{res_block.5} parent=23 // pred_fallthru
        _
      // Predicated region
      $region29: #{res_block.5} parent=23 // pred_check
        %p187 = pneg %p114
      $region30: #{res_block.5} parent=23 // pred_check_branch
        %189 = sbr.rel (%p187) target = $region32
      $region31: #{res_block.5} parent=23 // pred_region
        %s190 = smul.u32 8, %s18
        %p191 = scmp.lt.s32.totalorder %s17, 1
        %s192 = scalar_select %p191, %s17, 1
        %p193 = scmp.lt.s32.totalorder %s190, 15
        %s194 = scalar_select %p193, %s190, 15
        %s195 = smul.addr %s194, 2
        %s196 = smul.addr %s192, 32
        %s197 = sadd.s32 %s195, %s196
        %s198 = smul.addr %s197, 8
        %s199 = scalar_lea.vmem %s3, %s198
        %s200 = smul.u32 8, %s18
      $region32: #{res_block.5} parent=23 // pred_fallthru
        _
    $region24: #{res_block.5} parent=5 // pred_fallthru
      _
    %p201 = scmp.le.s32.totalorder 1, %s10
    %p202 = scmp.lt.s32.totalorder %s10, 5
    %p203 = pnand %p201, %p202
    %p204 = pneg %p203
    // Predicated region
    $region33: #{res_block.5} parent=5 // pred_check
      _
    $region34: #{res_block.5} parent=5 // pred_check_branch
      %206 = sbr.rel (%p203) target = $region36
    $region35: #{res_block.5} parent=5 // pred_region
      %s207 = ssub.s32 %s10, 1
      %s208 = smul.u32 8, %s20
      %p209 = scmp.lt.s32.totalorder %s19, 1
      %s210 = scalar_select %p209, %s19, 1
      %p211 = scmp.lt.s32.totalorder %s208, 15
      %s212 = scalar_select %p211, %s208, 15
      %s213 = smul.addr %s212, 2
      %s214 = smul.addr %s210, 32
      %s215 = sadd.s32 %s213, %s214
      %s216 = smul.addr %s215, 8
      %s217 = scalar_lea.vmem %s0, %s216
      %p218 = pneg %p50
      %p219 = pneg %p47
      %p220 = pneg %p71
      %p221 = pneg %p68
      %p222 = pneg %p92
      %p223 = pneg %p89
      %s224 = smul.u32 8, %s20
      %p225 = scmp.lt.s32.totalorder %s19, 1
      %s226 = scalar_select %p225, %s19, 1
      %p227 = scmp.lt.s32.totalorder %s224, 15
      %s228 = scalar_select %p227, %s224, 15
      %s229 = smul.addr %s228, 2
      %s230 = smul.addr %s226, 32
      %s231 = sadd.s32 %s229, %s230
      %s232 = smul.addr %s231, 8
      %s233 = scalar_lea.vmem %s3, %s232
      %p234 = pneg %p120
      %p235 = pneg %p117
      %p236 = pneg %p148
      %p237 = pneg %p145
      %s238 = smul.u32 8, %s20
      %p239 = scmp.lt.s32.totalorder %s19, 1
      %s240 = scalar_select %p239, %s19, 1
      %p241 = scmp.lt.s32.totalorder %s238, 15
      %s242 = scalar_select %p241, %s238, 15
      %s243 = smul.addr %s242, 2
      %s244 = smul.addr %s240, 32
      %s245 = sadd.s32 %s243, %s244
      %s246 = smul.addr %s245, 8
      %s247 = scalar_lea.vmem %s4, %s246
      %s248 = smul.u32 8, %s20
      %p249 = scmp.lt.s32.totalorder %s19, 1
      %s250 = scalar_select %p249, %s19, 1
      %p251 = scmp.lt.s32.totalorder %s248, 15
      %s252 = scalar_select %p251, %s248, 15
      %s253 = smul.addr %s252, 2
      %s254 = smul.addr %s250, 32
      %s255 = sadd.s32 %s253, %s254
      %s256 = smul.addr %s255, 8
      %s257 = scalar_lea.vmem %s0, %s256
      %s258 = smul.u32 8, %s20
      %s259 = smul.u32 8, %s20
      %p260 = scmp.lt.s32.totalorder %s19, 1
      %s261 = scalar_select %p260, %s19, 1
      %p262 = scmp.lt.s32.totalorder %s259, 15
      %s263 = scalar_select %p262, %s259, 15
      %s264 = smul.addr %s263, 2
      %s265 = smul.addr %s261, 32
      %s266 = sadd.s32 %s264, %s265
      %s267 = smul.addr %s266, 8
      %s268 = scalar_lea.vmem %s3, %s267
      %s269 = smul.u32 8, %s20
      %s270 = smul.u32 8, %s20
      %p271 = scmp.lt.s32.totalorder %s19, 1
      %s272 = scalar_select %p271, %s19, 1
      %p273 = scmp.lt.s32.totalorder %s270, 15
      %s274 = scalar_select %p273, %s270, 15
      %s275 = smul.addr %s274, 2
      %s276 = smul.addr %s272, 32
      %s277 = sadd.s32 %s275, %s276
      %s278 = smul.addr %s277, 8
      %s279 = scalar_lea.vmem %s4, %s278
      %s280 = smul.u32 8, %s20
      %v281 = vld [vmem:[%s257] sm:$0xff]
      %v282 = vld [vmem:[%s257 + $0x8] sm:$0xff]
      %v283 = vld [vmem:[%s257 + $0x10] sm:$0xff]
      %v284 = vld [vmem:[%s257 + $0x18] sm:$0xff]
      %v285 = vld [vmem:[%s257 + $0x20] sm:$0xff]
      %v286 = vld [vmem:[%s257 + $0x28] sm:$0xff]
      %v287 = vld [vmem:[%s257 + $0x30] sm:$0xff]
      %v288 = vld [vmem:[%s257 + $0x38] sm:$0xff]
      %v289 = vld [vmem:[%s257 + $0x40] sm:$0xff]
      %v290 = vld [vmem:[%s257 + $0x48] sm:$0xff]
      %v291 = vld [vmem:[%s257 + $0x50] sm:$0xff]
      %v292 = vld [vmem:[%s257 + $0x58] sm:$0xff]
      %v293 = vld [vmem:[%s257 + $0x60] sm:$0xff]
      %v294 = vld [vmem:[%s257 + $0x68] sm:$0xff]
      %v295 = vld [vmem:[%s257 + $0x70] sm:$0xff]
      %v296 = vld [vmem:[%s257 + $0x78] sm:$0xff]
      %v297 = vld [vmem:[%s1] sm:$0x1]
      %v299 = vlaneseq
      %v300 = vshrl.u32 %v299, 7
      %v301 = vsub.s32 0, %v300
      %v302 = vrot.slane %v297, %v301
      %v304 = vmul.f32 %v281, %v302
      %v305 = vmul.f32 %v282, %v302
      %v306 = vmul.f32 %v283, %v302
      %v307 = vmul.f32 %v284, %v302
      %v308 = vmul.f32 %v285, %v302
      %v309 = vmul.f32 %v286, %v302
      %v310 = vmul.f32 %v287, %v302
      %v311 = vmul.f32 %v288, %v302
      %v312 = vmul.f32 %v289, %v302
      %v313 = vmul.f32 %v290, %v302
      %v314 = vmul.f32 %v291, %v302
      %v315 = vmul.f32 %v292, %v302
      %v316 = vmul.f32 %v293, %v302
      %v317 = vmul.f32 %v294, %v302
      %v318 = vmul.f32 %v295, %v302
      %v319 = vmul.f32 %v296, %v302
      %v320 = vld [vmem:[%s2] sm:$0x1]
      %v322 = vlaneseq
      %v323 = vshrl.u32 %v322, 7
      %v324 = vsub.s32 0, %v323
      %v325 = vrot.slane %v320, %v324
      %v327 = vadd.f32 %v304, %v325
      %v328 = vadd.f32 %v305, %v325
      %v329 = vadd.f32 %v306, %v325
      %v330 = vadd.f32 %v307, %v325
      %v331 = vadd.f32 %v308, %v325
      %v332 = vadd.f32 %v309, %v325
      %v333 = vadd.f32 %v310, %v325
      %v334 = vadd.f32 %v311, %v325
      %v335 = vadd.f32 %v312, %v325
      %v336 = vadd.f32 %v313, %v325
      %v337 = vadd.f32 %v314, %v325
      %v338 = vadd.f32 %v315, %v325
      %v339 = vadd.f32 %v316, %v325
      %v340 = vadd.f32 %v317, %v325
      %v341 = vadd.f32 %v318, %v325
      %v342 = vadd.f32 %v319, %v325
      %v343 = vld [vmem:[%s268] sm:$0xff]
      %v344 = vld [vmem:[%s268 + $0x8] sm:$0xff]
      %v345 = vld [vmem:[%s268 + $0x10] sm:$0xff]
      %v346 = vld [vmem:[%s268 + $0x18] sm:$0xff]
      %v347 = vld [vmem:[%s268 + $0x20] sm:$0xff]
      %v348 = vld [vmem:[%s268 + $0x28] sm:$0xff]
      %v349 = vld [vmem:[%s268 + $0x30] sm:$0xff]
      %v350 = vld [vmem:[%s268 + $0x38] sm:$0xff]
      %v351 = vld [vmem:[%s268 + $0x40] sm:$0xff]
      %v352 = vld [vmem:[%s268 + $0x48] sm:$0xff]
      %v353 = vld [vmem:[%s268 + $0x50] sm:$0xff]
      %v354 = vld [vmem:[%s268 + $0x58] sm:$0xff]
      %v355 = vld [vmem:[%s268 + $0x60] sm:$0xff]
      %v356 = vld [vmem:[%s268 + $0x68] sm:$0xff]
      %v357 = vld [vmem:[%s268 + $0x70] sm:$0xff]
      %v358 = vld [vmem:[%s268 + $0x78] sm:$0xff]
      %v359 = vadd.f32 %v327, %v343
      %v360 = vadd.f32 %v328, %v344
      %v361 = vadd.f32 %v329, %v345
      %v362 = vadd.f32 %v330, %v346
      %v363 = vadd.f32 %v331, %v347
      %v364 = vadd.f32 %v332, %v348
      %v365 = vadd.f32 %v333, %v349
      %v366 = vadd.f32 %v334, %v350
      %v367 = vadd.f32 %v335, %v351
      %v368 = vadd.f32 %v336, %v352
      %v369 = vadd.f32 %v337, %v353
      %v370 = vadd.f32 %v338, %v354
      %v371 = vadd.f32 %v339, %v355
      %v372 = vadd.f32 %v340, %v356
      %v373 = vadd.f32 %v341, %v357
      %v374 = vadd.f32 %v342, %v358
      %v375 = vmax.f32 %v359, 0.0
      %v376 = vmax.f32 %v360, 0.0
      %v377 = vmax.f32 %v361, 0.0
      %v378 = vmax.f32 %v362, 0.0
      %v379 = vmax.f32 %v363, 0.0
      %v380 = vmax.f32 %v364, 0.0
      %v381 = vmax.f32 %v365, 0.0
      %v382 = vmax.f32 %v366, 0.0
      %v383 = vmax.f32 %v367, 0.0
      %v384 = vmax.f32 %v368, 0.0
      %v385 = vmax.f32 %v369, 0.0
      %v386 = vmax.f32 %v370, 0.0
      %v387 = vmax.f32 %v371, 0.0
      %v388 = vmax.f32 %v372, 0.0
      %v389 = vmax.f32 %v373, 0.0
      %v390 = vmax.f32 %v374, 0.0
      %vm391 = vcmask 31744
      %392 = vst.msk [vmem:[%s279] sm:$0xff] %vm391, %v375
      %393 = vst.msk [vmem:[%s279 + $0x8] sm:$0xff] %vm391, %v376
      %394 = vst.msk [vmem:[%s279 + $0x10] sm:$0xff] %vm391, %v377
      %395 = vst.msk [vmem:[%s279 + $0x18] sm:$0xff] %vm391, %v378
      %396 = vst.msk [vmem:[%s279 + $0x20] sm:$0xff] %vm391, %v379
      %397 = vst.msk [vmem:[%s279 + $0x28] sm:$0xff] %vm391, %v380
      %398 = vst.msk [vmem:[%s279 + $0x30] sm:$0xff] %vm391, %v381
      %399 = vst.msk [vmem:[%s279 + $0x38] sm:$0xff] %vm391, %v382
      %400 = vst.msk [vmem:[%s279 + $0x40] sm:$0xff] %vm391, %v383
      %401 = vst.msk [vmem:[%s279 + $0x48] sm:$0xff] %vm391, %v384
      %402 = vst.msk [vmem:[%s279 + $0x50] sm:$0xff] %vm391, %v385
      %403 = vst.msk [vmem:[%s279 + $0x58] sm:$0xff] %vm391, %v386
      %404 = vst.msk [vmem:[%s279 + $0x60] sm:$0xff] %vm391, %v387
      %405 = vst.msk [vmem:[%s279 + $0x68] sm:$0xff] %vm391, %v388
      %406 = vst.msk [vmem:[%s279 + $0x70] sm:$0xff] %vm391, %v389
      %407 = vst.msk [vmem:[%s279 + $0x78] sm:$0xff] %vm391, %v390
      %s408 = smul.u32 8, %s20
      %p409 = scmp.lt.s32.totalorder %s19, 1
      %s410 = scalar_select %p409, %s19, 1
      %p411 = scmp.lt.s32.totalorder %s408, 15
      %s412 = scalar_select %p411, %s408, 15
      %s413 = smul.addr %s412, 2
      %s414 = smul.addr %s410, 32
      %s415 = sadd.s32 %s413, %s414
      %s416 = smul.addr %s415, 8
      %s417 = scalar_lea.vmem %s4, %s416
      // Predicated region
      $region37: #{res_block.5} parent=35 // pred_check
        %p418 = pneg %p145
      $region38: #{res_block.5} parent=35 // pred_check_branch
        %420 = sbr.rel (%p418) target = $region40
      $region39: #{res_block.5} parent=35 // pred_region
        %s421 = smul.u32 8, %s20
      $region40: #{res_block.5} parent=35 // pred_fallthru
        _
    $region36: #{res_block.5} parent=5 // pred_fallthru
      _
    %p422 = scmp.le.s32.totalorder 2, %s10
    // Predicated region
    $region41: #{res_block.5} parent=5 // pred_check
      %p423 = pneg %p422
    $region42: #{res_block.5} parent=5 // pred_check_branch
      %425 = sbr.rel (%p423) target = $region44
    $region43: #{res_block.5} parent=5 // pred_region
      %s426 = ssub.s32 %s10, 2
      // Predicated region
      $region45: #{res_block.5} parent=43 // pred_check
        %p427 = pneg %p151
      $region46: #{res_block.5} parent=43 // pred_check_branch
        %429 = sbr.rel (%p427) target = $region48
      $region47: #{res_block.5} parent=43 // pred_region
        %s430 = smul.u32 8, %s22
        %p431 = scmp.lt.s32.totalorder %s21, 1
        %s432 = scalar_select %p431, %s21, 1
        %p433 = scmp.lt.s32.totalorder %s430, 15
        %s434 = scalar_select %p433, %s430, 15
        %s435 = smul.addr %s434, 2
        %s436 = smul.addr %s432, 32
        %s437 = sadd.s32 %s435, %s436
        %s438 = smul.addr %s437, 8
        %s439 = scalar_lea.vmem %s4, %s438
      $region48: #{res_block.5} parent=43 // pred_fallthru
        _
    $region44: #{res_block.5} parent=5 // pred_fallthru
      _
  $region6: #{res_block.5} parent=0 // loop_footer
    %s14 = sadd.s32 1, %s10
  $region7: #{res_block.5} parent=0 // loop_footer_branch
    %9 = sbr.rel target = $region3
  $region8: #{res_block.5} parent=0 // loop_exit
    _

// kernel: res_block.4
$region0: #{res_block.4}
  #allocation0 [shape = 'u32[]', space=smem, size = 0x4, offset = 0x4, fixed_abs, tag = 'smem constant byte address 0x4 - core index']
  #allocation1 [shape = 'u32[144,128]{1,0:T(1,128)}', space=vmem, size = 0x12000, scoped, tag = 'internal scratch']
  %s0 = inlined_call_operand.vmem [shape: bf16[2,18,18,4], index: 0, kind: input, shape index: {}]
  %s1 = inlined_call_operand.vmem [shape: bf16[9,4,4], index: 1, kind: input, shape index: {}]
  %s2 = inlined_call_operand.vmem [shape: f32[1,4], index: 2, kind: input, shape index: {}]
  %s3 = inlined_call_operand.vmem [shape: f32[1,4], index: 3, kind: input, shape index: {}]
  %s4 = inlined_call_operand.vmem [shape: f32[2,16,16,4], index: 4, kind: output, shape index: {0}]
  %s5 = inlined_call_operand.vmem [shape: f32[2,2,2,4], index: 5, kind: output, shape index: {1}]
  %6 = xla_tuple %s4, %s5
  %s7 = sld [smem:[#allocation0]]
  $region57: #{res_block.4} parent=0
    _
  %s9 = ssub.s32 1, %s7
  %s10 = scalar_select 0, %s9, %s7
  loop: start=0, step=1, limit=6
  $region2: #{res_block.4} parent=0 // loop_pre_header
    _
  $region3: #{res_block.4} parent=0 // loop_header
    %s12 = sphi 0, %s16
    %p13 = scmp.ge.s32.totalorder %s12, 6
    %s19 = sphi 0, %s31
    %s20 = sphi 0, %s27
    %s21 = sphi 0, %s19
    %s22 = sphi 0, %s20
    %s23 = sphi 0, %s21
    %s24 = sphi 0, %s22
    %s34 = sphi 0, %s36
    %s37 = sphi 0, %s34
    %s38 = sphi 0, %s37
    %s54 = sphi 0, %s38
    %s58 = sphi 0, %s58
    %s60 = sphi 0, %s58
    %s61 = sphi 0, %s60
    %s75 = sphi 0, %s61
    %s79 = sphi 0, %s79
    %s81 = sphi 0, %s79
    %s82 = sphi 0, %s81
    %s96 = sphi 0, %s82
    %s100 = sphi 0, %s100
    %s102 = sphi 0, %s100
    %s103 = sphi 0, %s102
    %s117 = sphi 0, %s103
    %s125 = sphi 0, %s127
    %s128 = sphi 0, %s125
    %s129 = sphi 0, %s128
    %s145 = sphi 0, %s129
    %s153 = sphi 0, %s155
    %s156 = sphi 0, %s153
    %s157 = sphi 0, %s156
    %s173 = sphi 0, %s157
  $region4: #{res_block.4} parent=0 // loop_header_branch
    %15 = sbr.rel (%p13) target = $region8
  $region5: #{res_block.4} parent=0 // loop_body
    %s17 = ssub.s32 %s12, 1
    %s18 = ssub.s32 %s12, 2
    %s25 = sadd.s32 1, %s20
    %p26 = scmp.ge.s32.totalorder %s25, 2
    %s27 = scalar_select %p26, 0, %s25
    %s28 = sadd.s32 1, %s19
    %s29 = scalar_select %p26, %s28, %s19
    %p30 = scmp.ge.s32.totalorder %s29, 2
    %s31 = scalar_select %p30, 0, %s29
    %s32 = ssub.s32 %s19, %s31
    %p33 = scmp.eq.s32.totalorder %s32, 0
    %s35 = sadd.s32 %s34, 1
    %s36 = scalar_select %p33, %s34, %s35
    %p39 = pneg %p33
    %p40 = scmp.eq.s32.totalorder %s12, 3
    %p41 = por %p39, %p40
    %p42 = scmp.ne.s32.totalorder %s34, %s37
    %p43 = scmp.eq.s32.totalorder %s12, 0
    %p44 = por %p42, %p43
    %p45 = scmp.ne.s32.totalorder %s34, %s37
    %p46 = scmp.eq.s32.totalorder %s17, 3
    %p47 = por %p45, %p46
    %p48 = scmp.ne.s32.totalorder %s37, %s38
    %p49 = scmp.eq.s32.totalorder %s17, 0
    %p50 = por %p48, %p49
    %p51 = scmp.ne.s32.totalorder %s37, %s38
    %p52 = scmp.eq.s32.totalorder %s18, 3
    %p53 = por %p51, %p52
    %p55 = scmp.ne.s32.totalorder %s38, %s54
    %p56 = scmp.eq.s32.totalorder %s18, 0
    %p57 = por %p55, %p56
    %s59 = sadd.s32 %s58, 1
    %p62 = scmp.eq.s32.totalorder %s12, 3
    %p63 = scmp.ne.s32.totalorder %s58, %s60
    %p64 = scmp.eq.s32.totalorder %s12, 0
    %p65 = por %p63, %p64
    %p66 = scmp.ne.s32.totalorder %s58, %s60
    %p67 = scmp.eq.s32.totalorder %s17, 3
    %p68 = por %p66, %p67
    %p69 = scmp.ne.s32.totalorder %s60, %s61
    %p70 = scmp.eq.s32.totalorder %s17, 0
    %p71 = por %p69, %p70
    %p72 = scmp.ne.s32.totalorder %s60, %s61
    %p73 = scmp.eq.s32.totalorder %s18, 3
    %p74 = por %p72, %p73
    %p76 = scmp.ne.s32.totalorder %s61, %s75
    %p77 = scmp.eq.s32.totalorder %s18, 0
    %p78 = por %p76, %p77
    %s80 = sadd.s32 %s79, 1
    %p83 = scmp.eq.s32.totalorder %s12, 3
    %p84 = scmp.ne.s32.totalorder %s79, %s81
    %p85 = scmp.eq.s32.totalorder %s12, 0
    %p86 = por %p84, %p85
    %p87 = scmp.ne.s32.totalorder %s79, %s81
    %p88 = scmp.eq.s32.totalorder %s17, 3
    %p89 = por %p87, %p88
    %p90 = scmp.ne.s32.totalorder %s81, %s82
    %p91 = scmp.eq.s32.totalorder %s17, 0
    %p92 = por %p90, %p91
    %p93 = scmp.ne.s32.totalorder %s81, %s82
    %p94 = scmp.eq.s32.totalorder %s18, 3
    %p95 = por %p93, %p94
    %p97 = scmp.ne.s32.totalorder %s82, %s96
    %p98 = scmp.eq.s32.totalorder %s18, 0
    %p99 = por %p97, %p98
    %s101 = sadd.s32 %s100, 1
    %p104 = scmp.eq.s32.totalorder %s12, 3
    %p105 = scmp.ne.s32.totalorder %s100, %s102
    %p106 = scmp.eq.s32.totalorder %s12, 0
    %p107 = por %p105, %p106
    %p108 = scmp.ne.s32.totalorder %s100, %s102
    %p109 = scmp.eq.s32.totalorder %s17, 3
    %p110 = por %p108, %p109
    %p111 = scmp.ne.s32.totalorder %s102, %s103
    %p112 = scmp.eq.s32.totalorder %s17, 0
    %p113 = por %p111, %p112
    %p114 = scmp.ne.s32.totalorder %s102, %s103
    %p115 = scmp.eq.s32.totalorder %s18, 3
    %p116 = por %p114, %p115
    %p118 = scmp.ne.s32.totalorder %s103, %s117
    %p119 = scmp.eq.s32.totalorder %s18, 0
    %p120 = por %p118, %p119
    %s121 = ssub.s32 %s19, %s31
    %s122 = ssub.s32 %s20, %s27
    %s123 = sor.u32 %s121, %s122
    %p124 = scmp.eq.s32.totalorder %s123, 0
    %s126 = sadd.s32 %s125, 1
    %s127 = scalar_select %p124, %s125, %s126
    %p130 = pneg %p124
    %p131 = scmp.eq.s32.totalorder %s12, 3
    %p132 = por %p130, %p131
    %p133 = scmp.ne.s32.totalorder %s125, %s128
    %p134 = scmp.eq.s32.totalorder %s12, 0
    %p135 = por %p133, %p134
    %p136 = scmp.ne.s32.totalorder %s125, %s128
    %p137 = scmp.eq.s32.totalorder %s17, 3
    %p138 = por %p136, %p137
    %p139 = scmp.ne.s32.totalorder %s128, %s129
    %p140 = scmp.eq.s32.totalorder %s17, 0
    %p141 = por %p139, %p140
    %p142 = scmp.ne.s32.totalorder %s128, %s129
    %p143 = scmp.eq.s32.totalorder %s18, 3
    %p144 = por %p142, %p143
    %p146 = scmp.ne.s32.totalorder %s129, %s145
    %p147 = scmp.eq.s32.totalorder %s18, 0
    %p148 = por %p146, %p147
    %s149 = ssub.s32 %s19, %s31
    %s150 = ssub.s32 %s20, %s27
    %s151 = sor.u32 %s149, %s150
    %p152 = scmp.eq.s32.totalorder %s151, 0
    %s154 = sadd.s32 %s153, 1
    %s155 = scalar_select %p152, %s153, %s154
    %p158 = pneg %p152
    %p159 = scmp.eq.s32.totalorder %s12, 3
    %p160 = por %p158, %p159
    %p161 = scmp.ne.s32.totalorder %s153, %s156
    %p162 = scmp.eq.s32.totalorder %s12, 0
    %p163 = por %p161, %p162
    %p164 = scmp.ne.s32.totalorder %s153, %s156
    %p165 = scmp.eq.s32.totalorder %s17, 3
    %p166 = por %p164, %p165
    %p167 = scmp.ne.s32.totalorder %s156, %s157
    %p168 = scmp.eq.s32.totalorder %s17, 0
    %p169 = por %p167, %p168
    %p170 = scmp.ne.s32.totalorder %s156, %s157
    %p171 = scmp.eq.s32.totalorder %s18, 3
    %p172 = por %p170, %p171
    %p174 = scmp.ne.s32.totalorder %s157, %s173
    %p175 = scmp.eq.s32.totalorder %s18, 0
    %p176 = por %p174, %p175
    %p177 = scmp.le.s32.totalorder 1, %s12
    %p178 = scmp.lt.s32.totalorder %s12, 5
    %p179 = pnand %p177, %p178
    %p180 = pneg %p179
    // Predicated region
    $region9: #{res_block.4} parent=5 // pred_check
      _
    $region10: #{res_block.4} parent=5 // pred_check_branch
      %182 = sbr.rel (%p179) target = $region12
    $region11: #{res_block.4} parent=5 // pred_region
      %s183 = ssub.s32 %s12, 1
      // Predicated region
      $region13: #{res_block.4} parent=11 // pred_check
        %p184 = pneg %p71
      $region14: #{res_block.4} parent=11 // pred_check_branch
        %186 = sbr.rel (%p184) target = $region16
      $region15: #{res_block.4} parent=11 // pred_region
        _
      $region16: #{res_block.4} parent=11 // pred_fallthru
        _
      // Predicated region
      $region17: #{res_block.4} parent=11 // pred_check
        %p187 = pneg %p92
      $region18: #{res_block.4} parent=11 // pred_check_branch
        %189 = sbr.rel (%p187) target = $region20
      $region19: #{res_block.4} parent=11 // pred_region
        _
      $region20: #{res_block.4} parent=11 // pred_fallthru
        _
      // Predicated region
      $region21: #{res_block.4} parent=11 // pred_check
        %p190 = pneg %p113
      $region22: #{res_block.4} parent=11 // pred_check_branch
        %192 = sbr.rel (%p190) target = $region24
      $region23: #{res_block.4} parent=11 // pred_region
        _
      $region24: #{res_block.4} parent=11 // pred_fallthru
        _
    $region12: #{res_block.4} parent=5 // pred_fallthru
      _
    %p193 = scmp.lt.s32.totalorder %s12, 4
    // Predicated region
    $region25: #{res_block.4} parent=5 // pred_check
      %p194 = pneg %p193
    $region26: #{res_block.4} parent=5 // pred_check_branch
      %196 = sbr.rel (%p194) target = $region28
    $region27: #{res_block.4} parent=5 // pred_region
      // Predicated region
      $region29: #{res_block.4} parent=27 // pred_check
        %p197 = pneg %p44
      $region30: #{res_block.4} parent=27 // pred_check_branch
        %199 = sbr.rel (%p197) target = $region32
      $region31: #{res_block.4} parent=27 // pred_region
        %p200 = scmp.lt.s32.totalorder %s19, 1
        %s201 = scalar_select %p200, %s19, 1
        %s202 = smul.addr %s201, 54
        %s203 = smul.addr %s202, 4
        %s204 = scalar_lea.vmem %s0, %s203
      $region32: #{res_block.4} parent=27 // pred_fallthru
        _
    $region28: #{res_block.4} parent=5 // pred_fallthru
      _
    %p205 = scmp.le.s32.totalorder 1, %s12
    %p206 = scmp.lt.s32.totalorder %s12, 5
    %p207 = pnand %p205, %p206
    %p208 = pneg %p207
    // Predicated region
    $region33: #{res_block.4} parent=5 // pred_check
      _
    $region34: #{res_block.4} parent=5 // pred_check_branch
      %210 = sbr.rel (%p207) target = $region36
    $region35: #{res_block.4} parent=5 // pred_region
      %s211 = ssub.s32 %s12, 1
      %p212 = scmp.lt.s32.totalorder %s21, 1
      %s213 = scalar_select %p212, %s21, 1
      %s214 = smul.addr %s213, 54
      %s215 = smul.addr %s214, 4
      %s216 = scalar_lea.vmem %s0, %s215
      %p217 = pneg %p50
      %p218 = pneg %p47
      %p219 = pneg %p71
      %p220 = pneg %p68
      %p221 = pneg %p92
      %p222 = pneg %p89
      %p223 = pneg %p113
      %p224 = pneg %p110
      %p225 = pneg %p141
      %p226 = pneg %p138
      %s227 = smul.u32 8, %s22
      %p228 = scmp.lt.s32.totalorder %s21, 1
      %s229 = scalar_select %p228, %s21, 1
      %p230 = scmp.lt.s32.totalorder %s227, 15
      %s231 = scalar_select %p230, %s227, 15
      %s232 = smul.addr %s231, 2
      %s233 = smul.addr %s229, 32
      %s234 = sadd.s32 %s232, %s233
      %s235 = smul.addr %s234, 8
      %s236 = scalar_lea.vmem %s4, %s235
      %p237 = pneg %p169
      %p238 = pneg %p166
      %p239 = scmp.lt.s32.totalorder %s21, 1
      %s240 = scalar_select %p239, %s21, 1
      %p241 = scmp.lt.s32.totalorder %s22, 1
      %s242 = scalar_select %p241, %s22, 1
      %s243 = smul.addr %s240, 2
      %s244 = sadd.s32 %s242, %s243
      %s245 = smul.addr %s244, 2
      %s246 = scalar_lea.vmem %s5, %s245
      %p247 = scmp.lt.s32.totalorder %s21, 1
      %s248 = scalar_select %p247, %s21, 1
      %s249 = smul.addr %s248, 54
      %s250 = smul.addr %s249, 4
      %s251 = scalar_lea.vmem %s0, %s250
      %s252 = smul.u32 8, %s22
      %p253 = scmp.lt.s32.totalorder %s21, 1
      %s254 = scalar_select %p253, %s21, 1
      %p255 = scmp.lt.s32.totalorder %s252, 15
      %s256 = scalar_select %p255, %s252, 15
      %s257 = smul.addr %s256, 2
      %s258 = smul.addr %s254, 32
      %s259 = sadd.s32 %s257, %s258
      %s260 = smul.addr %s259, 8
      %s261 = scalar_lea.vmem %s4, %s260
      %s262 = smul.u32 8, %s22
      %p263 = scmp.lt.s32.totalorder %s21, 1
      %s264 = scalar_select %p263, %s21, 1
      %p265 = scmp.lt.s32.totalorder %s22, 1
      %s266 = scalar_select %p265, %s22, 1
      %s267 = smul.addr %s264, 2
      %s268 = sadd.s32 %s266, %s267
      %s269 = smul.addr %s268, 2
      %s270 = scalar_lea.vmem %s5, %s269
      %s272 = smul.u32 %s22, 8
      %s273 = smul.u32 %s272, 3
      %s274 = smul.addr %s273, 4
      %s275 = scalar_lea.vmem %s251, %s274
      %v276 = vld [vmem:[%s275] sm:$0xf]
      %v277 = vld [vmem:[%s275 + $0x4] sm:$0xf]
      %v278 = vld [vmem:[%s275 + $0x8] sm:$0x1]
      %v279 = vld [vmem:[%s275 + $0xc] sm:$0xf]
      %v280 = vld [vmem:[%s275 + $0x10] sm:$0xf]
      %v281 = vld [vmem:[%s275 + $0x14] sm:$0x1]
      %v282 = vld [vmem:[%s275 + $0x18] sm:$0xf]
      %v283 = vld [vmem:[%s275 + $0x1c] sm:$0xf]
      %v284 = vld [vmem:[%s275 + $0x20] sm:$0x1]
      %v285 = vld [vmem:[%s275 + $0x24] sm:$0xf]
      %v286 = vld [vmem:[%s275 + $0x28] sm:$0xf]
      %v287 = vld [vmem:[%s275 + $0x2c] sm:$0x1]
      %v288 = vld [vmem:[%s275 + $0x30] sm:$0xf]
      %v289 = vld [vmem:[%s275 + $0x34] sm:$0xf]
      %v290 = vld [vmem:[%s275 + $0x38] sm:$0x1]
      %v291 = vld [vmem:[%s275 + $0x3c] sm:$0xf]
      %v292 = vld [vmem:[%s275 + $0x40] sm:$0xf]
      %v293 = vld [vmem:[%s275 + $0x44] sm:$0x1]
      %v294 = vld [vmem:[%s275 + $0x48] sm:$0xf]
      %v295 = vld [vmem:[%s275 + $0x4c] sm:$0xf]
      %v296 = vld [vmem:[%s275 + $0x50] sm:$0x1]
      %v297 = vld [vmem:[%s275 + $0x54] sm:$0xf]
      %v298 = vld [vmem:[%s275 + $0x58] sm:$0xf]
      %v299 = vld [vmem:[%s275 + $0x5c] sm:$0x1]
      %v300 = vld [vmem:[%s275 + $0x60] sm:$0xf]
      %v301 = vld [vmem:[%s275 + $0x64] sm:$0xf]
      %v302 = vld [vmem:[%s275 + $0x68] sm:$0x1]
      %v303 = vld [vmem:[%s275 + $0x6c] sm:$0xf]
      %v304 = vld [vmem:[%s275 + $0x70] sm:$0xf]
      %v305 = vld [vmem:[%s275 + $0x74] sm:$0x1]
      %v306 = vunpack.c.l.bf16 %v276
      %v307 = vunpack.c.l.bf16 %v277
      %v308 = vunpack.c.l.bf16 %v278
      %v309 = vunpack.c.l.bf16 %v279
      %v310 = vunpack.c.l.bf16 %v280
      %v311 = vunpack.c.l.bf16 %v281
      %v312 = vunpack.c.l.bf16 %v282
      %v313 = vunpack.c.l.bf16 %v283
      %v314 = vunpack.c.l.bf16 %v284
      %v315 = vunpack.c.l.bf16 %v285
      %v316 = vunpack.c.l.bf16 %v286
      %v317 = vunpack.c.l.bf16 %v287
      %v318 = vunpack.c.l.bf16 %v288
      %v319 = vunpack.c.l.bf16 %v289
      %v320 = vunpack.c.l.bf16 %v290
      %v321 = vunpack.c.l.bf16 %v291
      %v322 = vunpack.c.l.bf16 %v292
      %v323 = vunpack.c.l.bf16 %v293
      %v324 = vunpack.c.l.bf16 %v294
      %v325 = vunpack.c.l.bf16 %v295
      %v326 = vunpack.c.l.bf16 %v296
      %v327 = vunpack.c.l.bf16 %v297
      %v328 = vunpack.c.l.bf16 %v298
      %v329 = vunpack.c.l.bf16 %v299
      %v330 = vunpack.c.l.bf16 %v300
      %v331 = vunpack.c.l.bf16 %v301
      %v332 = vunpack.c.l.bf16 %v302
      %v333 = vunpack.c.l.bf16 %v303
      %v334 = vunpack.c.l.bf16 %v304
      %v335 = vunpack.c.l.bf16 %v305
      %v336 = vld [vmem:[%s2] sm:$0x1]
      %v338 = vlaneseq
      %v339 = vshrl.u32 %v338, 7
      %v340 = vsub.s32 0, %v339
      %v341 = vrot.slane %v336, %v340
      %v343 = vmul.f32 %v306, %v341
      %v344 = vmul.f32 %v307, %v341
      %v345 = vmul.f32 %v308, %v341
      %v346 = vmul.f32 %v309, %v341
      %v347 = vmul.f32 %v310, %v341
      %v348 = vmul.f32 %v311, %v341
      %v349 = vmul.f32 %v312, %v341
      %v350 = vmul.f32 %v313, %v341
      %v351 = vmul.f32 %v314, %v341
      %v352 = vmul.f32 %v315, %v341
      %v353 = vmul.f32 %v316, %v341
      %v354 = vmul.f32 %v317, %v341
      %v355 = vmul.f32 %v318, %v341
      %v356 = vmul.f32 %v319, %v341
      %v357 = vmul.f32 %v320, %v341
      %v358 = vmul.f32 %v321, %v341
      %v359 = vmul.f32 %v322, %v341
      %v360 = vmul.f32 %v323, %v341
      %v361 = vmul.f32 %v324, %v341
      %v362 = vmul.f32 %v325, %v341
      %v363 = vmul.f32 %v326, %v341
      %v364 = vmul.f32 %v327, %v341
      %v365 = vmul.f32 %v328, %v341
      %v366 = vmul.f32 %v329, %v341
      %v367 = vmul.f32 %v330, %v341
      %v368 = vmul.f32 %v331, %v341
      %v369 = vmul.f32 %v332, %v341
      %v370 = vmul.f32 %v333, %v341
      %v371 = vmul.f32 %v334, %v341
      %v372 = vmul.f32 %v335, %v341
      %v373 = vld [vmem:[%s3] sm:$0x1]
      %v375 = vlaneseq
      %v376 = vshrl.u32 %v375, 7
      %v377 = vsub.s32 0, %v376
      %v378 = vrot.slane %v373, %v377
      %v380 = vadd.f32 %v343, %v378
      %v381 = vadd.f32 %v344, %v378
      %v382 = vadd.f32 %v345, %v378
      %v383 = vadd.f32 %v346, %v378
      %v384 = vadd.f32 %v347, %v378
      %v385 = vadd.f32 %v348, %v378
      %v386 = vadd.f32 %v349, %v378
      %v387 = vadd.f32 %v350, %v378
      %v388 = vadd.f32 %v351, %v378
      %v389 = vadd.f32 %v352, %v378
      %v390 = vadd.f32 %v353, %v378
      %v391 = vadd.f32 %v354, %v378
      %v392 = vadd.f32 %v355, %v378
      %v393 = vadd.f32 %v356, %v378
      %v394 = vadd.f32 %v357, %v378
      %v395 = vadd.f32 %v358, %v378
      %v396 = vadd.f32 %v359, %v378
      %v397 = vadd.f32 %v360, %v378
      %v398 = vadd.f32 %v361, %v378
      %v399 = vadd.f32 %v362, %v378
      %v400 = vadd.f32 %v363, %v378
      %v401 = vadd.f32 %v364, %v378
      %v402 = vadd.f32 %v365, %v378
      %v403 = vadd.f32 %v366, %v378
      %v404 = vadd.f32 %v367, %v378
      %v405 = vadd.f32 %v368, %v378
      %v406 = vadd.f32 %v369, %v378
      %v407 = vadd.f32 %v370, %v378
      %v408 = vadd.f32 %v371, %v378
      %v409 = vadd.f32 %v372, %v378
      %v410 = vmax.f32 %v380, 0.0
      %v411 = vmax.f32 %v381, 0.0
      %v412 = vmax.f32 %v382, 0.0
      %v413 = vmax.f32 %v383, 0.0
      %v414 = vmax.f32 %v384, 0.0
      %v415 = vmax.f32 %v385, 0.0
      %v416 = vmax.f32 %v386, 0.0
      %v417 = vmax.f32 %v387, 0.0
      %v418 = vmax.f32 %v388, 0.0
      %v419 = vmax.f32 %v389, 0.0
      %v420 = vmax.f32 %v390, 0.0
      %v421 = vmax.f32 %v391, 0.0
      %v422 = vmax.f32 %v392, 0.0
      %v423 = vmax.f32 %v393, 0.0
      %v424 = vmax.f32 %v394, 0.0
      %v425 = vmax.f32 %v395, 0.0
      %v426 = vmax.f32 %v396, 0.0
      %v427 = vmax.f32 %v397, 0.0
      %v428 = vmax.f32 %v398, 0.0
      %v429 = vmax.f32 %v399, 0.0
      %v430 = vmax.f32 %v400, 0.0
      %v431 = vmax.f32 %v401, 0.0
      %v432 = vmax.f32 %v402, 0.0
      %v433 = vmax.f32 %v403, 0.0
      %v434 = vmax.f32 %v404, 0.0
      %v435 = vmax.f32 %v405, 0.0
      %v436 = vmax.f32 %v406, 0.0
      %v437 = vmax.f32 %v407, 0.0
      %v438 = vmax.f32 %v408, 0.0
      %v439 = vmax.f32 %v409, 0.0
      %v440 = vstv %s272
      %v441 = vadd.s32 %v440, 1
      %v442 = vadd.s32 %v440, 2
      %v443 = vadd.s32 %v440, 3
      %v444 = vadd.s32 %v440, 4
      %v445 = vadd.s32 %v440, 5
      %v446 = vadd.s32 %v440, 6
      %v447 = vadd.s32 %v440, 7
      %v448 = vadd.s32 %v440, 8
      %v449 = vadd.s32 %v440, 9
      %v450 = vlaneseq
      %v451 = vshrl.u32 %v450, 7
      %v452 = vadd.s32 %v451, 8
      %v453 = vadd.s32 %v451, 16
      %vm454 = vcmp.ge.s32.totalorder %v440, 1
      %vm455 = vcmp.ge.s32.totalorder %v441, 1
      %vm456 = vcmp.ge.s32.totalorder %v442, 1
      %vm457 = vcmp.ge.s32.totalorder %v443, 1
      %vm458 = vcmp.ge.s32.totalorder %v444, 1
      %vm459 = vcmp.ge.s32.totalorder %v445, 1
      %vm460 = vcmp.ge.s32.totalorder %v446, 1
      %vm461 = vcmp.ge.s32.totalorder %v447, 1
      %vm462 = vcmp.ge.s32.totalorder %v448, 1
      %vm463 = vcmp.ge.s32.totalorder %v449, 1
      %vm464 = vcmp.le.s32.totalorder %v440, 16
      %vm465 = vcmp.le.s32.totalorder %v441, 16
      %vm466 = vcmp.le.s32.totalorder %v442, 16
      %vm467 = vcmp.le.s32.totalorder %v443, 16
      %vm468 = vcmp.le.s32.totalorder %v444, 16
      %vm469 = vcmp.le.s32.totalorder %v445, 16
      %vm470 = vcmp.le.s32.totalorder %v446, 16
      %vm471 = vcmp.le.s32.totalorder %v447, 16
      %vm472 = vcmp.le.s32.totalorder %v448, 16
      %vm473 = vcmp.le.s32.totalorder %v449, 16
      %vm474 = vmand %vm454, %vm464
      %vm475 = vmand %vm455, %vm465
      %vm476 = vmand %vm456, %vm466
      %vm477 = vmand %vm457, %vm467
      %vm478 = vmand %vm458, %vm468
      %vm479 = vmand %vm459, %vm469
      %vm480 = vmand %vm460, %vm470
      %vm481 = vmand %vm461, %vm471
      %vm482 = vmand %vm462, %vm472
      %vm483 = vmand %vm463, %vm473
      %vm484 = vcmp.ge.s32.totalorder %v451, 1
      %vm485 = vcmp.ge.s32.totalorder %v452, 1
      %vm486 = vcmp.ge.s32.totalorder %v453, 1
      %vm487 = vmand %vm474, %vm484
      %vm488 = vmand %vm474, %vm485
      %vm489 = vmand %vm474, %vm486
      %vm490 = vmand %vm475, %vm484
      %vm491 = vmand %vm475, %vm485
      %vm492 = vmand %vm475, %vm486
      %vm493 = vmand %vm476, %vm484
      %vm494 = vmand %vm476, %vm485
      %vm495 = vmand %vm476, %vm486
      %vm496 = vmand %vm477, %vm484
      %vm497 = vmand %vm477, %vm485
      %vm498 = vmand %vm477, %vm486
      %vm499 = vmand %vm478, %vm484
      %vm500 = vmand %vm478, %vm485
      %vm501 = vmand %vm478, %vm486
      %vm502 = vmand %vm479, %vm484
      %vm503 = vmand %vm479, %vm485
      %vm504 = vmand %vm479, %vm486
      %vm505 = vmand %vm480, %vm484
      %vm506 = vmand %vm480, %vm485
      %vm507 = vmand %vm480, %vm486
      %vm508 = vmand %vm481, %vm484
      %vm509 = vmand %vm481, %vm485
      %vm510 = vmand %vm481, %vm486
      %vm511 = vmand %vm482, %vm484
      %vm512 = vmand %vm482, %vm485
      %vm513 = vmand %vm482, %vm486
      %vm514 = vmand %vm483, %vm484
      %vm515 = vmand %vm483, %vm485
      %vm516 = vmand %vm483, %vm486
      %vm517 = vcmp.le.s32.totalorder %v451, 16
      %vm518 = vcmp.le.s32.totalorder %v452, 16
      %vm519 = vcmp.le.s32.totalorder %v453, 16
      %vm520 = vmand %vm487, %vm517
      %vm521 = vmand %vm488, %vm518
      %vm522 = vmand %vm489, %vm519
      %vm523 = vmand %vm490, %vm517
      %vm524 = vmand %vm491, %vm518
      %vm525 = vmand %vm492, %vm519
      %vm526 = vmand %vm493, %vm517
      %vm527 = vmand %vm494, %vm518
      %vm528 = vmand %vm495, %vm519
      %vm529 = vmand %vm496, %vm517
      %vm530 = vmand %vm497, %vm518
      %vm531 = vmand %vm498, %vm519
      %vm532 = vmand %vm499, %vm517
      %vm533 = vmand %vm500, %vm518
      %vm534 = vmand %vm501, %vm519
      %vm535 = vmand %vm502, %vm517
      %vm536 = vmand %vm503, %vm518
      %vm537 = vmand %vm504, %vm519
      %vm538 = vmand %vm505, %vm517
      %vm539 = vmand %vm506, %vm518
      %vm540 = vmand %vm507, %vm519
      %vm541 = vmand %vm508, %vm517
      %vm542 = vmand %vm509, %vm518
      %vm543 = vmand %vm510, %vm519
      %vm544 = vmand %vm511, %vm517
      %vm545 = vmand %vm512, %vm518
      %vm546 = vmand %vm513, %vm519
      %vm547 = vmand %vm514, %vm517
      %vm548 = vmand %vm515, %vm518
      %vm549 = vmand %vm516, %vm519
      %v550 = vsel %vm520, %v410, 0.0
      %v551 = vsel %vm521, %v411, 0.0
      %v552 = vsel %vm522, %v412, 0.0
      %v553 = vsel %vm523, %v413, 0.0
      %v554 = vsel %vm524, %v414, 0.0
      %v555 = vsel %vm525, %v415, 0.0
      %v556 = vsel %vm526, %v416, 0.0
      %v557 = vsel %vm527, %v417, 0.0
      %v558 = vsel %vm528, %v418, 0.0
      %v559 = vsel %vm529, %v419, 0.0
      %v560 = vsel %vm530, %v420, 0.0
      %v561 = vsel %vm531, %v421, 0.0
      %v562 = vsel %vm532, %v422, 0.0
      %v563 = vsel %vm533, %v423, 0.0
      %v564 = vsel %vm534, %v424, 0.0
      %v565 = vsel %vm535, %v425, 0.0
      %v566 = vsel %vm536, %v426, 0.0
      %v567 = vsel %vm537, %v427, 0.0
      %v568 = vsel %vm538, %v428, 0.0
      %v569 = vsel %vm539, %v429, 0.0
      %v570 = vsel %vm540, %v430, 0.0
      %v571 = vsel %vm541, %v431, 0.0
      %v572 = vsel %vm542, %v432, 0.0
      %v573 = vsel %vm543, %v433, 0.0
      %v574 = vsel %vm544, %v434, 0.0
      %v575 = vsel %vm545, %v435, 0.0
      %v576 = vsel %vm546, %v436, 0.0
      %v577 = vsel %vm547, %v437, 0.0
      %v578 = vsel %vm548, %v438, 0.0
      %v579 = vsel %vm549, %v439, 0.0
      %v580 = vpack.c.bf16 %v551, %v550
      %v581 = vpack.c.bf16 %v552, %v552
      %v582 = vpack.c.bf16 %v554, %v553
      %v583 = vpack.c.bf16 %v555, %v555
      %v584 = vpack.c.bf16 %v557, %v556
      %v585 = vpack.c.bf16 %v558, %v558
      %v586 = vpack.c.bf16 %v560, %v559
      %v587 = vpack.c.bf16 %v561, %v561
      %v588 = vpack.c.bf16 %v563, %v562
      %v589 = vpack.c.bf16 %v564, %v564
      %v590 = vpack.c.bf16 %v566, %v565
      %v591 = vpack.c.bf16 %v567, %v567
      %v592 = vpack.c.bf16 %v569, %v568
      %v593 = vpack.c.bf16 %v570, %v570
      %v594 = vpack.c.bf16 %v572, %v571
      %v595 = vpack.c.bf16 %v573, %v573
      %v596 = vpack.c.bf16 %v575, %v574
      %v597 = vpack.c.bf16 %v576, %v576
      %v598 = vpack.c.bf16 %v578, %v577
      %v599 = vpack.c.bf16 %v579, %v579
      %v600 = vld [vmem:[%s1] sm:$0x3]
      %vm601 = vsmask.f32 7424
      %v603 = vshrl.u32 %v580, 16
      %v605 = vshll.u32 %v580, 16
      %v607 = vrot.slane %v605, 1
      %v608 = vor.u32 %v603, %v607
      %v610 = vshll.u32 %v581, 16
      %v612 = vrot.slane %v610, 1
      %v613 = vsel %vm601, %v608, %v612
      %v615 = vshrl.u32 %v582, 16
      %v617 = vshll.u32 %v582, 16
      %v619 = vrot.slane %v617, 1
      %v620 = vor.u32 %v615, %v619
      %v622 = vshll.u32 %v583, 16
      %v624 = vrot.slane %v622, 1
      %v625 = vsel %vm601, %v620, %v624
      %v627 = vshrl.u32 %v584, 16
      %v629 = vshll.u32 %v584, 16
      %v631 = vrot.slane %v629, 1
      %v632 = vor.u32 %v627, %v631
      %v634 = vshll.u32 %v585, 16
      %v636 = vrot.slane %v634, 1
      %v637 = vsel %vm601, %v632, %v636
      %v639 = vshrl.u32 %v586, 16
      %v641 = vshll.u32 %v586, 16
      %v643 = vrot.slane %v641, 1
      %v644 = vor.u32 %v639, %v643
      %v646 = vshll.u32 %v587, 16
      %v648 = vrot.slane %v646, 1
      %v649 = vsel %vm601, %v644, %v648
      %v651 = vshrl.u32 %v588, 16
      %v653 = vshll.u32 %v588, 16
      %v655 = vrot.slane %v653, 1
      %v656 = vor.u32 %v651, %v655
      %v658 = vshll.u32 %v589, 16
      %v660 = vrot.slane %v658, 1
      %v661 = vsel %vm601, %v656, %v660
      %v663 = vshrl.u32 %v590, 16
      %v665 = vshll.u32 %v590, 16
      %v667 = vrot.slane %v665, 1
      %v668 = vor.u32 %v663, %v667
      %v670 = vshll.u32 %v591, 16
      %v672 = vrot.slane %v670, 1
      %v673 = vsel %vm601, %v668, %v672
      %v675 = vshrl.u32 %v592, 16
      %v677 = vshll.u32 %v592, 16
      %v679 = vrot.slane %v677, 1
      %v680 = vor.u32 %v675, %v679
      %v682 = vshll.u32 %v593, 16
      %v684 = vrot.slane %v682, 1
      %v685 = vsel %vm601, %v680, %v684
      %v687 = vshrl.u32 %v594, 16
      %v689 = vshll.u32 %v594, 16
      %v691 = vrot.slane %v689, 1
      %v692 = vor.u32 %v687, %v691
      %v694 = vshll.u32 %v595, 16
      %v696 = vrot.slane %v694, 1
      %v697 = vsel %vm601, %v692, %v696
      %s698 = scalar_lea.vmem %s1, 2
      %v699 = vld [vmem:[%s698] sm:$0x3]
      %vm700 = vcmask 31744
      %v702 = vsel %vm700, %v613, 0
      %v705 = vsel %vm700, %v625, 0
      %v708 = vsel %vm700, %v637, 0
      %v711 = vsel %vm700, %v649, 0
      %v714 = vsel %vm700, %v661, 0
      %v717 = vsel %vm700, %v673, 0
      %v720 = vsel %vm700, %v685, 0
      %v723 = vsel %vm700, %v697, 0
      %vm725 = vcmask 1041408
      %v727 = vsel %vm725, %v699, 0
      %729 = vmatprep.subr.bf16.mxu0 0
      %730 = vmatpush1.bf16.msra.mxu0 %v727
      %731 = vmatprep.subr.bf16.mxu0 0
      %732 = vmatpush1.bf16.msra.mxu0 0
      %733 = vmatprep.subr.bf16.mxu0 0
      %734 = vmatpush1.bf16.msra.mxu0 0
      %735 = vmatprep.subr.bf16.mxu0 0
      %736 = vmatpush1.bf16.msra.mxu0 0
      %737 = vmatprep.subr.bf16.mxu0 0
      %738 = vmatpush1.bf16.msra.mxu0 0
      %739 = vmatprep.subr.bf16.mxu0 0
      %740 = vmatpush1.bf16.msra.mxu0 0
      %741 = vmatprep.subr.bf16.mxu0 0
      %742 = vmatpush1.bf16.msra.mxu0 0
      %743 = vmatprep.subr.bf16.mxu0 0
      %744 = vmatpush1.bf16.msra.mxu0 0
      %745 = vmatprep.subr.bf16.mxu0 0
      %746 = vmatpush1.bf16.msra.mxu0 0
      %747 = vmatprep.subr.bf16.mxu0 0
      %748 = vmatpush1.bf16.msra.mxu0 0
      %749 = vmatprep.subr.bf16.mxu0 0
      %750 = vmatpush1.bf16.msra.mxu0 0
      %751 = vmatprep.subr.bf16.mxu0 0
      %752 = vmatpush1.bf16.msra.mxu0 0
      %753 = vmatprep.subr.bf16.mxu0 0
      %754 = vmatpush1.bf16.msra.mxu0 0
      %755 = vmatprep.subr.bf16.mxu0 0
      %756 = vmatpush1.bf16.msra.mxu0 0
      %757 = vmatprep.subr.bf16.mxu0 0
      %758 = vmatpush1.bf16.msra.mxu0 0
      %759 = vmatprep.subr.bf16.mxu0 0
      %760 = vmatpush1.bf16.msra.mxu0 0
      %761 = vmatprep.mubr.bf16.mxu0 0
      %762 = vmatmul.mubr.bf16.gmra.mrb[0].mxu0 %v702
      %v763 = vpop.f32.mrb[0].mxu0
      %v764 = vadd.f32 0.0, %v763
      %v765 = vpop.f32.mrb[0].mxu0
      %v766 = vpop.f32.mrb[0].mxu0
      %v767 = vadd.f32 0.0, %v766
      %v768 = vpop.f32.mrb[0].mxu0
      %769 = vmatprep.mubr.bf16.mxu0 0
      %770 = vmatmul.mubr.bf16.gmra.mrb[0].mxu0 %v705
      %v771 = vpop.f32.mrb[0].mxu0
      %v772 = vadd.f32 0.0, %v771
      %v773 = vpop.f32.mrb[0].mxu0
      %v774 = vpop.f32.mrb[0].mxu0
      %v775 = vadd.f32 0.0, %v774
      %v776 = vpop.f32.mrb[0].mxu0
      %777 = vmatprep.mubr.bf16.mxu0 0
      %778 = vmatmul.mubr.bf16.gmra.mrb[0].mxu0 %v708
      %v779 = vpop.f32.mrb[0].mxu0
      %v780 = vadd.f32 0.0, %v779
      %v781 = vpop.f32.mrb[0].mxu0
      %v782 = vpop.f32.mrb[0].mxu0
      %v783 = vadd.f32 0.0, %v782
      %v784 = vpop.f32.mrb[0].mxu0
      %785 = vmatprep.mubr.bf16.mxu0 0
      %786 = vmatmul.mubr.bf16.gmra.mrb[0].mxu0 %v711
      %v787 = vpop.f32.mrb[0].mxu0
      %v788 = vadd.f32 0.0, %v787
      %v789 = vpop.f32.mrb[0].mxu0
      %v790 = vpop.f32.mrb[0].mxu0
      %v791 = vadd.f32 0.0, %v790
      %v792 = vpop.f32.mrb[0].mxu0
      %793 = vmatprep.mubr.bf16.mxu0 0
      %794 = vmatmul.mubr.bf16.gmra.mrb[0].mxu0 %v714
      %v795 = vpop.f32.mrb[0].mxu0
      %v796 = vadd.f32 0.0, %v795
      %v797 = vpop.f32.mrb[0].mxu0
      %v798 = vpop.f32.mrb[0].mxu0
      %v799 = vadd.f32 0.0, %v798
      %v800 = vpop.f32.mrb[0].mxu0
      %801 = vmatprep.mubr.bf16.mxu0 0
      %802 = vmatmul.mubr.bf16.gmra.mrb[0].mxu0 %v717
      %v803 = vpop.f32.mrb[0].mxu0
      %v804 = vadd.f32 0.0, %v803
      %v805 = vpop.f32.mrb[0].mxu0
      %v806 = vpop.f32.mrb[0].mxu0
      %v807 = vadd.f32 0.0, %v806
      %v808 = vpop.f32.mrb[0].mxu0
      %809 = vmatprep.mubr.bf16.mxu0 0
      %810 = vmatmul.mubr.bf16.gmra.mrb[0].mxu0 %v720
      %v811 = vpop.f32.mrb[0].mxu0
      %v812 = vadd.f32 0.0, %v811
      %v813 = vpop.f32.mrb[0].mxu0
      %v814 = vpop.f32.mrb[0].mxu0
      %v815 = vadd.f32 0.0, %v814
      %v816 = vpop.f32.mrb[0].mxu0
      %817 = vmatprep.mubr.bf16.mxu0 0
      %818 = vmatmul.mubr.bf16.gmra.mrb[0].mxu0 %v723
      %v819 = vpop.f32.mrb[0].mxu0
      %v820 = vadd.f32 0.0, %v819
      %v821 = vpop.f32.mrb[0].mxu0
      %v822 = vpop.f32.mrb[0].mxu0
      %v823 = vadd.f32 0.0, %v822
      %v824 = vpop.f32.mrb[0].mxu0
      %825 = vdwg.mxu0
      %v826 = vsel %vm700, %v580, 0
      %v828 = vsel %vm700, %v582, 0
      %v830 = vsel %vm700, %v584, 0
      %v832 = vsel %vm700, %v586, 0
      %v834 = vsel %vm700, %v588, 0
      %v836 = vsel %vm700, %v590, 0
      %v838 = vsel %vm700, %v592, 0
      %v840 = vsel %vm700, %v594, 0
      %v843 = vsel %vm725, %v600, 0
      %845 = vmatprep.subr.bf16.mxu0 0
      %846 = vmatpush1.bf16.msra.mxu0 %v843
      %847 = vmatprep.subr.bf16.mxu0 0
      %848 = vmatpush1.bf16.msra.mxu0 0
      %849 = vmatprep.subr.bf16.mxu0 0
      %850 = vmatpush1.bf16.msra.mxu0 0
      %851 = vmatprep.subr.bf16.mxu0 0
      %852 = vmatpush1.bf16.msra.mxu0 0
      %853 = vmatprep.subr.bf16.mxu0 0
      %854 = vmatpush1.bf16.msra.mxu0 0
      %855 = vmatprep.subr.bf16.mxu0 0
      %856 = vmatpush1.bf16.msra.mxu0 0
      %857 = vmatprep.subr.bf16.mxu0 0
      %858 = vmatpush1.bf16.msra.mxu0 0
      %859 = vmatprep.subr.bf16.mxu0 0
      %860 = vmatpush1.bf16.msra.mxu0 0
      %861 = vmatprep.subr.bf16.mxu0 0
      %862 = vmatpush1.bf16.msra.mxu0 0
      %863 = vmatprep.subr.bf16.mxu0 0
      %864 = vmatpush1.bf16.msra.mxu0 0
      %865 = vmatprep.subr.bf16.mxu0 0
      %866 = vmatpush1.bf16.msra.mxu0 0
      %867 = vmatprep.subr.bf16.mxu0 0
      %868 = vmatpush1.bf16.msra.mxu0 0
      %869 = vmatprep.subr.bf16.mxu0 0
      %870 = vmatpush1.bf16.msra.mxu0 0
      %871 = vmatprep.subr.bf16.mxu0 0
      %872 = vmatpush1.bf16.msra.mxu0 0
      %873 = vmatprep.subr.bf16.mxu0 0
      %874 = vmatpush1.bf16.msra.mxu0 0
      %875 = vmatprep.subr.bf16.mxu0 0
      %876 = vmatpush1.bf16.msra.mxu0 0
      %877 = vmatprep.mubr.bf16.mxu0 0
      %878 = vmatmul.mubr.bf16.gmra.mrb[0].mxu0 %v826
      %v879 = vpop.f32.mrb[0].mxu0
      %v880 = vadd.f32 %v764, %v879
      %v881 = vpop.f32.mrb[0].mxu0
      %v882 = vpop.f32.mrb[0].mxu0
      %v883 = vadd.f32 %v767, %v882
      %v884 = vpop.f32.mrb[0].mxu0
      %885 = vmatprep.mubr.bf16.mxu0 0
      %886 = vmatmul.mubr.bf16.gmra.mrb[0].mxu0 %v828
      %v887 = vpop.f32.mrb[0].mxu0
      %v888 = vadd.f32 %v772, %v887
      %v889 = vpop.f32.mrb[0].mxu0
      %v890 = vpop.f32.mrb[0].mxu0
      %v891 = vadd.f32 %v775, %v890
      %v892 = vpop.f32.mrb[0].mxu0
      %893 = vmatprep.mubr.bf16.mxu0 0
      %894 = vmatmul.mubr.bf16.gmra.mrb[0].mxu0 %v830
      %v895 = vpop.f32.mrb[0].mxu0
      %v896 = vadd.f32 %v780, %v895
      %v897 = vpop.f32.mrb[0].mxu0
      %v898 = vpop.f32.mrb[0].mxu0
      %v899 = vadd.f32 %v783, %v898
      %v900 = vpop.f32.mrb[0].mxu0
      %901 = vmatprep.mubr.bf16.mxu0 0
      %902 = vmatmul.mubr.bf16.gmra.mrb[0].mxu0 %v832
      %v903 = vpop.f32.mrb[0].mxu0
      %v904 = vadd.f32 %v788, %v903
      %v905 = vpop.f32.mrb[0].mxu0
      %v906 = vpop.f32.mrb[0].mxu0
      %v907 = vadd.f32 %v791, %v906
      %v908 = vpop.f32.mrb[0].mxu0
      %909 = vmatprep.mubr.bf16.mxu0 0
      %910 = vmatmul.mubr.bf16.gmra.mrb[0].mxu0 %v834
      %v911 = vpop.f32.mrb[0].mxu0
      %v912 = vadd.f32 %v796, %v911
      %v913 = vpop.f32.mrb[0].mxu0
      %v914 = vpop.f32.mrb[0].mxu0
      %v915 = vadd.f32 %v799, %v914
      %v916 = vpop.f32.mrb[0].mxu0
      %917 = vmatprep.mubr.bf16.mxu0 0
      %918 = vmatmul.mubr.bf16.gmra.mrb[0].mxu0 %v836
      %v919 = vpop.f32.mrb[0].mxu0
      %v920 = vadd.f32 %v804, %v919
      %v921 = vpop.f32.mrb[0].mxu0
      %v922 = vpop.f32.mrb[0].mxu0
      %v923 = vadd.f32 %v807, %v922
      %v924 = vpop.f32.mrb[0].mxu0
      %925 = vmatprep.mubr.bf16.mxu0 0
      %926 = vmatmul.mubr.bf16.gmra.mrb[0].mxu0 %v838
      %v927 = vpop.f32.mrb[0].mxu0
      %v928 = vadd.f32 %v812, %v927
      %v929 = vpop.f32.mrb[0].mxu0
      %v930 = vpop.f32.mrb[0].mxu0
      %v931 = vadd.f32 %v815, %v930
      %v932 = vpop.f32.mrb[0].mxu0
      %933 = vmatprep.mubr.bf16.mxu0 0
      %934 = vmatmul.mubr.bf16.gmra.mrb[0].mxu0 %v840
      %v935 = vpop.f32.mrb[0].mxu0
      %v936 = vadd.f32 %v820, %v935
      %v937 = vpop.f32.mrb[0].mxu0
      %v938 = vpop.f32.mrb[0].mxu0
      %v939 = vadd.f32 %v823, %v938
      %v940 = vpop.f32.mrb[0].mxu0
      %941 = vdwg.mxu0
      %vm958 = vcmask 1046528
      %v959 = vrot.slane %v580, 1
      %v960 = vrot.slane %v581, 1
      %v961 = vsel %vm958, %v959, %v960
      %v962 = vrot.slane %v582, 1
      %v963 = vrot.slane %v583, 1
      %v964 = vsel %vm958, %v962, %v963
      %v965 = vrot.slane %v584, 1
      %v966 = vrot.slane %v585, 1
      %v967 = vsel %vm958, %v965, %v966
      %v968 = vrot.slane %v586, 1
      %v969 = vrot.slane %v587, 1
      %v970 = vsel %vm958, %v968, %v969
      %v971 = vrot.slane %v588, 1
      %v972 = vrot.slane %v589, 1
      %v973 = vsel %vm958, %v971, %v972
      %v974 = vrot.slane %v590, 1
      %v975 = vrot.slane %v591, 1
      %v976 = vsel %vm958, %v974, %v975
      %v977 = vrot.slane %v592, 1
      %v978 = vrot.slane %v593, 1
      %v979 = vsel %vm958, %v977, %v978
      %v980 = vrot.slane %v594, 1
      %v981 = vrot.slane %v595, 1
      %v982 = vsel %vm958, %v980, %v981
      %s983 = scalar_lea.vmem %s1, 4
      %v984 = vld [vmem:[%s983] sm:$0x3]
      %v986 = vsel %vm700, %v961, 0
      %v989 = vsel %vm700, %v964, 0
      %v992 = vsel %vm700, %v967, 0
      %v995 = vsel %vm700, %v970, 0
      %v998 = vsel %vm700, %v973, 0
      %v1001 = vsel %vm700, %v976, 0
      %v1004 = vsel %vm700, %v979, 0
      %v1007 = vsel %vm700, %v982, 0
      %v1010 = vsel %vm725, %v984, 0
      %1012 = vmatprep.subr.bf16.mxu0 0
      %1013 = vmatpush1.bf16.msra.mxu0 %v1010
      %1014 = vmatprep.subr.bf16.mxu0 0
      %1015 = vmatpush1.bf16.msra.mxu0 0
      %1016 = vmatprep.subr.bf16.mxu0 0
      %1017 = vmatpush1.bf16.msra.mxu0 0
      %1018 = vmatprep.subr.bf16.mxu0 0
      %1019 = vmatpush1.bf16.msra.mxu0 0
      %1020 = vmatprep.subr.bf16.mxu0 0
      %1021 = vmatpush1.bf16.msra.mxu0 0
      %1022 = vmatprep.subr.bf16.mxu0 0
      %1023 = vmatpush1.bf16.msra.mxu0 0
      %1024 = vmatprep.subr.bf16.mxu0 0
      %1025 = vmatpush1.bf16.msra.mxu0 0
      %1026 = vmatprep.subr.bf16.mxu0 0
      %1027 = vmatpush1.bf16.msra.mxu0 0
      %1028 = vmatprep.subr.bf16.mxu0 0
      %1029 = vmatpush1.bf16.msra.mxu0 0
      %1030 = vmatprep.subr.bf16.mxu0 0
      %1031 = vmatpush1.bf16.msra.mxu0 0
      %1032 = vmatprep.subr.bf16.mxu0 0
      %1033 = vmatpush1.bf16.msra.mxu0 0
      %1034 = vmatprep.subr.bf16.mxu0 0
      %1035 = vmatpush1.bf16.msra.mxu0 0
      %1036 = vmatprep.subr.bf16.mxu0 0
      %1037 = vmatpush1.bf16.msra.mxu0 0
      %1038 = vmatprep.subr.bf16.mxu0 0
      %1039 = vmatpush1.bf16.msra.mxu0 0
      %1040 = vmatprep.subr.bf16.mxu0 0
      %1041 = vmatpush1.bf16.msra.mxu0 0
      %1042 = vmatprep.subr.bf16.mxu0 0
      %1043 = vmatpush1.bf16.msra.mxu0 0
      %1044 = vmatprep.mubr.bf16.mxu0 0
      %1045 = vmatmul.mubr.bf16.gmra.mrb[0].mxu0 %v986
      %v1046 = vpop.f32.mrb[0].mxu0
      %v1047 = vadd.f32 0.0, %v1046
      %v1048 = vpop.f32.mrb[0].mxu0
      %v1049 = vpop.f32.mrb[0].mxu0
      %v1050 = vadd.f32 0.0, %v1049
      %v1051 = vpop.f32.mrb[0].mxu0
      %1052 = vmatprep.mubr.bf16.mxu0 0
      %1053 = vmatmul.mubr.bf16.gmra.mrb[0].mxu0 %v989
      %v1054 = vpop.f32.mrb[0].mxu0
      %v1055 = vadd.f32 0.0, %v1054
      %v1056 = vpop.f32.mrb[0].mxu0
      %v1057 = vpop.f32.mrb[0].mxu0
      %v1058 = vadd.f32 0.0, %v1057
      %v1059 = vpop.f32.mrb[0].mxu0
      %1060 = vmatprep.mubr.bf16.mxu0 0
      %1061 = vmatmul.mubr.bf16.gmra.mrb[0].mxu0 %v992
      %v1062 = vpop.f32.mrb[0].mxu0
      %v1063 = vadd.f32 0.0, %v1062
      %v1064 = vpop.f32.mrb[0].mxu0
      %v1065 = vpop.f32.mrb[0].mxu0
      %v1066 = vadd.f32 0.0, %v1065
      %v1067 = vpop.f32.mrb[0].mxu0
      %1068 = vmatprep.mubr.bf16.mxu0 0
      %1069 = vmatmul.mubr.bf16.gmra.mrb[0].mxu0 %v995
      %v1070 = vpop.f32.mrb[0].mxu0
      %v1071 = vadd.f32 0.0, %v1070
      %v1072 = vpop.f32.mrb[0].mxu0
      %v1073 = vpop.f32.mrb[0].mxu0
      %v1074 = vadd.f32 0.0, %v1073
      %v1075 = vpop.f32.mrb[0].mxu0
      %1076 = vmatprep.mubr.bf16.mxu0 0
      %1077 = vmatmul.mubr.bf16.gmra.mrb[0].mxu0 %v998
      %v1078 = vpop.f32.mrb[0].mxu0
      %v1079 = vadd.f32 0.0, %v1078
      %v1080 = vpop.f32.mrb[0].mxu0
      %v1081 = vpop.f32.mrb[0].mxu0
      %v1082 = vadd.f32 0.0, %v1081
      %v1083 = vpop.f32.mrb[0].mxu0
      %1084 = vmatprep.mubr.bf16.mxu0 0
      %1085 = vmatmul.mubr.bf16.gmra.mrb[0].mxu0 %v1001
      %v1086 = vpop.f32.mrb[0].mxu0
      %v1087 = vadd.f32 0.0, %v1086
      %v1088 = vpop.f32.mrb[0].mxu0
      %v1089 = vpop.f32.mrb[0].mxu0
      %v1090 = vadd.f32 0.0, %v1089
      %v1091 = vpop.f32.mrb[0].mxu0
      %1092 = vmatprep.mubr.bf16.mxu0 0
      %1093 = vmatmul.mubr.bf16.gmra.mrb[0].mxu0 %v1004
      %v1094 = vpop.f32.mrb[0].mxu0
      %v1095 = vadd.f32 0.0, %v1094
      %v1096 = vpop.f32.mrb[0].mxu0
      %v1097 = vpop.f32.mrb[0].mxu0
      %v1098 = vadd.f32 0.0, %v1097
      %v1099 = vpop.f32.mrb[0].mxu0
      %1100 = vmatprep.mubr.bf16.mxu0 0
      %1101 = vmatmul.mubr.bf16.gmra.mrb[0].mxu0 %v1007
      %v1102 = vpop.f32.mrb[0].mxu0
      %v1103 = vadd.f32 0.0, %v1102
      %v1104 = vpop.f32.mrb[0].mxu0
      %v1105 = vpop.f32.mrb[0].mxu0
      %v1106 = vadd.f32 0.0, %v1105
      %v1107 = vpop.f32.mrb[0].mxu0
      %1108 = vdwg.mxu0
      %v1109 = vadd.f32 %v880, %v1047
      %v1110 = vadd.f32 %v883, %v1050
      %v1111 = vadd.f32 %v888, %v1055
      %v1112 = vadd.f32 %v891, %v1058
      %v1113 = vadd.f32 %v896, %v1063
      %v1114 = vadd.f32 %v899, %v1066
      %v1115 = vadd.f32 %v904, %v1071
      %v1116 = vadd.f32 %v907, %v1074
      %v1117 = vadd.f32 %v912, %v1079
      %v1118 = vadd.f32 %v915, %v1082
      %v1119 = vadd.f32 %v920, %v1087
      %v1120 = vadd.f32 %v923, %v1090
      %v1121 = vadd.f32 %v928, %v1095
      %v1122 = vadd.f32 %v931, %v1098
      %v1123 = vadd.f32 %v936, %v1103
      %v1124 = vadd.f32 %v939, %v1106
      %s1125 = scalar_lea.vmem %s1, 6
      %v1126 = vld [vmem:[%s1125] sm:$0x3]
      %v1128 = vsel %vm700, %v596, 0
      %v1131 = vsel %vm725, %v1126, 0
      %1133 = vmatprep.subr.bf16.mxu0 0
      %1134 = vmatpush1.bf16.msra.mxu0 %v1131
      %1135 = vmatprep.subr.bf16.mxu0 0
      %1136 = vmatpush1.bf16.msra.mxu0 0
      %1137 = vmatprep.subr.bf16.mxu0 0
      %1138 = vmatpush1.bf16.msra.mxu0 0
      %1139 = vmatprep.subr.bf16.mxu0 0
      %1140 = vmatpush1.bf16.msra.mxu0 0
      %1141 = vmatprep.subr.bf16.mxu0 0
      %1142 = vmatpush1.bf16.msra.mxu0 0
      %1143 = vmatprep.subr.bf16.mxu0 0
      %1144 = vmatpush1.bf16.msra.mxu0 0
      %1145 = vmatprep.subr.bf16.mxu0 0
      %1146 = vmatpush1.bf16.msra.mxu0 0
      %1147 = vmatprep.subr.bf16.mxu0 0
      %1148 = vmatpush1.bf16.msra.mxu0 0
      %1149 = vmatprep.subr.bf16.mxu0 0
      %1150 = vmatpush1.bf16.msra.mxu0 0
      %1151 = vmatprep.subr.bf16.mxu0 0
      %1152 = vmatpush1.bf16.msra.mxu0 0
      %1153 = vmatprep.subr.bf16.mxu0 0
      %1154 = vmatpush1.bf16.msra.mxu0 0
      %1155 = vmatprep.subr.bf16.mxu0 0
      %1156 = vmatpush1.bf16.msra.mxu0 0
      %1157 = vmatprep.subr.bf16.mxu0 0
      %1158 = vmatpush1.bf16.msra.mxu0 0
      %1159 = vmatprep.subr.bf16.mxu0 0
      %1160 = vmatpush1.bf16.msra.mxu0 0
      %1161 = vmatprep.subr.bf16.mxu0 0
      %1162 = vmatpush1.bf16.msra.mxu0 0
      %1163 = vmatprep.subr.bf16.mxu0 0
      %1164 = vmatpush1.bf16.msra.mxu0 0
      %1165 = vmatprep.mubr.bf16.mxu0 0
      %1166 = vmatmul.mubr.bf16.gmra.mrb[0].mxu0 %v828
      %v1167 = vpop.f32.mrb[0].mxu0
      %v1168 = vadd.f32 0.0, %v1167
      %v1169 = vpop.f32.mrb[0].mxu0
      %v1170 = vpop.f32.mrb[0].mxu0
      %v1171 = vadd.f32 0.0, %v1170
      %v1172 = vpop.f32.mrb[0].mxu0
      %1173 = vmatprep.mubr.bf16.mxu0 0
      %1174 = vmatmul.mubr.bf16.gmra.mrb[0].mxu0 %v830
      %v1175 = vpop.f32.mrb[0].mxu0
      %v1176 = vadd.f32 0.0, %v1175
      %v1177 = vpop.f32.mrb[0].mxu0
      %v1178 = vpop.f32.mrb[0].mxu0
      %v1179 = vadd.f32 0.0, %v1178
      %v1180 = vpop.f32.mrb[0].mxu0
      %1181 = vmatprep.mubr.bf16.mxu0 0
      %1182 = vmatmul.mubr.bf16.gmra.mrb[0].mxu0 %v832
      %v1183 = vpop.f32.mrb[0].mxu0
      %v1184 = vadd.f32 0.0, %v1183
      %v1185 = vpop.f32.mrb[0].mxu0
      %v1186 = vpop.f32.mrb[0].mxu0
      %v1187 = vadd.f32 0.0, %v1186
      %v1188 = vpop.f32.mrb[0].mxu0
      %1189 = vmatprep.mubr.bf16.mxu0 0
      %1190 = vmatmul.mubr.bf16.gmra.mrb[0].mxu0 %v834
      %v1191 = vpop.f32.mrb[0].mxu0
      %v1192 = vadd.f32 0.0, %v1191
      %v1193 = vpop.f32.mrb[0].mxu0
      %v1194 = vpop.f32.mrb[0].mxu0
      %v1195 = vadd.f32 0.0, %v1194
      %v1196 = vpop.f32.mrb[0].mxu0
      %1197 = vmatprep.mubr.bf16.mxu0 0
      %1198 = vmatmul.mubr.bf16.gmra.mrb[0].mxu0 %v836
      %v1199 = vpop.f32.mrb[0].mxu0
      %v1200 = vadd.f32 0.0, %v1199
      %v1201 = vpop.f32.mrb[0].mxu0
      %v1202 = vpop.f32.mrb[0].mxu0
      %v1203 = vadd.f32 0.0, %v1202
      %v1204 = vpop.f32.mrb[0].mxu0
      %1205 = vmatprep.mubr.bf16.mxu0 0
      %1206 = vmatmul.mubr.bf16.gmra.mrb[0].mxu0 %v838
      %v1207 = vpop.f32.mrb[0].mxu0
      %v1208 = vadd.f32 0.0, %v1207
      %v1209 = vpop.f32.mrb[0].mxu0
      %v1210 = vpop.f32.mrb[0].mxu0
      %v1211 = vadd.f32 0.0, %v1210
      %v1212 = vpop.f32.mrb[0].mxu0
      %1213 = vmatprep.mubr.bf16.mxu0 0
      %1214 = vmatmul.mubr.bf16.gmra.mrb[0].mxu0 %v840
      %v1215 = vpop.f32.mrb[0].mxu0
      %v1216 = vadd.f32 0.0, %v1215
      %v1217 = vpop.f32.mrb[0].mxu0
      %v1218 = vpop.f32.mrb[0].mxu0
      %v1219 = vadd.f32 0.0, %v1218
      %v1220 = vpop.f32.mrb[0].mxu0
      %1221 = vmatprep.mubr.bf16.mxu0 0
      %1222 = vmatmul.mubr.bf16.gmra.mrb[0].mxu0 %v1128
      %v1223 = vpop.f32.mrb[0].mxu0
      %v1224 = vadd.f32 0.0, %v1223
      %v1225 = vpop.f32.mrb[0].mxu0
      %v1226 = vpop.f32.mrb[0].mxu0
      %v1227 = vadd.f32 0.0, %v1226
      %v1228 = vpop.f32.mrb[0].mxu0
      %1229 = vdwg.mxu0
      %v1230 = vadd.f32 %v1109, %v1168
      %v1231 = vadd.f32 %v1110, %v1171
      %v1232 = vadd.f32 %v1111, %v1176
      %v1233 = vadd.f32 %v1112, %v1179
      %v1234 = vadd.f32 %v1113, %v1184
      %v1235 = vadd.f32 %v1114, %v1187
      %v1236 = vadd.f32 %v1115, %v1192
      %v1237 = vadd.f32 %v1116, %v1195
      %v1238 = vadd.f32 %v1117, %v1200
      %v1239 = vadd.f32 %v1118, %v1203
      %v1240 = vadd.f32 %v1119, %v1208
      %v1241 = vadd.f32 %v1120, %v1211
      %v1242 = vadd.f32 %v1121, %v1216
      %v1243 = vadd.f32 %v1122, %v1219
      %v1244 = vadd.f32 %v1123, %v1224
      %v1245 = vadd.f32 %v1124, %v1227
      %v1246 = vshrl.u32 %v596, 16
      %v1248 = vshll.u32 %v596, 16
      %v1250 = vrot.slane %v1248, 1
      %v1251 = vor.u32 %v1246, %v1250
      %v1253 = vshll.u32 %v597, 16
      %v1255 = vrot.slane %v1253, 1
      %v1256 = vsel %vm601, %v1251, %v1255
      %s1257 = scalar_lea.vmem %s1, 8
      %v1258 = vld [vmem:[%s1257] sm:$0x3]
      %v1260 = vsel %vm700, %v1256, 0
      %v1263 = vsel %vm725, %v1258, 0
      %1265 = vmatprep.subr.bf16.mxu0 0
      %1266 = vmatpush1.bf16.msra.mxu0 %v1263
      %1267 = vmatprep.subr.bf16.mxu0 0
      %1268 = vmatpush1.bf16.msra.mxu0 0
      %1269 = vmatprep.subr.bf16.mxu0 0
      %1270 = vmatpush1.bf16.msra.mxu0 0
      %1271 = vmatprep.subr.bf16.mxu0 0
      %1272 = vmatpush1.bf16.msra.mxu0 0
      %1273 = vmatprep.subr.bf16.mxu0 0
      %1274 = vmatpush1.bf16.msra.mxu0 0
      %1275 = vmatprep.subr.bf16.mxu0 0
      %1276 = vmatpush1.bf16.msra.mxu0 0
      %1277 = vmatprep.subr.bf16.mxu0 0
      %1278 = vmatpush1.bf16.msra.mxu0 0
      %1279 = vmatprep.subr.bf16.mxu0 0
      %1280 = vmatpush1.bf16.msra.mxu0 0
      %1281 = vmatprep.subr.bf16.mxu0 0
      %1282 = vmatpush1.bf16.msra.mxu0 0
      %1283 = vmatprep.subr.bf16.mxu0 0
      %1284 = vmatpush1.bf16.msra.mxu0 0
      %1285 = vmatprep.subr.bf16.mxu0 0
      %1286 = vmatpush1.bf16.msra.mxu0 0
      %1287 = vmatprep.subr.bf16.mxu0 0
      %1288 = vmatpush1.bf16.msra.mxu0 0
      %1289 = vmatprep.subr.bf16.mxu0 0
      %1290 = vmatpush1.bf16.msra.mxu0 0
      %1291 = vmatprep.subr.bf16.mxu0 0
      %1292 = vmatpush1.bf16.msra.mxu0 0
      %1293 = vmatprep.subr.bf16.mxu0 0
      %1294 = vmatpush1.bf16.msra.mxu0 0
      %1295 = vmatprep.subr.bf16.mxu0 0
      %1296 = vmatpush1.bf16.msra.mxu0 0
      %1297 = vmatprep.mubr.bf16.mxu0 0
      %1298 = vmatmul.mubr.bf16.gmra.mrb[0].mxu0 %v705
      %v1299 = vpop.f32.mrb[0].mxu0
      %v1300 = vadd.f32 0.0, %v1299
      %v1301 = vpop.f32.mrb[0].mxu0
      %v1302 = vpop.f32.mrb[0].mxu0
      %v1303 = vadd.f32 0.0, %v1302
      %v1304 = vpop.f32.mrb[0].mxu0
      %1305 = vmatprep.mubr.bf16.mxu0 0
      %1306 = vmatmul.mubr.bf16.gmra.mrb[0].mxu0 %v708
      %v1307 = vpop.f32.mrb[0].mxu0
      %v1308 = vadd.f32 0.0, %v1307
      %v1309 = vpop.f32.mrb[0].mxu0
      %v1310 = vpop.f32.mrb[0].mxu0
      %v1311 = vadd.f32 0.0, %v1310
      %v1312 = vpop.f32.mrb[0].mxu0
      %1313 = vmatprep.mubr.bf16.mxu0 0
      %1314 = vmatmul.mubr.bf16.gmra.mrb[0].mxu0 %v711
      %v1315 = vpop.f32.mrb[0].mxu0
      %v1316 = vadd.f32 0.0, %v1315
      %v1317 = vpop.f32.mrb[0].mxu0
      %v1318 = vpop.f32.mrb[0].mxu0
      %v1319 = vadd.f32 0.0, %v1318
      %v1320 = vpop.f32.mrb[0].mxu0
      %1321 = vmatprep.mubr.bf16.mxu0 0
      %1322 = vmatmul.mubr.bf16.gmra.mrb[0].mxu0 %v714
      %v1323 = vpop.f32.mrb[0].mxu0
      %v1324 = vadd.f32 0.0, %v1323
      %v1325 = vpop.f32.mrb[0].mxu0
      %v1326 = vpop.f32.mrb[0].mxu0
      %v1327 = vadd.f32 0.0, %v1326
      %v1328 = vpop.f32.mrb[0].mxu0
      %1329 = vmatprep.mubr.bf16.mxu0 0
      %1330 = vmatmul.mubr.bf16.gmra.mrb[0].mxu0 %v717
      %v1331 = vpop.f32.mrb[0].mxu0
      %v1332 = vadd.f32 0.0, %v1331
      %v1333 = vpop.f32.mrb[0].mxu0
      %v1334 = vpop.f32.mrb[0].mxu0
      %v1335 = vadd.f32 0.0, %v1334
      %v1336 = vpop.f32.mrb[0].mxu0
      %1337 = vmatprep.mubr.bf16.mxu0 0
      %1338 = vmatmul.mubr.bf16.gmra.mrb[0].mxu0 %v720
      %v1339 = vpop.f32.mrb[0].mxu0
      %v1340 = vadd.f32 0.0, %v1339
      %v1341 = vpop.f32.mrb[0].mxu0
      %v1342 = vpop.f32.mrb[0].mxu0
      %v1343 = vadd.f32 0.0, %v1342
      %v1344 = vpop.f32.mrb[0].mxu0
      %1345 = vmatprep.mubr.bf16.mxu0 0
      %1346 = vmatmul.mubr.bf16.gmra.mrb[0].mxu0 %v723
      %v1347 = vpop.f32.mrb[0].mxu0
      %v1348 = vadd.f32 0.0, %v1347
      %v1349 = vpop.f32.mrb[0].mxu0
      %v1350 = vpop.f32.mrb[0].mxu0
      %v1351 = vadd.f32 0.0, %v1350
      %v1352 = vpop.f32.mrb[0].mxu0
      %1353 = vmatprep.mubr.bf16.mxu0 0
      %1354 = vmatmul.mubr.bf16.gmra.mrb[0].mxu0 %v1260
      %v1355 = vpop.f32.mrb[0].mxu0
      %v1356 = vadd.f32 0.0, %v1355
      %v1357 = vpop.f32.mrb[0].mxu0
      %v1358 = vpop.f32.mrb[0].mxu0
      %v1359 = vadd.f32 0.0, %v1358
      %v1360 = vpop.f32.mrb[0].mxu0
      %1361 = vdwg.mxu0
      %v1362 = vadd.f32 %v1230, %v1300
      %v1363 = vadd.f32 %v1231, %v1303
      %v1364 = vadd.f32 %v1232, %v1308
      %v1365 = vadd.f32 %v1233, %v1311
      %v1366 = vadd.f32 %v1234, %v1316
      %v1367 = vadd.f32 %v1235, %v1319
      %v1368 = vadd.f32 %v1236, %v1324
      %v1369 = vadd.f32 %v1237, %v1327
      %v1370 = vadd.f32 %v1238, %v1332
      %v1371 = vadd.f32 %v1239, %v1335
      %v1372 = vadd.f32 %v1240, %v1340
      %v1373 = vadd.f32 %v1241, %v1343
      %v1374 = vadd.f32 %v1242, %v1348
      %v1375 = vadd.f32 %v1243, %v1351
      %v1376 = vadd.f32 %v1244, %v1356
      %v1377 = vadd.f32 %v1245, %v1359
      %v1380 = vrot.slane %v596, 1
      %v1381 = vrot.slane %v597, 1
      %v1382 = vsel %vm958, %v1380, %v1381
      %s1383 = scalar_lea.vmem %s1, 10
      %v1384 = vld [vmem:[%s1383] sm:$0x3]
      %v1386 = vsel %vm700, %v1382, 0
      %v1389 = vsel %vm725, %v1384, 0
      %1391 = vmatprep.subr.bf16.mxu0 0
      %1392 = vmatpush1.bf16.msra.mxu0 %v1389
      %1393 = vmatprep.subr.bf16.mxu0 0
      %1394 = vmatpush1.bf16.msra.mxu0 0
      %1395 = vmatprep.subr.bf16.mxu0 0
      %1396 = vmatpush1.bf16.msra.mxu0 0
      %1397 = vmatprep.subr.bf16.mxu0 0
      %1398 = vmatpush1.bf16.msra.mxu0 0
      %1399 = vmatprep.subr.bf16.mxu0 0
      %1400 = vmatpush1.bf16.msra.mxu0 0
      %1401 = vmatprep.subr.bf16.mxu0 0
      %1402 = vmatpush1.bf16.msra.mxu0 0
      %1403 = vmatprep.subr.bf16.mxu0 0
      %1404 = vmatpush1.bf16.msra.mxu0 0
      %1405 = vmatprep.subr.bf16.mxu0 0
      %1406 = vmatpush1.bf16.msra.mxu0 0
      %1407 = vmatprep.subr.bf16.mxu0 0
      %1408 = vmatpush1.bf16.msra.mxu0 0
      %1409 = vmatprep.subr.bf16.mxu0 0
      %1410 = vmatpush1.bf16.msra.mxu0 0
      %1411 = vmatprep.subr.bf16.mxu0 0
      %1412 = vmatpush1.bf16.msra.mxu0 0
      %1413 = vmatprep.subr.bf16.mxu0 0
      %1414 = vmatpush1.bf16.msra.mxu0 0
      %1415 = vmatprep.subr.bf16.mxu0 0
      %1416 = vmatpush1.bf16.msra.mxu0 0
      %1417 = vmatprep.subr.bf16.mxu0 0
      %1418 = vmatpush1.bf16.msra.mxu0 0
      %1419 = vmatprep.subr.bf16.mxu0 0
      %1420 = vmatpush1.bf16.msra.mxu0 0
      %1421 = vmatprep.subr.bf16.mxu0 0
      %1422 = vmatpush1.bf16.msra.mxu0 0
      %1423 = vmatprep.mubr.bf16.mxu0 0
      %1424 = vmatmul.mubr.bf16.gmra.mrb[0].mxu0 %v989
      %v1425 = vpop.f32.mrb[0].mxu0
      %v1426 = vadd.f32 0.0, %v1425
      %v1427 = vpop.f32.mrb[0].mxu0
      %v1428 = vpop.f32.mrb[0].mxu0
      %v1429 = vadd.f32 0.0, %v1428
      %v1430 = vpop.f32.mrb[0].mxu0
      %1431 = vmatprep.mubr.bf16.mxu0 0
      %1432 = vmatmul.mubr.bf16.gmra.mrb[0].mxu0 %v992
      %v1433 = vpop.f32.mrb[0].mxu0
      %v1434 = vadd.f32 0.0, %v1433
      %v1435 = vpop.f32.mrb[0].mxu0
      %v1436 = vpop.f32.mrb[0].mxu0
      %v1437 = vadd.f32 0.0, %v1436
      %v1438 = vpop.f32.mrb[0].mxu0
      %1439 = vmatprep.mubr.bf16.mxu0 0
      %1440 = vmatmul.mubr.bf16.gmra.mrb[0].mxu0 %v995
      %v1441 = vpop.f32.mrb[0].mxu0
      %v1442 = vadd.f32 0.0, %v1441
      %v1443 = vpop.f32.mrb[0].mxu0
      %v1444 = vpop.f32.mrb[0].mxu0
      %v1445 = vadd.f32 0.0, %v1444
      %v1446 = vpop.f32.mrb[0].mxu0
      %1447 = vmatprep.mubr.bf16.mxu0 0
      %1448 = vmatmul.mubr.bf16.gmra.mrb[0].mxu0 %v998
      %v1449 = vpop.f32.mrb[0].mxu0
      %v1450 = vadd.f32 0.0, %v1449
      %v1451 = vpop.f32.mrb[0].mxu0
      %v1452 = vpop.f32.mrb[0].mxu0
      %v1453 = vadd.f32 0.0, %v1452
      %v1454 = vpop.f32.mrb[0].mxu0
      %1455 = vmatprep.mubr.bf16.mxu0 0
      %1456 = vmatmul.mubr.bf16.gmra.mrb[0].mxu0 %v1001
      %v1457 = vpop.f32.mrb[0].mxu0
      %v1458 = vadd.f32 0.0, %v1457
      %v1459 = vpop.f32.mrb[0].mxu0
      %v1460 = vpop.f32.mrb[0].mxu0
      %v1461 = vadd.f32 0.0, %v1460
      %v1462 = vpop.f32.mrb[0].mxu0
      %1463 = vmatprep.mubr.bf16.mxu0 0
      %1464 = vmatmul.mubr.bf16.gmra.mrb[0].mxu0 %v1004
      %v1465 = vpop.f32.mrb[0].mxu0
      %v1466 = vadd.f32 0.0, %v1465
      %v1467 = vpop.f32.mrb[0].mxu0
      %v1468 = vpop.f32.mrb[0].mxu0
      %v1469 = vadd.f32 0.0, %v1468
      %v1470 = vpop.f32.mrb[0].mxu0
      %1471 = vmatprep.mubr.bf16.mxu0 0
      %1472 = vmatmul.mubr.bf16.gmra.mrb[0].mxu0 %v1007
      %v1473 = vpop.f32.mrb[0].mxu0
      %v1474 = vadd.f32 0.0, %v1473
      %v1475 = vpop.f32.mrb[0].mxu0
      %v1476 = vpop.f32.mrb[0].mxu0
      %v1477 = vadd.f32 0.0, %v1476
      %v1478 = vpop.f32.mrb[0].mxu0
      %1479 = vmatprep.mubr.bf16.mxu0 0
      %1480 = vmatmul.mubr.bf16.gmra.mrb[0].mxu0 %v1386
      %v1481 = vpop.f32.mrb[0].mxu0
      %v1482 = vadd.f32 0.0, %v1481
      %v1483 = vpop.f32.mrb[0].mxu0
      %v1484 = vpop.f32.mrb[0].mxu0
      %v1485 = vadd.f32 0.0, %v1484
      %v1486 = vpop.f32.mrb[0].mxu0
      %1487 = vdwg.mxu0
      %v1488 = vadd.f32 %v1362, %v1426
      %v1489 = vadd.f32 %v1363, %v1429
      %v1490 = vadd.f32 %v1364, %v1434
      %v1491 = vadd.f32 %v1365, %v1437
      %v1492 = vadd.f32 %v1366, %v1442
      %v1493 = vadd.f32 %v1367, %v1445
      %v1494 = vadd.f32 %v1368, %v1450
      %v1495 = vadd.f32 %v1369, %v1453
      %v1496 = vadd.f32 %v1370, %v1458
      %v1497 = vadd.f32 %v1371, %v1461
      %v1498 = vadd.f32 %v1372, %v1466
      %v1499 = vadd.f32 %v1373, %v1469
      %v1500 = vadd.f32 %v1374, %v1474
      %v1501 = vadd.f32 %v1375, %v1477
      %v1502 = vadd.f32 %v1376, %v1482
      %v1503 = vadd.f32 %v1377, %v1485
      %s1504 = scalar_lea.vmem %s1, 12
      %v1505 = vld [vmem:[%s1504] sm:$0x3]
      %v1507 = vsel %vm700, %v598, 0
      %v1510 = vsel %vm725, %v1505, 0
      %1512 = vmatprep.subr.bf16.mxu0 0
      %1513 = vmatpush1.bf16.msra.mxu0 %v1510
      %1514 = vmatprep.subr.bf16.mxu0 0
      %1515 = vmatpush1.bf16.msra.mxu0 0
      %1516 = vmatprep.subr.bf16.mxu0 0
      %1517 = vmatpush1.bf16.msra.mxu0 0
      %1518 = vmatprep.subr.bf16.mxu0 0
      %1519 = vmatpush1.bf16.msra.mxu0 0
      %1520 = vmatprep.subr.bf16.mxu0 0
      %1521 = vmatpush1.bf16.msra.mxu0 0
      %1522 = vmatprep.subr.bf16.mxu0 0
      %1523 = vmatpush1.bf16.msra.mxu0 0
      %1524 = vmatprep.subr.bf16.mxu0 0
      %1525 = vmatpush1.bf16.msra.mxu0 0
      %1526 = vmatprep.subr.bf16.mxu0 0
      %1527 = vmatpush1.bf16.msra.mxu0 0
      %1528 = vmatprep.subr.bf16.mxu0 0
      %1529 = vmatpush1.bf16.msra.mxu0 0
      %1530 = vmatprep.subr.bf16.mxu0 0
      %1531 = vmatpush1.bf16.msra.mxu0 0
      %1532 = vmatprep.subr.bf16.mxu0 0
      %1533 = vmatpush1.bf16.msra.mxu0 0
      %1534 = vmatprep.subr.bf16.mxu0 0
      %1535 = vmatpush1.bf16.msra.mxu0 0
      %1536 = vmatprep.subr.bf16.mxu0 0
      %1537 = vmatpush1.bf16.msra.mxu0 0
      %1538 = vmatprep.subr.bf16.mxu0 0
      %1539 = vmatpush1.bf16.msra.mxu0 0
      %1540 = vmatprep.subr.bf16.mxu0 0
      %1541 = vmatpush1.bf16.msra.mxu0 0
      %1542 = vmatprep.subr.bf16.mxu0 0
      %1543 = vmatpush1.bf16.msra.mxu0 0
      %1544 = vmatprep.mubr.bf16.mxu0 0
      %1545 = vmatmul.mubr.bf16.gmra.mrb[0].mxu0 %v830
      %v1546 = vpop.f32.mrb[0].mxu0
      %v1547 = vadd.f32 0.0, %v1546
      %v1548 = vpop.f32.mrb[0].mxu0
      %v1549 = vpop.f32.mrb[0].mxu0
      %v1550 = vadd.f32 0.0, %v1549
      %v1551 = vpop.f32.mrb[0].mxu0
      %1552 = vmatprep.mubr.bf16.mxu0 0
      %1553 = vmatmul.mubr.bf16.gmra.mrb[0].mxu0 %v832
      %v1554 = vpop.f32.mrb[0].mxu0
      %v1555 = vadd.f32 0.0, %v1554
      %v1556 = vpop.f32.mrb[0].mxu0
      %v1557 = vpop.f32.mrb[0].mxu0
      %v1558 = vadd.f32 0.0, %v1557
      %v1559 = vpop.f32.mrb[0].mxu0
      %1560 = vmatprep.mubr.bf16.mxu0 0
      %1561 = vmatmul.mubr.bf16.gmra.mrb[0].mxu0 %v834
      %v1562 = vpop.f32.mrb[0].mxu0
      %v1563 = vadd.f32 0.0, %v1562
      %v1564 = vpop.f32.mrb[0].mxu0
      %v1565 = vpop.f32.mrb[0].mxu0
      %v1566 = vadd.f32 0.0, %v1565
      %v1567 = vpop.f32.mrb[0].mxu0
      %1568 = vmatprep.mubr.bf16.mxu0 0
      %1569 = vmatmul.mubr.bf16.gmra.mrb[0].mxu0 %v836
      %v1570 = vpop.f32.mrb[0].mxu0
      %v1571 = vadd.f32 0.0, %v1570
      %v1572 = vpop.f32.mrb[0].mxu0
      %v1573 = vpop.f32.mrb[0].mxu0
      %v1574 = vadd.f32 0.0, %v1573
      %v1575 = vpop.f32.mrb[0].mxu0
      %1576 = vmatprep.mubr.bf16.mxu0 0
      %1577 = vmatmul.mubr.bf16.gmra.mrb[0].mxu0 %v838
      %v1578 = vpop.f32.mrb[0].mxu0
      %v1579 = vadd.f32 0.0, %v1578
      %v1580 = vpop.f32.mrb[0].mxu0
      %v1581 = vpop.f32.mrb[0].mxu0
      %v1582 = vadd.f32 0.0, %v1581
      %v1583 = vpop.f32.mrb[0].mxu0
      %1584 = vmatprep.mubr.bf16.mxu0 0
      %1585 = vmatmul.mubr.bf16.gmra.mrb[0].mxu0 %v840
      %v1586 = vpop.f32.mrb[0].mxu0
      %v1587 = vadd.f32 0.0, %v1586
      %v1588 = vpop.f32.mrb[0].mxu0
      %v1589 = vpop.f32.mrb[0].mxu0
      %v1590 = vadd.f32 0.0, %v1589
      %v1591 = vpop.f32.mrb[0].mxu0
      %1592 = vmatprep.mubr.bf16.mxu0 0
      %1593 = vmatmul.mubr.bf16.gmra.mrb[0].mxu0 %v1128
      %v1594 = vpop.f32.mrb[0].mxu0
      %v1595 = vadd.f32 0.0, %v1594
      %v1596 = vpop.f32.mrb[0].mxu0
      %v1597 = vpop.f32.mrb[0].mxu0
      %v1598 = vadd.f32 0.0, %v1597
      %v1599 = vpop.f32.mrb[0].mxu0
      %1600 = vmatprep.mubr.bf16.mxu0 0
      %1601 = vmatmul.mubr.bf16.gmra.mrb[0].mxu0 %v1507
      %v1602 = vpop.f32.mrb[0].mxu0
      %v1603 = vadd.f32 0.0, %v1602
      %v1604 = vpop.f32.mrb[0].mxu0
      %v1605 = vpop.f32.mrb[0].mxu0
      %v1606 = vadd.f32 0.0, %v1605
      %v1607 = vpop.f32.mrb[0].mxu0
      %1608 = vdwg.mxu0
      %v1609 = vadd.f32 %v1488, %v1547
      %v1610 = vadd.f32 %v1489, %v1550
      %v1611 = vadd.f32 %v1490, %v1555
      %v1612 = vadd.f32 %v1491, %v1558
      %v1613 = vadd.f32 %v1492, %v1563
      %v1614 = vadd.f32 %v1493, %v1566
      %v1615 = vadd.f32 %v1494, %v1571
      %v1616 = vadd.f32 %v1495, %v1574
      %v1617 = vadd.f32 %v1496, %v1579
      %v1618 = vadd.f32 %v1497, %v1582
      %v1619 = vadd.f32 %v1498, %v1587
      %v1620 = vadd.f32 %v1499, %v1590
      %v1621 = vadd.f32 %v1500, %v1595
      %v1622 = vadd.f32 %v1501, %v1598
      %v1623 = vadd.f32 %v1502, %v1603
      %v1624 = vadd.f32 %v1503, %v1606
      %v1625 = vshrl.u32 %v598, 16
      %v1627 = vshll.u32 %v598, 16
      %v1629 = vrot.slane %v1627, 1
      %v1630 = vor.u32 %v1625, %v1629
      %v1632 = vshll.u32 %v599, 16
      %v1634 = vrot.slane %v1632, 1
      %v1635 = vsel %vm601, %v1630, %v1634
      %s1636 = scalar_lea.vmem %s1, 14
      %v1637 = vld [vmem:[%s1636] sm:$0x3]
      %v1639 = vsel %vm700, %v1635, 0
      %v1642 = vsel %vm725, %v1637, 0
      %1644 = vmatprep.subr.bf16.mxu0 0
      %1645 = vmatpush1.bf16.msra.mxu0 %v1642
      %1646 = vmatprep.subr.bf16.mxu0 0
      %1647 = vmatpush1.bf16.msra.mxu0 0
      %1648 = vmatprep.subr.bf16.mxu0 0
      %1649 = vmatpush1.bf16.msra.mxu0 0
      %1650 = vmatprep.subr.bf16.mxu0 0
      %1651 = vmatpush1.bf16.msra.mxu0 0
      %1652 = vmatprep.subr.bf16.mxu0 0
      %1653 = vmatpush1.bf16.msra.mxu0 0
      %1654 = vmatprep.subr.bf16.mxu0 0
      %1655 = vmatpush1.bf16.msra.mxu0 0
      %1656 = vmatprep.subr.bf16.mxu0 0
      %1657 = vmatpush1.bf16.msra.mxu0 0
      %1658 = vmatprep.subr.bf16.mxu0 0
      %1659 = vmatpush1.bf16.msra.mxu0 0
      %1660 = vmatprep.subr.bf16.mxu0 0
      %1661 = vmatpush1.bf16.msra.mxu0 0
      %1662 = vmatprep.subr.bf16.mxu0 0
      %1663 = vmatpush1.bf16.msra.mxu0 0
      %1664 = vmatprep.subr.bf16.mxu0 0
      %1665 = vmatpush1.bf16.msra.mxu0 0
      %1666 = vmatprep.subr.bf16.mxu0 0
      %1667 = vmatpush1.bf16.msra.mxu0 0
      %1668 = vmatprep.subr.bf16.mxu0 0
      %1669 = vmatpush1.bf16.msra.mxu0 0
      %1670 = vmatprep.subr.bf16.mxu0 0
      %1671 = vmatpush1.bf16.msra.mxu0 0
      %1672 = vmatprep.subr.bf16.mxu0 0
      %1673 = vmatpush1.bf16.msra.mxu0 0
      %1674 = vmatprep.subr.bf16.mxu0 0
      %1675 = vmatpush1.bf16.msra.mxu0 0
      %1676 = vmatprep.mubr.bf16.mxu0 0
      %1677 = vmatmul.mubr.bf16.gmra.mrb[0].mxu0 %v708
      %v1678 = vpop.f32.mrb[0].mxu0
      %v1679 = vadd.f32 0.0, %v1678
      %v1680 = vpop.f32.mrb[0].mxu0
      %v1681 = vpop.f32.mrb[0].mxu0
      %v1682 = vadd.f32 0.0, %v1681
      %v1683 = vpop.f32.mrb[0].mxu0
      %1684 = vmatprep.mubr.bf16.mxu0 0
      %1685 = vmatmul.mubr.bf16.gmra.mrb[0].mxu0 %v711
      %v1686 = vpop.f32.mrb[0].mxu0
      %v1687 = vadd.f32 0.0, %v1686
      %v1688 = vpop.f32.mrb[0].mxu0
      %v1689 = vpop.f32.mrb[0].mxu0
      %v1690 = vadd.f32 0.0, %v1689
      %v1691 = vpop.f32.mrb[0].mxu0
      %1692 = vmatprep.mubr.bf16.mxu0 0
      %1693 = vmatmul.mubr.bf16.gmra.mrb[0].mxu0 %v714
      %v1694 = vpop.f32.mrb[0].mxu0
      %v1695 = vadd.f32 0.0, %v1694
      %v1696 = vpop.f32.mrb[0].mxu0
      %v1697 = vpop.f32.mrb[0].mxu0
      %v1698 = vadd.f32 0.0, %v1697
      %v1699 = vpop.f32.mrb[0].mxu0
      %1700 = vmatprep.mubr.bf16.mxu0 0
      %1701 = vmatmul.mubr.bf16.gmra.mrb[0].mxu0 %v717
      %v1702 = vpop.f32.mrb[0].mxu0
      %v1703 = vadd.f32 0.0, %v1702
      %v1704 = vpop.f32.mrb[0].mxu0
      %v1705 = vpop.f32.mrb[0].mxu0
      %v1706 = vadd.f32 0.0, %v1705
      %v1707 = vpop.f32.mrb[0].mxu0
      %1708 = vmatprep.mubr.bf16.mxu0 0
      %1709 = vmatmul.mubr.bf16.gmra.mrb[0].mxu0 %v720
      %v1710 = vpop.f32.mrb[0].mxu0
      %v1711 = vadd.f32 0.0, %v1710
      %v1712 = vpop.f32.mrb[0].mxu0
      %v1713 = vpop.f32.mrb[0].mxu0
      %v1714 = vadd.f32 0.0, %v1713
      %v1715 = vpop.f32.mrb[0].mxu0
      %1716 = vmatprep.mubr.bf16.mxu0 0
      %1717 = vmatmul.mubr.bf16.gmra.mrb[0].mxu0 %v723
      %v1718 = vpop.f32.mrb[0].mxu0
      %v1719 = vadd.f32 0.0, %v1718
      %v1720 = vpop.f32.mrb[0].mxu0
      %v1721 = vpop.f32.mrb[0].mxu0
      %v1722 = vadd.f32 0.0, %v1721
      %v1723 = vpop.f32.mrb[0].mxu0
      %1724 = vmatprep.mubr.bf16.mxu0 0
      %1725 = vmatmul.mubr.bf16.gmra.mrb[0].mxu0 %v1260
      %v1726 = vpop.f32.mrb[0].mxu0
      %v1727 = vadd.f32 0.0, %v1726
      %v1728 = vpop.f32.mrb[0].mxu0
      %v1729 = vpop.f32.mrb[0].mxu0
      %v1730 = vadd.f32 0.0, %v1729
      %v1731 = vpop.f32.mrb[0].mxu0
      %1732 = vmatprep.mubr.bf16.mxu0 0
      %1733 = vmatmul.mubr.bf16.gmra.mrb[0].mxu0 %v1639
      %v1734 = vpop.f32.mrb[0].mxu0
      %v1735 = vadd.f32 0.0, %v1734
      %v1736 = vpop.f32.mrb[0].mxu0
      %v1737 = vpop.f32.mrb[0].mxu0
      %v1738 = vadd.f32 0.0, %v1737
      %v1739 = vpop.f32.mrb[0].mxu0
      %1740 = vdwg.mxu0
      %v1741 = vadd.f32 %v1609, %v1679
      %v1742 = vadd.f32 %v1610, %v1682
      %v1743 = vadd.f32 %v1611, %v1687
      %v1744 = vadd.f32 %v1612, %v1690
      %v1745 = vadd.f32 %v1613, %v1695
      %v1746 = vadd.f32 %v1614, %v1698
      %v1747 = vadd.f32 %v1615, %v1703
      %v1748 = vadd.f32 %v1616, %v1706
      %v1749 = vadd.f32 %v1617, %v1711
      %v1750 = vadd.f32 %v1618, %v1714
      %v1751 = vadd.f32 %v1619, %v1719
      %v1752 = vadd.f32 %v1620, %v1722
      %v1753 = vadd.f32 %v1621, %v1727
      %v1754 = vadd.f32 %v1622, %v1730
      %v1755 = vadd.f32 %v1623, %v1735
      %v1756 = vadd.f32 %v1624, %v1738
      %v1759 = vrot.slane %v598, 1
      %v1760 = vrot.slane %v599, 1
      %v1761 = vsel %vm958, %v1759, %v1760
      %s1762 = scalar_lea.vmem %s1, 16
      %v1763 = vld [vmem:[%s1762] sm:$0x3]
      %v1765 = vsel %vm700, %v1761, 0
      %v1768 = vsel %vm725, %v1763, 0
      %1770 = vmatprep.subr.bf16.mxu0 0
      %1771 = vmatpush1.bf16.msra.mxu0 %v1768
      %1772 = vmatprep.subr.bf16.mxu0 0
      %1773 = vmatpush1.bf16.msra.mxu0 0
      %1774 = vmatprep.subr.bf16.mxu0 0
      %1775 = vmatpush1.bf16.msra.mxu0 0
      %1776 = vmatprep.subr.bf16.mxu0 0
      %1777 = vmatpush1.bf16.msra.mxu0 0
      %1778 = vmatprep.subr.bf16.mxu0 0
      %1779 = vmatpush1.bf16.msra.mxu0 0
      %1780 = vmatprep.subr.bf16.mxu0 0
      %1781 = vmatpush1.bf16.msra.mxu0 0
      %1782 = vmatprep.subr.bf16.mxu0 0
      %1783 = vmatpush1.bf16.msra.mxu0 0
      %1784 = vmatprep.subr.bf16.mxu0 0
      %1785 = vmatpush1.bf16.msra.mxu0 0
      %1786 = vmatprep.subr.bf16.mxu0 0
      %1787 = vmatpush1.bf16.msra.mxu0 0
      %1788 = vmatprep.subr.bf16.mxu0 0
      %1789 = vmatpush1.bf16.msra.mxu0 0
      %1790 = vmatprep.subr.bf16.mxu0 0
      %1791 = vmatpush1.bf16.msra.mxu0 0
      %1792 = vmatprep.subr.bf16.mxu0 0
      %1793 = vmatpush1.bf16.msra.mxu0 0
      %1794 = vmatprep.subr.bf16.mxu0 0
      %1795 = vmatpush1.bf16.msra.mxu0 0
      %1796 = vmatprep.subr.bf16.mxu0 0
      %1797 = vmatpush1.bf16.msra.mxu0 0
      %1798 = vmatprep.subr.bf16.mxu0 0
      %1799 = vmatpush1.bf16.msra.mxu0 0
      %1800 = vmatprep.subr.bf16.mxu0 0
      %1801 = vmatpush1.bf16.msra.mxu0 0
      %1802 = vmatprep.mubr.bf16.mxu0 0
      %1803 = vmatmul.mubr.bf16.gmra.mrb[0].mxu0 %v992
      %v1804 = vpop.f32.mrb[0].mxu0
      %v1805 = vadd.f32 0.0, %v1804
      %v1806 = vpop.f32.mrb[0].mxu0
      %v1807 = vpop.f32.mrb[0].mxu0
      %v1808 = vadd.f32 0.0, %v1807
      %v1809 = vpop.f32.mrb[0].mxu0
      %1810 = vmatprep.mubr.bf16.mxu0 0
      %1811 = vmatmul.mubr.bf16.gmra.mrb[0].mxu0 %v995
      %v1812 = vpop.f32.mrb[0].mxu0
      %v1813 = vadd.f32 0.0, %v1812
      %v1814 = vpop.f32.mrb[0].mxu0
      %v1815 = vpop.f32.mrb[0].mxu0
      %v1816 = vadd.f32 0.0, %v1815
      %v1817 = vpop.f32.mrb[0].mxu0
      %1818 = vmatprep.mubr.bf16.mxu0 0
      %1819 = vmatmul.mubr.bf16.gmra.mrb[0].mxu0 %v998
      %v1820 = vpop.f32.mrb[0].mxu0
      %v1821 = vadd.f32 0.0, %v1820
      %v1822 = vpop.f32.mrb[0].mxu0
      %v1823 = vpop.f32.mrb[0].mxu0
      %v1824 = vadd.f32 0.0, %v1823
      %v1825 = vpop.f32.mrb[0].mxu0
      %1826 = vmatprep.mubr.bf16.mxu0 0
      %1827 = vmatmul.mubr.bf16.gmra.mrb[0].mxu0 %v1001
      %v1828 = vpop.f32.mrb[0].mxu0
      %v1829 = vadd.f32 0.0, %v1828
      %v1830 = vpop.f32.mrb[0].mxu0
      %v1831 = vpop.f32.mrb[0].mxu0
      %v1832 = vadd.f32 0.0, %v1831
      %v1833 = vpop.f32.mrb[0].mxu0
      %1834 = vmatprep.mubr.bf16.mxu0 0
      %1835 = vmatmul.mubr.bf16.gmra.mrb[0].mxu0 %v1004
      %v1836 = vpop.f32.mrb[0].mxu0
      %v1837 = vadd.f32 0.0, %v1836
      %v1838 = vpop.f32.mrb[0].mxu0
      %v1839 = vpop.f32.mrb[0].mxu0
      %v1840 = vadd.f32 0.0, %v1839
      %v1841 = vpop.f32.mrb[0].mxu0
      %1842 = vmatprep.mubr.bf16.mxu0 0
      %1843 = vmatmul.mubr.bf16.gmra.mrb[0].mxu0 %v1007
      %v1844 = vpop.f32.mrb[0].mxu0
      %v1845 = vadd.f32 0.0, %v1844
      %v1846 = vpop.f32.mrb[0].mxu0
      %v1847 = vpop.f32.mrb[0].mxu0
      %v1848 = vadd.f32 0.0, %v1847
      %v1849 = vpop.f32.mrb[0].mxu0
      %1850 = vmatprep.mubr.bf16.mxu0 0
      %1851 = vmatmul.mubr.bf16.gmra.mrb[0].mxu0 %v1386
      %v1852 = vpop.f32.mrb[0].mxu0
      %v1853 = vadd.f32 0.0, %v1852
      %v1854 = vpop.f32.mrb[0].mxu0
      %v1855 = vpop.f32.mrb[0].mxu0
      %v1856 = vadd.f32 0.0, %v1855
      %v1857 = vpop.f32.mrb[0].mxu0
      %1858 = vmatprep.mubr.bf16.mxu0 0
      %1859 = vmatmul.mubr.bf16.gmra.mrb[0].mxu0 %v1765
      %v1860 = vpop.f32.mrb[0].mxu0
      %v1861 = vadd.f32 0.0, %v1860
      %v1862 = vpop.f32.mrb[0].mxu0
      %v1863 = vpop.f32.mrb[0].mxu0
      %v1864 = vadd.f32 0.0, %v1863
      %v1865 = vpop.f32.mrb[0].mxu0
      %1866 = vdwg.mxu0
      %v1867 = vadd.f32 %v1741, %v1805
      %v1868 = vadd.f32 %v1742, %v1808
      %v1869 = vadd.f32 %v1743, %v1813
      %v1870 = vadd.f32 %v1744, %v1816
      %v1871 = vadd.f32 %v1745, %v1821
      %v1872 = vadd.f32 %v1746, %v1824
      %v1873 = vadd.f32 %v1747, %v1829
      %v1874 = vadd.f32 %v1748, %v1832
      %v1875 = vadd.f32 %v1749, %v1837
      %v1876 = vadd.f32 %v1750, %v1840
      %v1877 = vadd.f32 %v1751, %v1845
      %v1878 = vadd.f32 %v1752, %v1848
      %v1879 = vadd.f32 %v1753, %v1853
      %v1880 = vadd.f32 %v1754, %v1856
      %v1881 = vadd.f32 %v1755, %v1861
      %v1882 = vadd.f32 %v1756, %v1864
      %1883 = vst.msk [vmem:[%s261] sm:$0xff] %vm700, %v1867
      %1884 = vst.msk [vmem:[%s261 + $0x8] sm:$0xff] %vm700, %v1868
      %1885 = vst.msk [vmem:[%s261 + $0x10] sm:$0xff] %vm700, %v1869
      %1886 = vst.msk [vmem:[%s261 + $0x18] sm:$0xff] %vm700, %v1870
      %1887 = vst.msk [vmem:[%s261 + $0x20] sm:$0xff] %vm700, %v1871
      %1888 = vst.msk [vmem:[%s261 + $0x28] sm:$0xff] %vm700, %v1872
      %1889 = vst.msk [vmem:[%s261 + $0x30] sm:$0xff] %vm700, %v1873
      %1890 = vst.msk [vmem:[%s261 + $0x38] sm:$0xff] %vm700, %v1874
      %1891 = vst.msk [vmem:[%s261 + $0x40] sm:$0xff] %vm700, %v1875
      %1892 = vst.msk [vmem:[%s261 + $0x48] sm:$0xff] %vm700, %v1876
      %1893 = vst.msk [vmem:[%s261 + $0x50] sm:$0xff] %vm700, %v1877
      %1894 = vst.msk [vmem:[%s261 + $0x58] sm:$0xff] %vm700, %v1878
      %1895 = vst.msk [vmem:[%s261 + $0x60] sm:$0xff] %vm700, %v1879
      %1896 = vst.msk [vmem:[%s261 + $0x68] sm:$0xff] %vm700, %v1880
      %1897 = vst.msk [vmem:[%s261 + $0x70] sm:$0xff] %vm700, %v1881
      %1898 = vst.msk [vmem:[%s261 + $0x78] sm:$0xff] %vm700, %v1882
      %v1899 = vsel %vm700, %v1867, 0.0
      %v1900 = vsel %vm700, %v1868, 0.0
      %v1901 = vadd.f32 %v1899, %v1900
      %v1902 = vsel %vm700, %v1869, 0.0
      %v1903 = vadd.f32 %v1901, %v1902
      %v1904 = vsel %vm700, %v1870, 0.0
      %v1905 = vadd.f32 %v1903, %v1904
      %v1906 = vsel %vm700, %v1871, 0.0
      %v1907 = vadd.f32 %v1905, %v1906
      %v1908 = vsel %vm700, %v1872, 0.0
      %v1909 = vadd.f32 %v1907, %v1908
      %v1910 = vsel %vm700, %v1873, 0.0
      %v1911 = vadd.f32 %v1909, %v1910
      %v1912 = vsel %vm700, %v1874, 0.0
      %v1913 = vadd.f32 %v1911, %v1912
      %v1914 = vsel %vm700, %v1875, 0.0
      %v1915 = vadd.f32 %v1913, %v1914
      %v1916 = vsel %vm700, %v1876, 0.0
      %v1917 = vadd.f32 %v1915, %v1916
      %v1918 = vsel %vm700, %v1877, 0.0
      %v1919 = vadd.f32 %v1917, %v1918
      %v1920 = vsel %vm700, %v1878, 0.0
      %v1921 = vadd.f32 %v1919, %v1920
      %v1922 = vsel %vm700, %v1879, 0.0
      %v1923 = vadd.f32 %v1921, %v1922
      %v1924 = vsel %vm700, %v1880, 0.0
      %v1925 = vadd.f32 %v1923, %v1924
      %v1926 = vsel %vm700, %v1881, 0.0
      %v1927 = vadd.f32 %v1925, %v1926
      %v1928 = vsel %vm700, %v1882, 0.0
      %v1929 = vadd.f32 %v1927, %v1928
      %v1930 = vrot.slane %v1929, 4
      %v1931 = vadd.f32 %v1929, %v1930
      %v1932 = vrot.slane %v1931, 2
      %v1933 = vadd.f32 %v1931, %v1932
      %v1934 = vrot.slane %v1933, 1
      %v1935 = vadd.f32 %v1933, %v1934
      %vm1936 = vcmask 24576
      %1937 = vst.msk [vmem:[%s270] sm:$0x1] %vm1936, %v1935
      %v1938 = vmul.f32 %v1867, %v1867
      %v1939 = vmul.f32 %v1868, %v1868
      %v1940 = vmul.f32 %v1869, %v1869
      %v1941 = vmul.f32 %v1870, %v1870
      %v1942 = vmul.f32 %v1871, %v1871
      %v1943 = vmul.f32 %v1872, %v1872
      %v1944 = vmul.f32 %v1873, %v1873
      %v1945 = vmul.f32 %v1874, %v1874
      %v1946 = vmul.f32 %v1875, %v1875
      %v1947 = vmul.f32 %v1876, %v1876
      %v1948 = vmul.f32 %v1877, %v1877
      %v1949 = vmul.f32 %v1878, %v1878
      %v1950 = vmul.f32 %v1879, %v1879
      %v1951 = vmul.f32 %v1880, %v1880
      %v1952 = vmul.f32 %v1881, %v1881
      %v1953 = vmul.f32 %v1882, %v1882
      %v1954 = vsel %vm700, %v1938, 0.0
      %v1955 = vsel %vm700, %v1939, 0.0
      %v1956 = vadd.f32 %v1954, %v1955
      %v1957 = vsel %vm700, %v1940, 0.0
      %v1958 = vadd.f32 %v1956, %v1957
      %v1959 = vsel %vm700, %v1941, 0.0
      %v1960 = vadd.f32 %v1958, %v1959
      %v1961 = vsel %vm700, %v1942, 0.0
      %v1962 = vadd.f32 %v1960, %v1961
      %v1963 = vsel %vm700, %v1943, 0.0
      %v1964 = vadd.f32 %v1962, %v1963
      %v1965 = vsel %vm700, %v1944, 0.0
      %v1966 = vadd.f32 %v1964, %v1965
      %v1967 = vsel %vm700, %v1945, 0.0
      %v1968 = vadd.f32 %v1966, %v1967
      %v1969 = vsel %vm700, %v1946, 0.0
      %v1970 = vadd.f32 %v1968, %v1969
      %v1971 = vsel %vm700, %v1947, 0.0
      %v1972 = vadd.f32 %v1970, %v1971
      %v1973 = vsel %vm700, %v1948, 0.0
      %v1974 = vadd.f32 %v1972, %v1973
      %v1975 = vsel %vm700, %v1949, 0.0
      %v1976 = vadd.f32 %v1974, %v1975
      %v1977 = vsel %vm700, %v1950, 0.0
      %v1978 = vadd.f32 %v1976, %v1977
      %v1979 = vsel %vm700, %v1951, 0.0
      %v1980 = vadd.f32 %v1978, %v1979
      %v1981 = vsel %vm700, %v1952, 0.0
      %v1982 = vadd.f32 %v1980, %v1981
      %v1983 = vsel %vm700, %v1953, 0.0
      %v1984 = vadd.f32 %v1982, %v1983
      %v1985 = vrot.slane %v1984, 4
      %v1986 = vadd.f32 %v1984, %v1985
      %v1987 = vrot.slane %v1986, 2
      %v1988 = vadd.f32 %v1986, %v1987
      %v1989 = vrot.slane %v1988, 1
      %v1990 = vadd.f32 %v1988, %v1989
      %1991 = vst.msk [vmem:[%s270 + $0x1] sm:$0x1] %vm1936, %v1990
      %s1992 = smul.u32 8, %s22
      %p1993 = scmp.lt.s32.totalorder %s21, 1
      %s1994 = scalar_select %p1993, %s21, 1
      %p1995 = scmp.lt.s32.totalorder %s1992, 15
      %s1996 = scalar_select %p1995, %s1992, 15
      %s1997 = smul.addr %s1996, 2
      %s1998 = smul.addr %s1994, 32
      %s1999 = sadd.s32 %s1997, %s1998
      %s2000 = smul.addr %s1999, 8
      %s2001 = scalar_lea.vmem %s4, %s2000
      %p2002 = scmp.lt.s32.totalorder %s21, 1
      %s2003 = scalar_select %p2002, %s21, 1
      %p2004 = scmp.lt.s32.totalorder %s22, 1
      %s2005 = scalar_select %p2004, %s22, 1
      %s2006 = smul.addr %s2003, 2
      %s2007 = sadd.s32 %s2005, %s2006
      %s2008 = smul.addr %s2007, 2
      %s2009 = scalar_lea.vmem %s5, %s2008
      // Predicated region
      $region37: #{res_block.4} parent=35 // pred_check
        %p2010 = pneg %p138
      $region38: #{res_block.4} parent=35 // pred_check_branch
        %2012 = sbr.rel (%p2010) target = $region40
      $region39: #{res_block.4} parent=35 // pred_region
        %s2013 = smul.u32 8, %s22
      $region40: #{res_block.4} parent=35 // pred_fallthru
        _
      // Predicated region
      $region41: #{res_block.4} parent=35 // pred_check
        %p2014 = pneg %p166
      $region42: #{res_block.4} parent=35 // pred_check_branch
        %2016 = sbr.rel (%p2014) target = $region44
      $region43: #{res_block.4} parent=35 // pred_region
        _
      $region44: #{res_block.4} parent=35 // pred_fallthru
        _
    $region36: #{res_block.4} parent=5 // pred_fallthru
      _
    %p2017 = scmp.le.s32.totalorder 2, %s12
    // Predicated region
    $region45: #{res_block.4} parent=5 // pred_check
      %p2018 = pneg %p2017
    $region46: #{res_block.4} parent=5 // pred_check_branch
      %2020 = sbr.rel (%p2018) target = $region48
    $region47: #{res_block.4} parent=5 // pred_region
      %s2021 = ssub.s32 %s12, 2
      // Predicated region
      $region49: #{res_block.4} parent=47 // pred_check
        %p2022 = pneg %p144
      $region50: #{res_block.4} parent=47 // pred_check_branch
        %2024 = sbr.rel (%p2022) target = $region52
      $region51: #{res_block.4} parent=47 // pred_region
        %s2025 = smul.u32 8, %s24
        %p2026 = scmp.lt.s32.totalorder %s23, 1
        %s2027 = scalar_select %p2026, %s23, 1
        %p2028 = scmp.lt.s32.totalorder %s2025, 15
        %s2029 = scalar_select %p2028, %s2025, 15
        %s2030 = smul.addr %s2029, 2
        %s2031 = smul.addr %s2027, 32
        %s2032 = sadd.s32 %s2030, %s2031
        %s2033 = smul.addr %s2032, 8
        %s2034 = scalar_lea.vmem %s4, %s2033
      $region52: #{res_block.4} parent=47 // pred_fallthru
        _
      // Predicated region
      $region53: #{res_block.4} parent=47 // pred_check
        %p2035 = pneg %p172
      $region54: #{res_block.4} parent=47 // pred_check_branch
        %2037 = sbr.rel (%p2035) target = $region56
      $region55: #{res_block.4} parent=47 // pred_region
        %p2038 = scmp.lt.s32.totalorder %s23, 1
        %s2039 = scalar_select %p2038, %s23, 1
        %p2040 = scmp.lt.s32.totalorder %s24, 1
        %s2041 = scalar_select %p2040, %s24, 1
        %s2042 = smul.addr %s2039, 2
        %s2043 = sadd.s32 %s2041, %s2042
        %s2044 = smul.addr %s2043, 2
        %s2045 = scalar_lea.vmem %s5, %s2044
      $region56: #{res_block.4} parent=47 // pred_fallthru
        _
    $region48: #{res_block.4} parent=5 // pred_fallthru
      _
  $region6: #{res_block.4} parent=0 // loop_footer
    %s16 = sadd.s32 1, %s12
  $region7: #{res_block.4} parent=0 // loop_footer_branch
    %11 = sbr.rel target = $region3
  $region8: #{res_block.4} parent=0 // loop_exit
    _

// kernel: res_block.3
$region0: #{res_block.3}
  #allocation0 [shape = 'u32[]', space=smem, size = 0x4, offset = 0x4, fixed_abs, tag = 'smem constant byte address 0x4 - core index']
  #allocation1 [shape = 'u32[144,128]{1,0:T(1,128)}', space=vmem, size = 0x12000, scoped, tag = 'internal scratch']
  %s0 = inlined_call_operand.vmem [shape: bf16[2,18,18,4], index: 0, kind: input, shape index: {}]
  %s1 = inlined_call_operand.vmem [shape: bf16[9,4,4], index: 1, kind: input, shape index: {}]
  %s2 = inlined_call_operand.vmem [shape: bf16[2,16,16,4], index: 2, kind: output, shape index: {0}]
  %s3 = inlined_call_operand.vmem [shape: f32[2,2,2,4], index: 3, kind: output, shape index: {1}]
  %4 = xla_tuple %s2, %s3
  %s5 = sld [smem:[#allocation0]]
  $region49: #{res_block.3} parent=0
    _
  %s7 = ssub.s32 1, %s5
  %s8 = scalar_select 0, %s7, %s5
  loop: start=0, step=1, limit=6
  $region2: #{res_block.3} parent=0 // loop_pre_header
    _
  $region3: #{res_block.3} parent=0 // loop_header
    %s10 = sphi 0, %s14
    %p11 = scmp.ge.s32.totalorder %s10, 6
    %s17 = sphi 0, %s29
    %s18 = sphi 0, %s25
    %s19 = sphi 0, %s17
    %s20 = sphi 0, %s18
    %s21 = sphi 0, %s19
    %s22 = sphi 0, %s20
    %s32 = sphi 0, %s34
    %s35 = sphi 0, %s32
    %s36 = sphi 0, %s35
    %s52 = sphi 0, %s36
    %s56 = sphi 0, %s56
    %s58 = sphi 0, %s56
    %s59 = sphi 0, %s58
    %s73 = sphi 0, %s59
    %s81 = sphi 0, %s83
    %s84 = sphi 0, %s81
    %s85 = sphi 0, %s84
    %s101 = sphi 0, %s85
    %s109 = sphi 0, %s111
    %s112 = sphi 0, %s109
    %s113 = sphi 0, %s112
    %s129 = sphi 0, %s113
  $region4: #{res_block.3} parent=0 // loop_header_branch
    %13 = sbr.rel (%p11) target = $region8
  $region5: #{res_block.3} parent=0 // loop_body
    %s15 = ssub.s32 %s10, 1
    %s16 = ssub.s32 %s10, 2
    %s23 = sadd.s32 1, %s18
    %p24 = scmp.ge.s32.totalorder %s23, 2
    %s25 = scalar_select %p24, 0, %s23
    %s26 = sadd.s32 1, %s17
    %s27 = scalar_select %p24, %s26, %s17
    %p28 = scmp.ge.s32.totalorder %s27, 2
    %s29 = scalar_select %p28, 0, %s27
    %s30 = ssub.s32 %s17, %s29
    %p31 = scmp.eq.s32.totalorder %s30, 0
    %s33 = sadd.s32 %s32, 1
    %s34 = scalar_select %p31, %s32, %s33
    %p37 = pneg %p31
    %p38 = scmp.eq.s32.totalorder %s10, 3
    %p39 = por %p37, %p38
    %p40 = scmp.ne.s32.totalorder %s32, %s35
    %p41 = scmp.eq.s32.totalorder %s10, 0
    %p42 = por %p40, %p41
    %p43 = scmp.ne.s32.totalorder %s32, %s35
    %p44 = scmp.eq.s32.totalorder %s15, 3
    %p45 = por %p43, %p44
    %p46 = scmp.ne.s32.totalorder %s35, %s36
    %p47 = scmp.eq.s32.totalorder %s15, 0
    %p48 = por %p46, %p47
    %p49 = scmp.ne.s32.totalorder %s35, %s36
    %p50 = scmp.eq.s32.totalorder %s16, 3
    %p51 = por %p49, %p50
    %p53 = scmp.ne.s32.totalorder %s36, %s52
    %p54 = scmp.eq.s32.totalorder %s16, 0
    %p55 = por %p53, %p54
    %s57 = sadd.s32 %s56, 1
    %p60 = scmp.eq.s32.totalorder %s10, 3
    %p61 = scmp.ne.s32.totalorder %s56, %s58
    %p62 = scmp.eq.s32.totalorder %s10, 0
    %p63 = por %p61, %p62
    %p64 = scmp.ne.s32.totalorder %s56, %s58
    %p65 = scmp.eq.s32.totalorder %s15, 3
    %p66 = por %p64, %p65
    %p67 = scmp.ne.s32.totalorder %s58, %s59
    %p68 = scmp.eq.s32.totalorder %s15, 0
    %p69 = por %p67, %p68
    %p70 = scmp.ne.s32.totalorder %s58, %s59
    %p71 = scmp.eq.s32.totalorder %s16, 3
    %p72 = por %p70, %p71
    %p74 = scmp.ne.s32.totalorder %s59, %s73
    %p75 = scmp.eq.s32.totalorder %s16, 0
    %p76 = por %p74, %p75
    %s77 = ssub.s32 %s17, %s29
    %s78 = ssub.s32 %s18, %s25
    %s79 = sor.u32 %s77, %s78
    %p80 = scmp.eq.s32.totalorder %s79, 0
    %s82 = sadd.s32 %s81, 1
    %s83 = scalar_select %p80, %s81, %s82
    %p86 = pneg %p80
    %p87 = scmp.eq.s32.totalorder %s10, 3
    %p88 = por %p86, %p87
    %p89 = scmp.ne.s32.totalorder %s81, %s84
    %p90 = scmp.eq.s32.totalorder %s10, 0
    %p91 = por %p89, %p90
    %p92 = scmp.ne.s32.totalorder %s81, %s84
    %p93 = scmp.eq.s32.totalorder %s15, 3
    %p94 = por %p92, %p93
    %p95 = scmp.ne.s32.totalorder %s84, %s85
    %p96 = scmp.eq.s32.totalorder %s15, 0
    %p97 = por %p95, %p96
    %p98 = scmp.ne.s32.totalorder %s84, %s85
    %p99 = scmp.eq.s32.totalorder %s16, 3
    %p100 = por %p98, %p99
    %p102 = scmp.ne.s32.totalorder %s85, %s101
    %p103 = scmp.eq.s32.totalorder %s16, 0
    %p104 = por %p102, %p103
    %s105 = ssub.s32 %s17, %s29
    %s106 = ssub.s32 %s18, %s25
    %s107 = sor.u32 %s105, %s106
    %p108 = scmp.eq.s32.totalorder %s107, 0
    %s110 = sadd.s32 %s109, 1
    %s111 = scalar_select %p108, %s109, %s110
    %p114 = pneg %p108
    %p115 = scmp.eq.s32.totalorder %s10, 3
    %p116 = por %p114, %p115
    %p117 = scmp.ne.s32.totalorder %s109, %s112
    %p118 = scmp.eq.s32.totalorder %s10, 0
    %p119 = por %p117, %p118
    %p120 = scmp.ne.s32.totalorder %s109, %s112
    %p121 = scmp.eq.s32.totalorder %s15, 3
    %p122 = por %p120, %p121
    %p123 = scmp.ne.s32.totalorder %s112, %s113
    %p124 = scmp.eq.s32.totalorder %s15, 0
    %p125 = por %p123, %p124
    %p126 = scmp.ne.s32.totalorder %s112, %s113
    %p127 = scmp.eq.s32.totalorder %s16, 3
    %p128 = por %p126, %p127
    %p130 = scmp.ne.s32.totalorder %s113, %s129
    %p131 = scmp.eq.s32.totalorder %s16, 0
    %p132 = por %p130, %p131
    %p133 = scmp.le.s32.totalorder 1, %s10
    %p134 = scmp.lt.s32.totalorder %s10, 5
    %p135 = pnand %p133, %p134
    %p136 = pneg %p135
    // Predicated region
    $region9: #{res_block.3} parent=5 // pred_check
      _
    $region10: #{res_block.3} parent=5 // pred_check_branch
      %138 = sbr.rel (%p135) target = $region12
    $region11: #{res_block.3} parent=5 // pred_region
      %s139 = ssub.s32 %s10, 1
      // Predicated region
      $region13: #{res_block.3} parent=11 // pred_check
        %p140 = pneg %p69
      $region14: #{res_block.3} parent=11 // pred_check_branch
        %142 = sbr.rel (%p140) target = $region16
      $region15: #{res_block.3} parent=11 // pred_region
        _
      $region16: #{res_block.3} parent=11 // pred_fallthru
        _
    $region12: #{res_block.3} parent=5 // pred_fallthru
      _
    %p143 = scmp.lt.s32.totalorder %s10, 4
    // Predicated region
    $region17: #{res_block.3} parent=5 // pred_check
      %p144 = pneg %p143
    $region18: #{res_block.3} parent=5 // pred_check_branch
      %146 = sbr.rel (%p144) target = $region20
    $region19: #{res_block.3} parent=5 // pred_region
      // Predicated region
      $region21: #{res_block.3} parent=19 // pred_check
        %p147 = pneg %p42
      $region22: #{res_block.3} parent=19 // pred_check_branch
        %149 = sbr.rel (%p147) target = $region24
      $region23: #{res_block.3} parent=19 // pred_region
        %p150 = scmp.lt.s32.totalorder %s17, 1
        %s151 = scalar_select %p150, %s17, 1
        %s152 = smul.addr %s151, 54
        %s153 = smul.addr %s152, 4
        %s154 = scalar_lea.vmem %s0, %s153
      $region24: #{res_block.3} parent=19 // pred_fallthru
        _
    $region20: #{res_block.3} parent=5 // pred_fallthru
      _
    %p155 = scmp.le.s32.totalorder 1, %s10
    %p156 = scmp.lt.s32.totalorder %s10, 5
    %p157 = pnand %p155, %p156
    %p158 = pneg %p157
    // Predicated region
    $region25: #{res_block.3} parent=5 // pred_check
      _
    $region26: #{res_block.3} parent=5 // pred_check_branch
      %160 = sbr.rel (%p157) target = $region28
    $region27: #{res_block.3} parent=5 // pred_region
      %s161 = ssub.s32 %s10, 1
      %p162 = scmp.lt.s32.totalorder %s19, 1
      %s163 = scalar_select %p162, %s19, 1
      %s164 = smul.addr %s163, 54
      %s165 = smul.addr %s164, 4
      %s166 = scalar_lea.vmem %s0, %s165
      %p167 = pneg %p48
      %p168 = pneg %p45
      %p169 = pneg %p69
      %p170 = pneg %p66
      %p171 = pneg %p97
      %p172 = pneg %p94
      %s173 = smul.u32 8, %s20
      %p174 = scmp.lt.s32.totalorder %s19, 1
      %s175 = scalar_select %p174, %s19, 1
      %p176 = scmp.lt.s32.totalorder %s173, 15
      %s177 = scalar_select %p176, %s173, 15
      %s178 = smul.addr %s177, 2
      %s179 = smul.addr %s175, 32
      %s180 = sadd.s32 %s178, %s179
      %s181 = smul.addr %s180, 4
      %s182 = scalar_lea.vmem %s2, %s181
      %p183 = pneg %p125
      %p184 = pneg %p122
      %p185 = scmp.lt.s32.totalorder %s19, 1
      %s186 = scalar_select %p185, %s19, 1
      %p187 = scmp.lt.s32.totalorder %s20, 1
      %s188 = scalar_select %p187, %s20, 1
      %s189 = smul.addr %s186, 2
      %s190 = sadd.s32 %s188, %s189
      %s191 = smul.addr %s190, 2
      %s192 = scalar_lea.vmem %s3, %s191
      %p193 = scmp.lt.s32.totalorder %s19, 1
      %s194 = scalar_select %p193, %s19, 1
      %s195 = smul.addr %s194, 54
      %s196 = smul.addr %s195, 4
      %s197 = scalar_lea.vmem %s0, %s196
      %s198 = smul.u32 8, %s20
      %p199 = scmp.lt.s32.totalorder %s19, 1
      %s200 = scalar_select %p199, %s19, 1
      %p201 = scmp.lt.s32.totalorder %s198, 15
      %s202 = scalar_select %p201, %s198, 15
      %s203 = smul.addr %s202, 2
      %s204 = smul.addr %s200, 32
      %s205 = sadd.s32 %s203, %s204
      %s206 = smul.addr %s205, 4
      %s207 = scalar_lea.vmem %s2, %s206
      %s208 = smul.u32 8, %s20
      %p209 = scmp.lt.s32.totalorder %s19, 1
      %s210 = scalar_select %p209, %s19, 1
      %p211 = scmp.lt.s32.totalorder %s20, 1
      %s212 = scalar_select %p211, %s20, 1
      %s213 = smul.addr %s210, 2
      %s214 = sadd.s32 %s212, %s213
      %s215 = smul.addr %s214, 2
      %s216 = scalar_lea.vmem %s3, %s215
      %s218 = smul.u32 %s20, 8
      %s219 = smul.u32 %s218, 3
      %s220 = smul.addr %s219, 4
      %s221 = scalar_lea.vmem %s197, %s220
      %v222 = vld [vmem:[%s221] sm:$0xf]
      %v223 = vld [vmem:[%s221 + $0x4] sm:$0xf]
      %v224 = vld [vmem:[%s221 + $0x8] sm:$0x1]
      %v225 = vld [vmem:[%s221 + $0xc] sm:$0xf]
      %v226 = vld [vmem:[%s221 + $0x10] sm:$0xf]
      %v227 = vld [vmem:[%s221 + $0x14] sm:$0x1]
      %v228 = vld [vmem:[%s221 + $0x18] sm:$0xf]
      %v229 = vld [vmem:[%s221 + $0x1c] sm:$0xf]
      %v230 = vld [vmem:[%s221 + $0x20] sm:$0x1]
      %v231 = vld [vmem:[%s221 + $0x24] sm:$0xf]
      %v232 = vld [vmem:[%s221 + $0x28] sm:$0xf]
      %v233 = vld [vmem:[%s221 + $0x2c] sm:$0x1]
      %v234 = vld [vmem:[%s221 + $0x30] sm:$0xf]
      %v235 = vld [vmem:[%s221 + $0x34] sm:$0xf]
      %v236 = vld [vmem:[%s221 + $0x38] sm:$0x1]
      %v237 = vld [vmem:[%s221 + $0x3c] sm:$0xf]
      %v238 = vld [vmem:[%s221 + $0x40] sm:$0xf]
      %v239 = vld [vmem:[%s221 + $0x44] sm:$0x1]
      %v240 = vld [vmem:[%s221 + $0x48] sm:$0xf]
      %v241 = vld [vmem:[%s221 + $0x4c] sm:$0xf]
      %v242 = vld [vmem:[%s221 + $0x50] sm:$0x1]
      %v243 = vld [vmem:[%s221 + $0x54] sm:$0xf]
      %v244 = vld [vmem:[%s221 + $0x58] sm:$0xf]
      %v245 = vld [vmem:[%s221 + $0x5c] sm:$0x1]
      %v246 = vld [vmem:[%s221 + $0x60] sm:$0xf]
      %v247 = vld [vmem:[%s221 + $0x64] sm:$0xf]
      %v248 = vld [vmem:[%s221 + $0x68] sm:$0x1]
      %v249 = vld [vmem:[%s221 + $0x6c] sm:$0xf]
      %v250 = vld [vmem:[%s221 + $0x70] sm:$0xf]
      %v251 = vld [vmem:[%s221 + $0x74] sm:$0x1]
      %v252 = vld [vmem:[%s1] sm:$0x3]
      %vm253 = vsmask.f32 3328
      %vm254 = vsmask.f32 7440
      %vm255 = vmor %vm253, %vm254
      %v257 = vshrl.u32 %v222, 16
      %v259 = vrot.slane %v257, 4
      %v260 = vshll.u32 %v222, 16
      %v262 = vrot.slane %v260, 5
      %v263 = vor.u32 %v259, %v262
      %v264 = vrot.slane %v263, 4
      %v266 = vshll.u32 %v223, 16
      %v268 = vrot.slane %v266, 5
      %v269 = vsel %vm255, %v264, %v268
      %v270 = vshrl.u32 %v223, 16
      %v272 = vrot.slane %v270, 4
      %v273 = vor.u32 %v272, %v268
      %v274 = vrot.slane %v273, 4
      %v276 = vshll.u32 %v224, 16
      %v278 = vrot.slane %v276, 5
      %v279 = vsel %vm255, %v274, %v278
      %v281 = vshrl.u32 %v225, 16
      %v283 = vrot.slane %v281, 4
      %v284 = vshll.u32 %v225, 16
      %v286 = vrot.slane %v284, 5
      %v287 = vor.u32 %v283, %v286
      %v288 = vrot.slane %v287, 4
      %v290 = vshll.u32 %v226, 16
      %v292 = vrot.slane %v290, 5
      %v293 = vsel %vm255, %v288, %v292
      %v294 = vshrl.u32 %v226, 16
      %v296 = vrot.slane %v294, 4
      %v297 = vor.u32 %v296, %v292
      %v298 = vrot.slane %v297, 4
      %v300 = vshll.u32 %v227, 16
      %v302 = vrot.slane %v300, 5
      %v303 = vsel %vm255, %v298, %v302
      %v305 = vshrl.u32 %v228, 16
      %v307 = vrot.slane %v305, 4
      %v308 = vshll.u32 %v228, 16
      %v310 = vrot.slane %v308, 5
      %v311 = vor.u32 %v307, %v310
      %v312 = vrot.slane %v311, 4
      %v314 = vshll.u32 %v229, 16
      %v316 = vrot.slane %v314, 5
      %v317 = vsel %vm255, %v312, %v316
      %v318 = vshrl.u32 %v229, 16
      %v320 = vrot.slane %v318, 4
      %v321 = vor.u32 %v320, %v316
      %v322 = vrot.slane %v321, 4
      %v324 = vshll.u32 %v230, 16
      %v326 = vrot.slane %v324, 5
      %v327 = vsel %vm255, %v322, %v326
      %v329 = vshrl.u32 %v231, 16
      %v331 = vrot.slane %v329, 4
      %v332 = vshll.u32 %v231, 16
      %v334 = vrot.slane %v332, 5
      %v335 = vor.u32 %v331, %v334
      %v336 = vrot.slane %v335, 4
      %v338 = vshll.u32 %v232, 16
      %v340 = vrot.slane %v338, 5
      %v341 = vsel %vm255, %v336, %v340
      %v342 = vshrl.u32 %v232, 16
      %v344 = vrot.slane %v342, 4
      %v345 = vor.u32 %v344, %v340
      %v346 = vrot.slane %v345, 4
      %v348 = vshll.u32 %v233, 16
      %v350 = vrot.slane %v348, 5
      %v351 = vsel %vm255, %v346, %v350
      %v353 = vshrl.u32 %v234, 16
      %v355 = vrot.slane %v353, 4
      %v356 = vshll.u32 %v234, 16
      %v358 = vrot.slane %v356, 5
      %v359 = vor.u32 %v355, %v358
      %v360 = vrot.slane %v359, 4
      %v362 = vshll.u32 %v235, 16
      %v364 = vrot.slane %v362, 5
      %v365 = vsel %vm255, %v360, %v364
      %v366 = vshrl.u32 %v235, 16
      %v368 = vrot.slane %v366, 4
      %v369 = vor.u32 %v368, %v364
      %v370 = vrot.slane %v369, 4
      %v372 = vshll.u32 %v236, 16
      %v374 = vrot.slane %v372, 5
      %v375 = vsel %vm255, %v370, %v374
      %v377 = vshrl.u32 %v237, 16
      %v379 = vrot.slane %v377, 4
      %v380 = vshll.u32 %v237, 16
      %v382 = vrot.slane %v380, 5
      %v383 = vor.u32 %v379, %v382
      %v384 = vrot.slane %v383, 4
      %v386 = vshll.u32 %v238, 16
      %v388 = vrot.slane %v386, 5
      %v389 = vsel %vm255, %v384, %v388
      %v390 = vshrl.u32 %v238, 16
      %v392 = vrot.slane %v390, 4
      %v393 = vor.u32 %v392, %v388
      %v394 = vrot.slane %v393, 4
      %v396 = vshll.u32 %v239, 16
      %v398 = vrot.slane %v396, 5
      %v399 = vsel %vm255, %v394, %v398
      %v401 = vshrl.u32 %v240, 16
      %v403 = vrot.slane %v401, 4
      %v404 = vshll.u32 %v240, 16
      %v406 = vrot.slane %v404, 5
      %v407 = vor.u32 %v403, %v406
      %v408 = vrot.slane %v407, 4
      %v410 = vshll.u32 %v241, 16
      %v412 = vrot.slane %v410, 5
      %v413 = vsel %vm255, %v408, %v412
      %v414 = vshrl.u32 %v241, 16
      %v416 = vrot.slane %v414, 4
      %v417 = vor.u32 %v416, %v412
      %v418 = vrot.slane %v417, 4
      %v420 = vshll.u32 %v242, 16
      %v422 = vrot.slane %v420, 5
      %v423 = vsel %vm255, %v418, %v422
      %v425 = vshrl.u32 %v243, 16
      %v427 = vrot.slane %v425, 4
      %v428 = vshll.u32 %v243, 16
      %v430 = vrot.slane %v428, 5
      %v431 = vor.u32 %v427, %v430
      %v432 = vrot.slane %v431, 4
      %v434 = vshll.u32 %v244, 16
      %v436 = vrot.slane %v434, 5
      %v437 = vsel %vm255, %v432, %v436
      %v438 = vshrl.u32 %v244, 16
      %v440 = vrot.slane %v438, 4
      %v441 = vor.u32 %v440, %v436
      %v442 = vrot.slane %v441, 4
      %v444 = vshll.u32 %v245, 16
      %v446 = vrot.slane %v444, 5
      %v447 = vsel %vm255, %v442, %v446
      %s448 = scalar_lea.vmem %s1, 2
      %v449 = vld [vmem:[%s448] sm:$0x3]
      %v450 = vunpack.c.l.b16 %v269
      %v451 = vunpack.c.l.b16 %v279
      %v452 = vunpack.c.l.b16 %v293
      %v453 = vunpack.c.l.b16 %v303
      %v454 = vunpack.c.l.b16 %v317
      %v455 = vunpack.c.l.b16 %v327
      %v456 = vunpack.c.l.b16 %v341
      %v457 = vunpack.c.l.b16 %v351
      %v458 = vunpack.c.l.b16 %v365
      %v459 = vunpack.c.l.b16 %v375
      %v460 = vunpack.c.l.b16 %v389
      %v461 = vunpack.c.l.b16 %v399
      %v462 = vunpack.c.l.b16 %v413
      %v463 = vunpack.c.l.b16 %v423
      %v464 = vunpack.c.l.b16 %v437
      %v465 = vunpack.c.l.b16 %v447
      %v466 = vpack.c.b16 %v451, %v450
      %v467 = vpack.c.b16 %v453, %v452
      %v468 = vpack.c.b16 %v455, %v454
      %v469 = vpack.c.b16 %v457, %v456
      %v470 = vpack.c.b16 %v459, %v458
      %v471 = vpack.c.b16 %v461, %v460
      %v472 = vpack.c.b16 %v463, %v462
      %v473 = vpack.c.b16 %v465, %v464
      %vm474 = vcmask 31744
      %v476 = vsel %vm474, %v466, 0
      %v479 = vsel %vm474, %v467, 0
      %v482 = vsel %vm474, %v468, 0
      %v485 = vsel %vm474, %v469, 0
      %v488 = vsel %vm474, %v470, 0
      %v491 = vsel %vm474, %v471, 0
      %v494 = vsel %vm474, %v472, 0
      %v497 = vsel %vm474, %v473, 0
      %vm499 = vcmask 1041408
      %v501 = vsel %vm499, %v449, 0
      %503 = vmatprep.subr.bf16.mxu0 0
      %504 = vmatpush1.bf16.msra.mxu0 %v501
      %505 = vmatprep.subr.bf16.mxu0 0
      %506 = vmatpush1.bf16.msra.mxu0 0
      %507 = vmatprep.subr.bf16.mxu0 0
      %508 = vmatpush1.bf16.msra.mxu0 0
      %509 = vmatprep.subr.bf16.mxu0 0
      %510 = vmatpush1.bf16.msra.mxu0 0
      %511 = vmatprep.subr.bf16.mxu0 0
      %512 = vmatpush1.bf16.msra.mxu0 0
      %513 = vmatprep.subr.bf16.mxu0 0
      %514 = vmatpush1.bf16.msra.mxu0 0
      %515 = vmatprep.subr.bf16.mxu0 0
      %516 = vmatpush1.bf16.msra.mxu0 0
      %517 = vmatprep.subr.bf16.mxu0 0
      %518 = vmatpush1.bf16.msra.mxu0 0
      %519 = vmatprep.subr.bf16.mxu0 0
      %520 = vmatpush1.bf16.msra.mxu0 0
      %521 = vmatprep.subr.bf16.mxu0 0
      %522 = vmatpush1.bf16.msra.mxu0 0
      %523 = vmatprep.subr.bf16.mxu0 0
      %524 = vmatpush1.bf16.msra.mxu0 0
      %525 = vmatprep.subr.bf16.mxu0 0
      %526 = vmatpush1.bf16.msra.mxu0 0
      %527 = vmatprep.subr.bf16.mxu0 0
      %528 = vmatpush1.bf16.msra.mxu0 0
      %529 = vmatprep.subr.bf16.mxu0 0
      %530 = vmatpush1.bf16.msra.mxu0 0
      %531 = vmatprep.subr.bf16.mxu0 0
      %532 = vmatpush1.bf16.msra.mxu0 0
      %533 = vmatprep.subr.bf16.mxu0 0
      %534 = vmatpush1.bf16.msra.mxu0 0
      %535 = vmatprep.mubr.bf16.mxu0 0
      %536 = vmatmul.mubr.bf16.gmra.mrb[0].mxu0 %v476
      %v537 = vpop.f32.mrb[0].mxu0
      %v538 = vadd.f32 0.0, %v537
      %v539 = vpop.f32.mrb[0].mxu0
      %v540 = vpop.f32.mrb[0].mxu0
      %v541 = vadd.f32 0.0, %v540
      %v542 = vpop.f32.mrb[0].mxu0
      %543 = vmatprep.mubr.bf16.mxu0 0
      %544 = vmatmul.mubr.bf16.gmra.mrb[0].mxu0 %v479
      %v545 = vpop.f32.mrb[0].mxu0
      %v546 = vadd.f32 0.0, %v545
      %v547 = vpop.f32.mrb[0].mxu0
      %v548 = vpop.f32.mrb[0].mxu0
      %v549 = vadd.f32 0.0, %v548
      %v550 = vpop.f32.mrb[0].mxu0
      %551 = vmatprep.mubr.bf16.mxu0 0
      %552 = vmatmul.mubr.bf16.gmra.mrb[0].mxu0 %v482
      %v553 = vpop.f32.mrb[0].mxu0
      %v554 = vadd.f32 0.0, %v553
      %v555 = vpop.f32.mrb[0].mxu0
      %v556 = vpop.f32.mrb[0].mxu0
      %v557 = vadd.f32 0.0, %v556
      %v558 = vpop.f32.mrb[0].mxu0
      %559 = vmatprep.mubr.bf16.mxu0 0
      %560 = vmatmul.mubr.bf16.gmra.mrb[0].mxu0 %v485
      %v561 = vpop.f32.mrb[0].mxu0
      %v562 = vadd.f32 0.0, %v561
      %v563 = vpop.f32.mrb[0].mxu0
      %v564 = vpop.f32.mrb[0].mxu0
      %v565 = vadd.f32 0.0, %v564
      %v566 = vpop.f32.mrb[0].mxu0
      %567 = vmatprep.mubr.bf16.mxu0 0
      %568 = vmatmul.mubr.bf16.gmra.mrb[0].mxu0 %v488
      %v569 = vpop.f32.mrb[0].mxu0
      %v570 = vadd.f32 0.0, %v569
      %v571 = vpop.f32.mrb[0].mxu0
      %v572 = vpop.f32.mrb[0].mxu0
      %v573 = vadd.f32 0.0, %v572
      %v574 = vpop.f32.mrb[0].mxu0
      %575 = vmatprep.mubr.bf16.mxu0 0
      %576 = vmatmul.mubr.bf16.gmra.mrb[0].mxu0 %v491
      %v577 = vpop.f32.mrb[0].mxu0
      %v578 = vadd.f32 0.0, %v577
      %v579 = vpop.f32.mrb[0].mxu0
      %v580 = vpop.f32.mrb[0].mxu0
      %v581 = vadd.f32 0.0, %v580
      %v582 = vpop.f32.mrb[0].mxu0
      %583 = vmatprep.mubr.bf16.mxu0 0
      %584 = vmatmul.mubr.bf16.gmra.mrb[0].mxu0 %v494
      %v585 = vpop.f32.mrb[0].mxu0
      %v586 = vadd.f32 0.0, %v585
      %v587 = vpop.f32.mrb[0].mxu0
      %v588 = vpop.f32.mrb[0].mxu0
      %v589 = vadd.f32 0.0, %v588
      %v590 = vpop.f32.mrb[0].mxu0
      %591 = vmatprep.mubr.bf16.mxu0 0
      %592 = vmatmul.mubr.bf16.gmra.mrb[0].mxu0 %v497
      %v593 = vpop.f32.mrb[0].mxu0
      %v594 = vadd.f32 0.0, %v593
      %v595 = vpop.f32.mrb[0].mxu0
      %v596 = vpop.f32.mrb[0].mxu0
      %v597 = vadd.f32 0.0, %v596
      %v598 = vpop.f32.mrb[0].mxu0
      %599 = vdwg.mxu0
      %v616 = vunpack.c.l.b16 %v222
      %v617 = vunpack.c.l.b16 %v223
      %v618 = vunpack.c.l.b16 %v225
      %v619 = vunpack.c.l.b16 %v226
      %v620 = vunpack.c.l.b16 %v228
      %v621 = vunpack.c.l.b16 %v229
      %v622 = vunpack.c.l.b16 %v231
      %v623 = vunpack.c.l.b16 %v232
      %v624 = vunpack.c.l.b16 %v234
      %v625 = vunpack.c.l.b16 %v235
      %v626 = vunpack.c.l.b16 %v237
      %v627 = vunpack.c.l.b16 %v238
      %v628 = vunpack.c.l.b16 %v240
      %v629 = vunpack.c.l.b16 %v241
      %v630 = vunpack.c.l.b16 %v243
      %v631 = vunpack.c.l.b16 %v244
      %v632 = vpack.c.b16 %v617, %v616
      %v633 = vpack.c.b16 %v619, %v618
      %v634 = vpack.c.b16 %v621, %v620
      %v635 = vpack.c.b16 %v623, %v622
      %v636 = vpack.c.b16 %v625, %v624
      %v637 = vpack.c.b16 %v627, %v626
      %v638 = vpack.c.b16 %v629, %v628
      %v639 = vpack.c.b16 %v631, %v630
      %v641 = vsel %vm474, %v632, 0
      %v644 = vsel %vm474, %v633, 0
      %v647 = vsel %vm474, %v634, 0
      %v650 = vsel %vm474, %v635, 0
      %v653 = vsel %vm474, %v636, 0
      %v656 = vsel %vm474, %v637, 0
      %v659 = vsel %vm474, %v638, 0
      %v662 = vsel %vm474, %v639, 0
      %v665 = vsel %vm499, %v252, 0
      %667 = vmatprep.subr.bf16.mxu0 0
      %668 = vmatpush1.bf16.msra.mxu0 %v665
      %669 = vmatprep.subr.bf16.mxu0 0
      %670 = vmatpush1.bf16.msra.mxu0 0
      %671 = vmatprep.subr.bf16.mxu0 0
      %672 = vmatpush1.bf16.msra.mxu0 0
      %673 = vmatprep.subr.bf16.mxu0 0
      %674 = vmatpush1.bf16.msra.mxu0 0
      %675 = vmatprep.subr.bf16.mxu0 0
      %676 = vmatpush1.bf16.msra.mxu0 0
      %677 = vmatprep.subr.bf16.mxu0 0
      %678 = vmatpush1.bf16.msra.mxu0 0
      %679 = vmatprep.subr.bf16.mxu0 0
      %680 = vmatpush1.bf16.msra.mxu0 0
      %681 = vmatprep.subr.bf16.mxu0 0
      %682 = vmatpush1.bf16.msra.mxu0 0
      %683 = vmatprep.subr.bf16.mxu0 0
      %684 = vmatpush1.bf16.msra.mxu0 0
      %685 = vmatprep.subr.bf16.mxu0 0
      %686 = vmatpush1.bf16.msra.mxu0 0
      %687 = vmatprep.subr.bf16.mxu0 0
      %688 = vmatpush1.bf16.msra.mxu0 0
      %689 = vmatprep.subr.bf16.mxu0 0
      %690 = vmatpush1.bf16.msra.mxu0 0
      %691 = vmatprep.subr.bf16.mxu0 0
      %692 = vmatpush1.bf16.msra.mxu0 0
      %693 = vmatprep.subr.bf16.mxu0 0
      %694 = vmatpush1.bf16.msra.mxu0 0
      %695 = vmatprep.subr.bf16.mxu0 0
      %696 = vmatpush1.bf16.msra.mxu0 0
      %697 = vmatprep.subr.bf16.mxu0 0
      %698 = vmatpush1.bf16.msra.mxu0 0
      %699 = vmatprep.mubr.bf16.mxu0 0
      %700 = vmatmul.mubr.bf16.gmra.mrb[0].mxu0 %v641
      %v701 = vpop.f32.mrb[0].mxu0
      %v702 = vadd.f32 %v538, %v701
      %v703 = vpop.f32.mrb[0].mxu0
      %v704 = vpop.f32.mrb[0].mxu0
      %v705 = vadd.f32 %v541, %v704
      %v706 = vpop.f32.mrb[0].mxu0
      %707 = vmatprep.mubr.bf16.mxu0 0
      %708 = vmatmul.mubr.bf16.gmra.mrb[0].mxu0 %v644
      %v709 = vpop.f32.mrb[0].mxu0
      %v710 = vadd.f32 %v546, %v709
      %v711 = vpop.f32.mrb[0].mxu0
      %v712 = vpop.f32.mrb[0].mxu0
      %v713 = vadd.f32 %v549, %v712
      %v714 = vpop.f32.mrb[0].mxu0
      %715 = vmatprep.mubr.bf16.mxu0 0
      %716 = vmatmul.mubr.bf16.gmra.mrb[0].mxu0 %v647
      %v717 = vpop.f32.mrb[0].mxu0
      %v718 = vadd.f32 %v554, %v717
      %v719 = vpop.f32.mrb[0].mxu0
      %v720 = vpop.f32.mrb[0].mxu0
      %v721 = vadd.f32 %v557, %v720
      %v722 = vpop.f32.mrb[0].mxu0
      %723 = vmatprep.mubr.bf16.mxu0 0
      %724 = vmatmul.mubr.bf16.gmra.mrb[0].mxu0 %v650
      %v725 = vpop.f32.mrb[0].mxu0
      %v726 = vadd.f32 %v562, %v725
      %v727 = vpop.f32.mrb[0].mxu0
      %v728 = vpop.f32.mrb[0].mxu0
      %v729 = vadd.f32 %v565, %v728
      %v730 = vpop.f32.mrb[0].mxu0
      %731 = vmatprep.mubr.bf16.mxu0 0
      %732 = vmatmul.mubr.bf16.gmra.mrb[0].mxu0 %v653
      %v733 = vpop.f32.mrb[0].mxu0
      %v734 = vadd.f32 %v570, %v733
      %v735 = vpop.f32.mrb[0].mxu0
      %v736 = vpop.f32.mrb[0].mxu0
      %v737 = vadd.f32 %v573, %v736
      %v738 = vpop.f32.mrb[0].mxu0
      %739 = vmatprep.mubr.bf16.mxu0 0
      %740 = vmatmul.mubr.bf16.gmra.mrb[0].mxu0 %v656
      %v741 = vpop.f32.mrb[0].mxu0
      %v742 = vadd.f32 %v578, %v741
      %v743 = vpop.f32.mrb[0].mxu0
      %v744 = vpop.f32.mrb[0].mxu0
      %v745 = vadd.f32 %v581, %v744
      %v746 = vpop.f32.mrb[0].mxu0
      %747 = vmatprep.mubr.bf16.mxu0 0
      %748 = vmatmul.mubr.bf16.gmra.mrb[0].mxu0 %v659
      %v749 = vpop.f32.mrb[0].mxu0
      %v750 = vadd.f32 %v586, %v749
      %v751 = vpop.f32.mrb[0].mxu0
      %v752 = vpop.f32.mrb[0].mxu0
      %v753 = vadd.f32 %v589, %v752
      %v754 = vpop.f32.mrb[0].mxu0
      %755 = vmatprep.mubr.bf16.mxu0 0
      %756 = vmatmul.mubr.bf16.gmra.mrb[0].mxu0 %v662
      %v757 = vpop.f32.mrb[0].mxu0
      %v758 = vadd.f32 %v594, %v757
      %v759 = vpop.f32.mrb[0].mxu0
      %v760 = vpop.f32.mrb[0].mxu0
      %v761 = vadd.f32 %v597, %v760
      %v762 = vpop.f32.mrb[0].mxu0
      %763 = vdwg.mxu0
      %vm772 = vcmask 1042432
      %vm773 = vcmask 1046532
      %vm774 = vmor %vm772, %vm773
      %v775 = vrot.slane %v222, 5
      %v776 = vrot.slane %v775, 4
      %v777 = vrot.slane %v223, 5
      %v778 = vsel %vm774, %v776, %v777
      %v779 = vrot.slane %v777, 4
      %v780 = vrot.slane %v224, 5
      %v781 = vsel %vm774, %v779, %v780
      %v782 = vrot.slane %v225, 5
      %v783 = vrot.slane %v782, 4
      %v784 = vrot.slane %v226, 5
      %v785 = vsel %vm774, %v783, %v784
      %v786 = vrot.slane %v784, 4
      %v787 = vrot.slane %v227, 5
      %v788 = vsel %vm774, %v786, %v787
      %v789 = vrot.slane %v228, 5
      %v790 = vrot.slane %v789, 4
      %v791 = vrot.slane %v229, 5
      %v792 = vsel %vm774, %v790, %v791
      %v793 = vrot.slane %v791, 4
      %v794 = vrot.slane %v230, 5
      %v795 = vsel %vm774, %v793, %v794
      %v796 = vrot.slane %v231, 5
      %v797 = vrot.slane %v796, 4
      %v798 = vrot.slane %v232, 5
      %v799 = vsel %vm774, %v797, %v798
      %v800 = vrot.slane %v798, 4
      %v801 = vrot.slane %v233, 5
      %v802 = vsel %vm774, %v800, %v801
      %v803 = vrot.slane %v234, 5
      %v804 = vrot.slane %v803, 4
      %v805 = vrot.slane %v235, 5
      %v806 = vsel %vm774, %v804, %v805
      %v807 = vrot.slane %v805, 4
      %v808 = vrot.slane %v236, 5
      %v809 = vsel %vm774, %v807, %v808
      %v810 = vrot.slane %v237, 5
      %v811 = vrot.slane %v810, 4
      %v812 = vrot.slane %v238, 5
      %v813 = vsel %vm774, %v811, %v812
      %v814 = vrot.slane %v812, 4
      %v815 = vrot.slane %v239, 5
      %v816 = vsel %vm774, %v814, %v815
      %v817 = vrot.slane %v240, 5
      %v818 = vrot.slane %v817, 4
      %v819 = vrot.slane %v241, 5
      %v820 = vsel %vm774, %v818, %v819
      %v821 = vrot.slane %v819, 4
      %v822 = vrot.slane %v242, 5
      %v823 = vsel %vm774, %v821, %v822
      %v824 = vrot.slane %v243, 5
      %v825 = vrot.slane %v824, 4
      %v826 = vrot.slane %v244, 5
      %v827 = vsel %vm774, %v825, %v826
      %v828 = vrot.slane %v826, 4
      %v829 = vrot.slane %v245, 5
      %v830 = vsel %vm774, %v828, %v829
      %s831 = scalar_lea.vmem %s1, 4
      %v832 = vld [vmem:[%s831] sm:$0x3]
      %v833 = vunpack.c.l.b16 %v778
      %v834 = vunpack.c.l.b16 %v781
      %v835 = vunpack.c.l.b16 %v785
      %v836 = vunpack.c.l.b16 %v788
      %v837 = vunpack.c.l.b16 %v792
      %v838 = vunpack.c.l.b16 %v795
      %v839 = vunpack.c.l.b16 %v799
      %v840 = vunpack.c.l.b16 %v802
      %v841 = vunpack.c.l.b16 %v806
      %v842 = vunpack.c.l.b16 %v809
      %v843 = vunpack.c.l.b16 %v813
      %v844 = vunpack.c.l.b16 %v816
      %v845 = vunpack.c.l.b16 %v820
      %v846 = vunpack.c.l.b16 %v823
      %v847 = vunpack.c.l.b16 %v827
      %v848 = vunpack.c.l.b16 %v830
      %v849 = vpack.c.b16 %v834, %v833
      %v850 = vpack.c.b16 %v836, %v835
      %v851 = vpack.c.b16 %v838, %v837
      %v852 = vpack.c.b16 %v840, %v839
      %v853 = vpack.c.b16 %v842, %v841
      %v854 = vpack.c.b16 %v844, %v843
      %v855 = vpack.c.b16 %v846, %v845
      %v856 = vpack.c.b16 %v848, %v847
      %v858 = vsel %vm474, %v849, 0
      %v861 = vsel %vm474, %v850, 0
      %v864 = vsel %vm474, %v851, 0
      %v867 = vsel %vm474, %v852, 0
      %v870 = vsel %vm474, %v853, 0
      %v873 = vsel %vm474, %v854, 0
      %v876 = vsel %vm474, %v855, 0
      %v879 = vsel %vm474, %v856, 0
      %v882 = vsel %vm499, %v832, 0
      %884 = vmatprep.subr.bf16.mxu0 0
      %885 = vmatpush1.bf16.msra.mxu0 %v882
      %886 = vmatprep.subr.bf16.mxu0 0
      %887 = vmatpush1.bf16.msra.mxu0 0
      %888 = vmatprep.subr.bf16.mxu0 0
      %889 = vmatpush1.bf16.msra.mxu0 0
      %890 = vmatprep.subr.bf16.mxu0 0
      %891 = vmatpush1.bf16.msra.mxu0 0
      %892 = vmatprep.subr.bf16.mxu0 0
      %893 = vmatpush1.bf16.msra.mxu0 0
      %894 = vmatprep.subr.bf16.mxu0 0
      %895 = vmatpush1.bf16.msra.mxu0 0
      %896 = vmatprep.subr.bf16.mxu0 0
      %897 = vmatpush1.bf16.msra.mxu0 0
      %898 = vmatprep.subr.bf16.mxu0 0
      %899 = vmatpush1.bf16.msra.mxu0 0
      %900 = vmatprep.subr.bf16.mxu0 0
      %901 = vmatpush1.bf16.msra.mxu0 0
      %902 = vmatprep.subr.bf16.mxu0 0
      %903 = vmatpush1.bf16.msra.mxu0 0
      %904 = vmatprep.subr.bf16.mxu0 0
      %905 = vmatpush1.bf16.msra.mxu0 0
      %906 = vmatprep.subr.bf16.mxu0 0
      %907 = vmatpush1.bf16.msra.mxu0 0
      %908 = vmatprep.subr.bf16.mxu0 0
      %909 = vmatpush1.bf16.msra.mxu0 0
      %910 = vmatprep.subr.bf16.mxu0 0
      %911 = vmatpush1.bf16.msra.mxu0 0
      %912 = vmatprep.subr.bf16.mxu0 0
      %913 = vmatpush1.bf16.msra.mxu0 0
      %914 = vmatprep.subr.bf16.mxu0 0
      %915 = vmatpush1.bf16.msra.mxu0 0
      %916 = vmatprep.mubr.bf16.mxu0 0
      %917 = vmatmul.mubr.bf16.gmra.mrb[0].mxu0 %v858
      %v918 = vpop.f32.mrb[0].mxu0
      %v919 = vadd.f32 0.0, %v918
      %v920 = vpop.f32.mrb[0].mxu0
      %v921 = vpop.f32.mrb[0].mxu0
      %v922 = vadd.f32 0.0, %v921
      %v923 = vpop.f32.mrb[0].mxu0
      %924 = vmatprep.mubr.bf16.mxu0 0
      %925 = vmatmul.mubr.bf16.gmra.mrb[0].mxu0 %v861
      %v926 = vpop.f32.mrb[0].mxu0
      %v927 = vadd.f32 0.0, %v926
      %v928 = vpop.f32.mrb[0].mxu0
      %v929 = vpop.f32.mrb[0].mxu0
      %v930 = vadd.f32 0.0, %v929
      %v931 = vpop.f32.mrb[0].mxu0
      %932 = vmatprep.mubr.bf16.mxu0 0
      %933 = vmatmul.mubr.bf16.gmra.mrb[0].mxu0 %v864
      %v934 = vpop.f32.mrb[0].mxu0
      %v935 = vadd.f32 0.0, %v934
      %v936 = vpop.f32.mrb[0].mxu0
      %v937 = vpop.f32.mrb[0].mxu0
      %v938 = vadd.f32 0.0, %v937
      %v939 = vpop.f32.mrb[0].mxu0
      %940 = vmatprep.mubr.bf16.mxu0 0
      %941 = vmatmul.mubr.bf16.gmra.mrb[0].mxu0 %v867
      %v942 = vpop.f32.mrb[0].mxu0
      %v943 = vadd.f32 0.0, %v942
      %v944 = vpop.f32.mrb[0].mxu0
      %v945 = vpop.f32.mrb[0].mxu0
      %v946 = vadd.f32 0.0, %v945
      %v947 = vpop.f32.mrb[0].mxu0
      %948 = vmatprep.mubr.bf16.mxu0 0
      %949 = vmatmul.mubr.bf16.gmra.mrb[0].mxu0 %v870
      %v950 = vpop.f32.mrb[0].mxu0
      %v951 = vadd.f32 0.0, %v950
      %v952 = vpop.f32.mrb[0].mxu0
      %v953 = vpop.f32.mrb[0].mxu0
      %v954 = vadd.f32 0.0, %v953
      %v955 = vpop.f32.mrb[0].mxu0
      %956 = vmatprep.mubr.bf16.mxu0 0
      %957 = vmatmul.mubr.bf16.gmra.mrb[0].mxu0 %v873
      %v958 = vpop.f32.mrb[0].mxu0
      %v959 = vadd.f32 0.0, %v958
      %v960 = vpop.f32.mrb[0].mxu0
      %v961 = vpop.f32.mrb[0].mxu0
      %v962 = vadd.f32 0.0, %v961
      %v963 = vpop.f32.mrb[0].mxu0
      %964 = vmatprep.mubr.bf16.mxu0 0
      %965 = vmatmul.mubr.bf16.gmra.mrb[0].mxu0 %v876
      %v966 = vpop.f32.mrb[0].mxu0
      %v967 = vadd.f32 0.0, %v966
      %v968 = vpop.f32.mrb[0].mxu0
      %v969 = vpop.f32.mrb[0].mxu0
      %v970 = vadd.f32 0.0, %v969
      %v971 = vpop.f32.mrb[0].mxu0
      %972 = vmatprep.mubr.bf16.mxu0 0
      %973 = vmatmul.mubr.bf16.gmra.mrb[0].mxu0 %v879
      %v974 = vpop.f32.mrb[0].mxu0
      %v975 = vadd.f32 0.0, %v974
      %v976 = vpop.f32.mrb[0].mxu0
      %v977 = vpop.f32.mrb[0].mxu0
      %v978 = vadd.f32 0.0, %v977
      %v979 = vpop.f32.mrb[0].mxu0
      %980 = vdwg.mxu0
      %v981 = vadd.f32 %v702, %v919
      %v982 = vadd.f32 %v705, %v922
      %v983 = vadd.f32 %v710, %v927
      %v984 = vadd.f32 %v713, %v930
      %v985 = vadd.f32 %v718, %v935
      %v986 = vadd.f32 %v721, %v938
      %v987 = vadd.f32 %v726, %v943
      %v988 = vadd.f32 %v729, %v946
      %v989 = vadd.f32 %v734, %v951
      %v990 = vadd.f32 %v737, %v954
      %v991 = vadd.f32 %v742, %v959
      %v992 = vadd.f32 %v745, %v962
      %v993 = vadd.f32 %v750, %v967
      %v994 = vadd.f32 %v753, %v970
      %v995 = vadd.f32 %v758, %v975
      %v996 = vadd.f32 %v761, %v978
      %s997 = scalar_lea.vmem %s1, 6
      %v998 = vld [vmem:[%s997] sm:$0x3]
      %v1001 = vunpack.c.l.b16 %v246
      %v1002 = vunpack.c.l.b16 %v247
      %v1003 = vpack.c.b16 %v1002, %v1001
      %v1005 = vsel %vm474, %v1003, 0
      %v1008 = vsel %vm499, %v998, 0
      %1010 = vmatprep.subr.bf16.mxu0 0
      %1011 = vmatpush1.bf16.msra.mxu0 %v1008
      %1012 = vmatprep.subr.bf16.mxu0 0
      %1013 = vmatpush1.bf16.msra.mxu0 0
      %1014 = vmatprep.subr.bf16.mxu0 0
      %1015 = vmatpush1.bf16.msra.mxu0 0
      %1016 = vmatprep.subr.bf16.mxu0 0
      %1017 = vmatpush1.bf16.msra.mxu0 0
      %1018 = vmatprep.subr.bf16.mxu0 0
      %1019 = vmatpush1.bf16.msra.mxu0 0
      %1020 = vmatprep.subr.bf16.mxu0 0
      %1021 = vmatpush1.bf16.msra.mxu0 0
      %1022 = vmatprep.subr.bf16.mxu0 0
      %1023 = vmatpush1.bf16.msra.mxu0 0
      %1024 = vmatprep.subr.bf16.mxu0 0
      %1025 = vmatpush1.bf16.msra.mxu0 0
      %1026 = vmatprep.subr.bf16.mxu0 0
      %1027 = vmatpush1.bf16.msra.mxu0 0
      %1028 = vmatprep.subr.bf16.mxu0 0
      %1029 = vmatpush1.bf16.msra.mxu0 0
      %1030 = vmatprep.subr.bf16.mxu0 0
      %1031 = vmatpush1.bf16.msra.mxu0 0
      %1032 = vmatprep.subr.bf16.mxu0 0
      %1033 = vmatpush1.bf16.msra.mxu0 0
      %1034 = vmatprep.subr.bf16.mxu0 0
      %1035 = vmatpush1.bf16.msra.mxu0 0
      %1036 = vmatprep.subr.bf16.mxu0 0
      %1037 = vmatpush1.bf16.msra.mxu0 0
      %1038 = vmatprep.subr.bf16.mxu0 0
      %1039 = vmatpush1.bf16.msra.mxu0 0
      %1040 = vmatprep.subr.bf16.mxu0 0
      %1041 = vmatpush1.bf16.msra.mxu0 0
      %1042 = vmatprep.mubr.bf16.mxu0 0
      %1043 = vmatmul.mubr.bf16.gmra.mrb[0].mxu0 %v644
      %v1044 = vpop.f32.mrb[0].mxu0
      %v1045 = vadd.f32 0.0, %v1044
      %v1046 = vpop.f32.mrb[0].mxu0
      %v1047 = vpop.f32.mrb[0].mxu0
      %v1048 = vadd.f32 0.0, %v1047
      %v1049 = vpop.f32.mrb[0].mxu0
      %1050 = vmatprep.mubr.bf16.mxu0 0
      %1051 = vmatmul.mubr.bf16.gmra.mrb[0].mxu0 %v647
      %v1052 = vpop.f32.mrb[0].mxu0
      %v1053 = vadd.f32 0.0, %v1052
      %v1054 = vpop.f32.mrb[0].mxu0
      %v1055 = vpop.f32.mrb[0].mxu0
      %v1056 = vadd.f32 0.0, %v1055
      %v1057 = vpop.f32.mrb[0].mxu0
      %1058 = vmatprep.mubr.bf16.mxu0 0
      %1059 = vmatmul.mubr.bf16.gmra.mrb[0].mxu0 %v650
      %v1060 = vpop.f32.mrb[0].mxu0
      %v1061 = vadd.f32 0.0, %v1060
      %v1062 = vpop.f32.mrb[0].mxu0
      %v1063 = vpop.f32.mrb[0].mxu0
      %v1064 = vadd.f32 0.0, %v1063
      %v1065 = vpop.f32.mrb[0].mxu0
      %1066 = vmatprep.mubr.bf16.mxu0 0
      %1067 = vmatmul.mubr.bf16.gmra.mrb[0].mxu0 %v653
      %v1068 = vpop.f32.mrb[0].mxu0
      %v1069 = vadd.f32 0.0, %v1068
      %v1070 = vpop.f32.mrb[0].mxu0
      %v1071 = vpop.f32.mrb[0].mxu0
      %v1072 = vadd.f32 0.0, %v1071
      %v1073 = vpop.f32.mrb[0].mxu0
      %1074 = vmatprep.mubr.bf16.mxu0 0
      %1075 = vmatmul.mubr.bf16.gmra.mrb[0].mxu0 %v656
      %v1076 = vpop.f32.mrb[0].mxu0
      %v1077 = vadd.f32 0.0, %v1076
      %v1078 = vpop.f32.mrb[0].mxu0
      %v1079 = vpop.f32.mrb[0].mxu0
      %v1080 = vadd.f32 0.0, %v1079
      %v1081 = vpop.f32.mrb[0].mxu0
      %1082 = vmatprep.mubr.bf16.mxu0 0
      %1083 = vmatmul.mubr.bf16.gmra.mrb[0].mxu0 %v659
      %v1084 = vpop.f32.mrb[0].mxu0
      %v1085 = vadd.f32 0.0, %v1084
      %v1086 = vpop.f32.mrb[0].mxu0
      %v1087 = vpop.f32.mrb[0].mxu0
      %v1088 = vadd.f32 0.0, %v1087
      %v1089 = vpop.f32.mrb[0].mxu0
      %1090 = vmatprep.mubr.bf16.mxu0 0
      %1091 = vmatmul.mubr.bf16.gmra.mrb[0].mxu0 %v662
      %v1092 = vpop.f32.mrb[0].mxu0
      %v1093 = vadd.f32 0.0, %v1092
      %v1094 = vpop.f32.mrb[0].mxu0
      %v1095 = vpop.f32.mrb[0].mxu0
      %v1096 = vadd.f32 0.0, %v1095
      %v1097 = vpop.f32.mrb[0].mxu0
      %1098 = vmatprep.mubr.bf16.mxu0 0
      %1099 = vmatmul.mubr.bf16.gmra.mrb[0].mxu0 %v1005
      %v1100 = vpop.f32.mrb[0].mxu0
      %v1101 = vadd.f32 0.0, %v1100
      %v1102 = vpop.f32.mrb[0].mxu0
      %v1103 = vpop.f32.mrb[0].mxu0
      %v1104 = vadd.f32 0.0, %v1103
      %v1105 = vpop.f32.mrb[0].mxu0
      %1106 = vdwg.mxu0
      %v1107 = vadd.f32 %v981, %v1045
      %v1108 = vadd.f32 %v982, %v1048
      %v1109 = vadd.f32 %v983, %v1053
      %v1110 = vadd.f32 %v984, %v1056
      %v1111 = vadd.f32 %v985, %v1061
      %v1112 = vadd.f32 %v986, %v1064
      %v1113 = vadd.f32 %v987, %v1069
      %v1114 = vadd.f32 %v988, %v1072
      %v1115 = vadd.f32 %v989, %v1077
      %v1116 = vadd.f32 %v990, %v1080
      %v1117 = vadd.f32 %v991, %v1085
      %v1118 = vadd.f32 %v992, %v1088
      %v1119 = vadd.f32 %v993, %v1093
      %v1120 = vadd.f32 %v994, %v1096
      %v1121 = vadd.f32 %v995, %v1101
      %v1122 = vadd.f32 %v996, %v1104
      %v1124 = vshrl.u32 %v246, 16
      %v1126 = vrot.slane %v1124, 4
      %v1127 = vshll.u32 %v246, 16
      %v1129 = vrot.slane %v1127, 5
      %v1130 = vor.u32 %v1126, %v1129
      %v1131 = vrot.slane %v1130, 4
      %v1133 = vshll.u32 %v247, 16
      %v1135 = vrot.slane %v1133, 5
      %v1136 = vsel %vm255, %v1131, %v1135
      %v1137 = vshrl.u32 %v247, 16
      %v1139 = vrot.slane %v1137, 4
      %v1140 = vor.u32 %v1139, %v1135
      %v1141 = vrot.slane %v1140, 4
      %v1143 = vshll.u32 %v248, 16
      %v1145 = vrot.slane %v1143, 5
      %v1146 = vsel %vm255, %v1141, %v1145
      %s1147 = scalar_lea.vmem %s1, 8
      %v1148 = vld [vmem:[%s1147] sm:$0x3]
      %v1149 = vunpack.c.l.b16 %v1136
      %v1150 = vunpack.c.l.b16 %v1146
      %v1151 = vpack.c.b16 %v1150, %v1149
      %v1153 = vsel %vm474, %v1151, 0
      %v1156 = vsel %vm499, %v1148, 0
      %1158 = vmatprep.subr.bf16.mxu0 0
      %1159 = vmatpush1.bf16.msra.mxu0 %v1156
      %1160 = vmatprep.subr.bf16.mxu0 0
      %1161 = vmatpush1.bf16.msra.mxu0 0
      %1162 = vmatprep.subr.bf16.mxu0 0
      %1163 = vmatpush1.bf16.msra.mxu0 0
      %1164 = vmatprep.subr.bf16.mxu0 0
      %1165 = vmatpush1.bf16.msra.mxu0 0
      %1166 = vmatprep.subr.bf16.mxu0 0
      %1167 = vmatpush1.bf16.msra.mxu0 0
      %1168 = vmatprep.subr.bf16.mxu0 0
      %1169 = vmatpush1.bf16.msra.mxu0 0
      %1170 = vmatprep.subr.bf16.mxu0 0
      %1171 = vmatpush1.bf16.msra.mxu0 0
      %1172 = vmatprep.subr.bf16.mxu0 0
      %1173 = vmatpush1.bf16.msra.mxu0 0
      %1174 = vmatprep.subr.bf16.mxu0 0
      %1175 = vmatpush1.bf16.msra.mxu0 0
      %1176 = vmatprep.subr.bf16.mxu0 0
      %1177 = vmatpush1.bf16.msra.mxu0 0
      %1178 = vmatprep.subr.bf16.mxu0 0
      %1179 = vmatpush1.bf16.msra.mxu0 0
      %1180 = vmatprep.subr.bf16.mxu0 0
      %1181 = vmatpush1.bf16.msra.mxu0 0
      %1182 = vmatprep.subr.bf16.mxu0 0
      %1183 = vmatpush1.bf16.msra.mxu0 0
      %1184 = vmatprep.subr.bf16.mxu0 0
      %1185 = vmatpush1.bf16.msra.mxu0 0
      %1186 = vmatprep.subr.bf16.mxu0 0
      %1187 = vmatpush1.bf16.msra.mxu0 0
      %1188 = vmatprep.subr.bf16.mxu0 0
      %1189 = vmatpush1.bf16.msra.mxu0 0
      %1190 = vmatprep.mubr.bf16.mxu0 0
      %1191 = vmatmul.mubr.bf16.gmra.mrb[0].mxu0 %v479
      %v1192 = vpop.f32.mrb[0].mxu0
      %v1193 = vadd.f32 0.0, %v1192
      %v1194 = vpop.f32.mrb[0].mxu0
      %v1195 = vpop.f32.mrb[0].mxu0
      %v1196 = vadd.f32 0.0, %v1195
      %v1197 = vpop.f32.mrb[0].mxu0
      %1198 = vmatprep.mubr.bf16.mxu0 0
      %1199 = vmatmul.mubr.bf16.gmra.mrb[0].mxu0 %v482
      %v1200 = vpop.f32.mrb[0].mxu0
      %v1201 = vadd.f32 0.0, %v1200
      %v1202 = vpop.f32.mrb[0].mxu0
      %v1203 = vpop.f32.mrb[0].mxu0
      %v1204 = vadd.f32 0.0, %v1203
      %v1205 = vpop.f32.mrb[0].mxu0
      %1206 = vmatprep.mubr.bf16.mxu0 0
      %1207 = vmatmul.mubr.bf16.gmra.mrb[0].mxu0 %v485
      %v1208 = vpop.f32.mrb[0].mxu0
      %v1209 = vadd.f32 0.0, %v1208
      %v1210 = vpop.f32.mrb[0].mxu0
      %v1211 = vpop.f32.mrb[0].mxu0
      %v1212 = vadd.f32 0.0, %v1211
      %v1213 = vpop.f32.mrb[0].mxu0
      %1214 = vmatprep.mubr.bf16.mxu0 0
      %1215 = vmatmul.mubr.bf16.gmra.mrb[0].mxu0 %v488
      %v1216 = vpop.f32.mrb[0].mxu0
      %v1217 = vadd.f32 0.0, %v1216
      %v1218 = vpop.f32.mrb[0].mxu0
      %v1219 = vpop.f32.mrb[0].mxu0
      %v1220 = vadd.f32 0.0, %v1219
      %v1221 = vpop.f32.mrb[0].mxu0
      %1222 = vmatprep.mubr.bf16.mxu0 0
      %1223 = vmatmul.mubr.bf16.gmra.mrb[0].mxu0 %v491
      %v1224 = vpop.f32.mrb[0].mxu0
      %v1225 = vadd.f32 0.0, %v1224
      %v1226 = vpop.f32.mrb[0].mxu0
      %v1227 = vpop.f32.mrb[0].mxu0
      %v1228 = vadd.f32 0.0, %v1227
      %v1229 = vpop.f32.mrb[0].mxu0
      %1230 = vmatprep.mubr.bf16.mxu0 0
      %1231 = vmatmul.mubr.bf16.gmra.mrb[0].mxu0 %v494
      %v1232 = vpop.f32.mrb[0].mxu0
      %v1233 = vadd.f32 0.0, %v1232
      %v1234 = vpop.f32.mrb[0].mxu0
      %v1235 = vpop.f32.mrb[0].mxu0
      %v1236 = vadd.f32 0.0, %v1235
      %v1237 = vpop.f32.mrb[0].mxu0
      %1238 = vmatprep.mubr.bf16.mxu0 0
      %1239 = vmatmul.mubr.bf16.gmra.mrb[0].mxu0 %v497
      %v1240 = vpop.f32.mrb[0].mxu0
      %v1241 = vadd.f32 0.0, %v1240
      %v1242 = vpop.f32.mrb[0].mxu0
      %v1243 = vpop.f32.mrb[0].mxu0
      %v1244 = vadd.f32 0.0, %v1243
      %v1245 = vpop.f32.mrb[0].mxu0
      %1246 = vmatprep.mubr.bf16.mxu0 0
      %1247 = vmatmul.mubr.bf16.gmra.mrb[0].mxu0 %v1153
      %v1248 = vpop.f32.mrb[0].mxu0
      %v1249 = vadd.f32 0.0, %v1248
      %v1250 = vpop.f32.mrb[0].mxu0
      %v1251 = vpop.f32.mrb[0].mxu0
      %v1252 = vadd.f32 0.0, %v1251
      %v1253 = vpop.f32.mrb[0].mxu0
      %1254 = vdwg.mxu0
      %v1255 = vadd.f32 %v1107, %v1193
      %v1256 = vadd.f32 %v1108, %v1196
      %v1257 = vadd.f32 %v1109, %v1201
      %v1258 = vadd.f32 %v1110, %v1204
      %v1259 = vadd.f32 %v1111, %v1209
      %v1260 = vadd.f32 %v1112, %v1212
      %v1261 = vadd.f32 %v1113, %v1217
      %v1262 = vadd.f32 %v1114, %v1220
      %v1263 = vadd.f32 %v1115, %v1225
      %v1264 = vadd.f32 %v1116, %v1228
      %v1265 = vadd.f32 %v1117, %v1233
      %v1266 = vadd.f32 %v1118, %v1236
      %v1267 = vadd.f32 %v1119, %v1241
      %v1268 = vadd.f32 %v1120, %v1244
      %v1269 = vadd.f32 %v1121, %v1249
      %v1270 = vadd.f32 %v1122, %v1252
      %v1272 = vrot.slane %v246, 5
      %v1273 = vrot.slane %v1272, 4
      %v1274 = vrot.slane %v247, 5
      %v1275 = vsel %vm774, %v1273, %v1274
      %v1276 = vrot.slane %v1274, 4
      %v1277 = vrot.slane %v248, 5
      %v1278 = vsel %vm774, %v1276, %v1277
      %s1279 = scalar_lea.vmem %s1, 10
      %v1280 = vld [vmem:[%s1279] sm:$0x3]
      %v1281 = vunpack.c.l.b16 %v1275
      %v1282 = vunpack.c.l.b16 %v1278
      %v1283 = vpack.c.b16 %v1282, %v1281
      %v1285 = vsel %vm474, %v1283, 0
      %v1288 = vsel %vm499, %v1280, 0
      %1290 = vmatprep.subr.bf16.mxu0 0
      %1291 = vmatpush1.bf16.msra.mxu0 %v1288
      %1292 = vmatprep.subr.bf16.mxu0 0
      %1293 = vmatpush1.bf16.msra.mxu0 0
      %1294 = vmatprep.subr.bf16.mxu0 0
      %1295 = vmatpush1.bf16.msra.mxu0 0
      %1296 = vmatprep.subr.bf16.mxu0 0
      %1297 = vmatpush1.bf16.msra.mxu0 0
      %1298 = vmatprep.subr.bf16.mxu0 0
      %1299 = vmatpush1.bf16.msra.mxu0 0
      %1300 = vmatprep.subr.bf16.mxu0 0
      %1301 = vmatpush1.bf16.msra.mxu0 0
      %1302 = vmatprep.subr.bf16.mxu0 0
      %1303 = vmatpush1.bf16.msra.mxu0 0
      %1304 = vmatprep.subr.bf16.mxu0 0
      %1305 = vmatpush1.bf16.msra.mxu0 0
      %1306 = vmatprep.subr.bf16.mxu0 0
      %1307 = vmatpush1.bf16.msra.mxu0 0
      %1308 = vmatprep.subr.bf16.mxu0 0
      %1309 = vmatpush1.bf16.msra.mxu0 0
      %1310 = vmatprep.subr.bf16.mxu0 0
      %1311 = vmatpush1.bf16.msra.mxu0 0
      %1312 = vmatprep.subr.bf16.mxu0 0
      %1313 = vmatpush1.bf16.msra.mxu0 0
      %1314 = vmatprep.subr.bf16.mxu0 0
      %1315 = vmatpush1.bf16.msra.mxu0 0
      %1316 = vmatprep.subr.bf16.mxu0 0
      %1317 = vmatpush1.bf16.msra.mxu0 0
      %1318 = vmatprep.subr.bf16.mxu0 0
      %1319 = vmatpush1.bf16.msra.mxu0 0
      %1320 = vmatprep.subr.bf16.mxu0 0
      %1321 = vmatpush1.bf16.msra.mxu0 0
      %1322 = vmatprep.mubr.bf16.mxu0 0
      %1323 = vmatmul.mubr.bf16.gmra.mrb[0].mxu0 %v861
      %v1324 = vpop.f32.mrb[0].mxu0
      %v1325 = vadd.f32 0.0, %v1324
      %v1326 = vpop.f32.mrb[0].mxu0
      %v1327 = vpop.f32.mrb[0].mxu0
      %v1328 = vadd.f32 0.0, %v1327
      %v1329 = vpop.f32.mrb[0].mxu0
      %1330 = vmatprep.mubr.bf16.mxu0 0
      %1331 = vmatmul.mubr.bf16.gmra.mrb[0].mxu0 %v864
      %v1332 = vpop.f32.mrb[0].mxu0
      %v1333 = vadd.f32 0.0, %v1332
      %v1334 = vpop.f32.mrb[0].mxu0
      %v1335 = vpop.f32.mrb[0].mxu0
      %v1336 = vadd.f32 0.0, %v1335
      %v1337 = vpop.f32.mrb[0].mxu0
      %1338 = vmatprep.mubr.bf16.mxu0 0
      %1339 = vmatmul.mubr.bf16.gmra.mrb[0].mxu0 %v867
      %v1340 = vpop.f32.mrb[0].mxu0
      %v1341 = vadd.f32 0.0, %v1340
      %v1342 = vpop.f32.mrb[0].mxu0
      %v1343 = vpop.f32.mrb[0].mxu0
      %v1344 = vadd.f32 0.0, %v1343
      %v1345 = vpop.f32.mrb[0].mxu0
      %1346 = vmatprep.mubr.bf16.mxu0 0
      %1347 = vmatmul.mubr.bf16.gmra.mrb[0].mxu0 %v870
      %v1348 = vpop.f32.mrb[0].mxu0
      %v1349 = vadd.f32 0.0, %v1348
      %v1350 = vpop.f32.mrb[0].mxu0
      %v1351 = vpop.f32.mrb[0].mxu0
      %v1352 = vadd.f32 0.0, %v1351
      %v1353 = vpop.f32.mrb[0].mxu0
      %1354 = vmatprep.mubr.bf16.mxu0 0
      %1355 = vmatmul.mubr.bf16.gmra.mrb[0].mxu0 %v873
      %v1356 = vpop.f32.mrb[0].mxu0
      %v1357 = vadd.f32 0.0, %v1356
      %v1358 = vpop.f32.mrb[0].mxu0
      %v1359 = vpop.f32.mrb[0].mxu0
      %v1360 = vadd.f32 0.0, %v1359
      %v1361 = vpop.f32.mrb[0].mxu0
      %1362 = vmatprep.mubr.bf16.mxu0 0
      %1363 = vmatmul.mubr.bf16.gmra.mrb[0].mxu0 %v876
      %v1364 = vpop.f32.mrb[0].mxu0
      %v1365 = vadd.f32 0.0, %v1364
      %v1366 = vpop.f32.mrb[0].mxu0
      %v1367 = vpop.f32.mrb[0].mxu0
      %v1368 = vadd.f32 0.0, %v1367
      %v1369 = vpop.f32.mrb[0].mxu0
      %1370 = vmatprep.mubr.bf16.mxu0 0
      %1371 = vmatmul.mubr.bf16.gmra.mrb[0].mxu0 %v879
      %v1372 = vpop.f32.mrb[0].mxu0
      %v1373 = vadd.f32 0.0, %v1372
      %v1374 = vpop.f32.mrb[0].mxu0
      %v1375 = vpop.f32.mrb[0].mxu0
      %v1376 = vadd.f32 0.0, %v1375
      %v1377 = vpop.f32.mrb[0].mxu0
      %1378 = vmatprep.mubr.bf16.mxu0 0
      %1379 = vmatmul.mubr.bf16.gmra.mrb[0].mxu0 %v1285
      %v1380 = vpop.f32.mrb[0].mxu0
      %v1381 = vadd.f32 0.0, %v1380
      %v1382 = vpop.f32.mrb[0].mxu0
      %v1383 = vpop.f32.mrb[0].mxu0
      %v1384 = vadd.f32 0.0, %v1383
      %v1385 = vpop.f32.mrb[0].mxu0
      %1386 = vdwg.mxu0
      %v1387 = vadd.f32 %v1255, %v1325
      %v1388 = vadd.f32 %v1256, %v1328
      %v1389 = vadd.f32 %v1257, %v1333
      %v1390 = vadd.f32 %v1258, %v1336
      %v1391 = vadd.f32 %v1259, %v1341
      %v1392 = vadd.f32 %v1260, %v1344
      %v1393 = vadd.f32 %v1261, %v1349
      %v1394 = vadd.f32 %v1262, %v1352
      %v1395 = vadd.f32 %v1263, %v1357
      %v1396 = vadd.f32 %v1264, %v1360
      %v1397 = vadd.f32 %v1265, %v1365
      %v1398 = vadd.f32 %v1266, %v1368
      %v1399 = vadd.f32 %v1267, %v1373
      %v1400 = vadd.f32 %v1268, %v1376
      %v1401 = vadd.f32 %v1269, %v1381
      %v1402 = vadd.f32 %v1270, %v1384
      %s1403 = scalar_lea.vmem %s1, 12
      %v1404 = vld [vmem:[%s1403] sm:$0x3]
      %v1407 = vunpack.c.l.b16 %v249
      %v1408 = vunpack.c.l.b16 %v250
      %v1409 = vpack.c.b16 %v1408, %v1407
      %v1411 = vsel %vm474, %v1409, 0
      %v1414 = vsel %vm499, %v1404, 0
      %1416 = vmatprep.subr.bf16.mxu0 0
      %1417 = vmatpush1.bf16.msra.mxu0 %v1414
      %1418 = vmatprep.subr.bf16.mxu0 0
      %1419 = vmatpush1.bf16.msra.mxu0 0
      %1420 = vmatprep.subr.bf16.mxu0 0
      %1421 = vmatpush1.bf16.msra.mxu0 0
      %1422 = vmatprep.subr.bf16.mxu0 0
      %1423 = vmatpush1.bf16.msra.mxu0 0
      %1424 = vmatprep.subr.bf16.mxu0 0
      %1425 = vmatpush1.bf16.msra.mxu0 0
      %1426 = vmatprep.subr.bf16.mxu0 0
      %1427 = vmatpush1.bf16.msra.mxu0 0
      %1428 = vmatprep.subr.bf16.mxu0 0
      %1429 = vmatpush1.bf16.msra.mxu0 0
      %1430 = vmatprep.subr.bf16.mxu0 0
      %1431 = vmatpush1.bf16.msra.mxu0 0
      %1432 = vmatprep.subr.bf16.mxu0 0
      %1433 = vmatpush1.bf16.msra.mxu0 0
      %1434 = vmatprep.subr.bf16.mxu0 0
      %1435 = vmatpush1.bf16.msra.mxu0 0
      %1436 = vmatprep.subr.bf16.mxu0 0
      %1437 = vmatpush1.bf16.msra.mxu0 0
      %1438 = vmatprep.subr.bf16.mxu0 0
      %1439 = vmatpush1.bf16.msra.mxu0 0
      %1440 = vmatprep.subr.bf16.mxu0 0
      %1441 = vmatpush1.bf16.msra.mxu0 0
      %1442 = vmatprep.subr.bf16.mxu0 0
      %1443 = vmatpush1.bf16.msra.mxu0 0
      %1444 = vmatprep.subr.bf16.mxu0 0
      %1445 = vmatpush1.bf16.msra.mxu0 0
      %1446 = vmatprep.subr.bf16.mxu0 0
      %1447 = vmatpush1.bf16.msra.mxu0 0
      %1448 = vmatprep.mubr.bf16.mxu0 0
      %1449 = vmatmul.mubr.bf16.gmra.mrb[0].mxu0 %v647
      %v1450 = vpop.f32.mrb[0].mxu0
      %v1451 = vadd.f32 0.0, %v1450
      %v1452 = vpop.f32.mrb[0].mxu0
      %v1453 = vpop.f32.mrb[0].mxu0
      %v1454 = vadd.f32 0.0, %v1453
      %v1455 = vpop.f32.mrb[0].mxu0
      %1456 = vmatprep.mubr.bf16.mxu0 0
      %1457 = vmatmul.mubr.bf16.gmra.mrb[0].mxu0 %v650
      %v1458 = vpop.f32.mrb[0].mxu0
      %v1459 = vadd.f32 0.0, %v1458
      %v1460 = vpop.f32.mrb[0].mxu0
      %v1461 = vpop.f32.mrb[0].mxu0
      %v1462 = vadd.f32 0.0, %v1461
      %v1463 = vpop.f32.mrb[0].mxu0
      %1464 = vmatprep.mubr.bf16.mxu0 0
      %1465 = vmatmul.mubr.bf16.gmra.mrb[0].mxu0 %v653
      %v1466 = vpop.f32.mrb[0].mxu0
      %v1467 = vadd.f32 0.0, %v1466
      %v1468 = vpop.f32.mrb[0].mxu0
      %v1469 = vpop.f32.mrb[0].mxu0
      %v1470 = vadd.f32 0.0, %v1469
      %v1471 = vpop.f32.mrb[0].mxu0
      %1472 = vmatprep.mubr.bf16.mxu0 0
      %1473 = vmatmul.mubr.bf16.gmra.mrb[0].mxu0 %v656
      %v1474 = vpop.f32.mrb[0].mxu0
      %v1475 = vadd.f32 0.0, %v1474
      %v1476 = vpop.f32.mrb[0].mxu0
      %v1477 = vpop.f32.mrb[0].mxu0
      %v1478 = vadd.f32 0.0, %v1477
      %v1479 = vpop.f32.mrb[0].mxu0
      %1480 = vmatprep.mubr.bf16.mxu0 0
      %1481 = vmatmul.mubr.bf16.gmra.mrb[0].mxu0 %v659
      %v1482 = vpop.f32.mrb[0].mxu0
      %v1483 = vadd.f32 0.0, %v1482
      %v1484 = vpop.f32.mrb[0].mxu0
      %v1485 = vpop.f32.mrb[0].mxu0
      %v1486 = vadd.f32 0.0, %v1485
      %v1487 = vpop.f32.mrb[0].mxu0
      %1488 = vmatprep.mubr.bf16.mxu0 0
      %1489 = vmatmul.mubr.bf16.gmra.mrb[0].mxu0 %v662
      %v1490 = vpop.f32.mrb[0].mxu0
      %v1491 = vadd.f32 0.0, %v1490
      %v1492 = vpop.f32.mrb[0].mxu0
      %v1493 = vpop.f32.mrb[0].mxu0
      %v1494 = vadd.f32 0.0, %v1493
      %v1495 = vpop.f32.mrb[0].mxu0
      %1496 = vmatprep.mubr.bf16.mxu0 0
      %1497 = vmatmul.mubr.bf16.gmra.mrb[0].mxu0 %v1005
      %v1498 = vpop.f32.mrb[0].mxu0
      %v1499 = vadd.f32 0.0, %v1498
      %v1500 = vpop.f32.mrb[0].mxu0
      %v1501 = vpop.f32.mrb[0].mxu0
      %v1502 = vadd.f32 0.0, %v1501
      %v1503 = vpop.f32.mrb[0].mxu0
      %1504 = vmatprep.mubr.bf16.mxu0 0
      %1505 = vmatmul.mubr.bf16.gmra.mrb[0].mxu0 %v1411
      %v1506 = vpop.f32.mrb[0].mxu0
      %v1507 = vadd.f32 0.0, %v1506
      %v1508 = vpop.f32.mrb[0].mxu0
      %v1509 = vpop.f32.mrb[0].mxu0
      %v1510 = vadd.f32 0.0, %v1509
      %v1511 = vpop.f32.mrb[0].mxu0
      %1512 = vdwg.mxu0
      %v1513 = vadd.f32 %v1387, %v1451
      %v1514 = vadd.f32 %v1388, %v1454
      %v1515 = vadd.f32 %v1389, %v1459
      %v1516 = vadd.f32 %v1390, %v1462
      %v1517 = vadd.f32 %v1391, %v1467
      %v1518 = vadd.f32 %v1392, %v1470
      %v1519 = vadd.f32 %v1393, %v1475
      %v1520 = vadd.f32 %v1394, %v1478
      %v1521 = vadd.f32 %v1395, %v1483
      %v1522 = vadd.f32 %v1396, %v1486
      %v1523 = vadd.f32 %v1397, %v1491
      %v1524 = vadd.f32 %v1398, %v1494
      %v1525 = vadd.f32 %v1399, %v1499
      %v1526 = vadd.f32 %v1400, %v1502
      %v1527 = vadd.f32 %v1401, %v1507
      %v1528 = vadd.f32 %v1402, %v1510
      %v1530 = vshrl.u32 %v249, 16
      %v1532 = vrot.slane %v1530, 4
      %v1533 = vshll.u32 %v249, 16
      %v1535 = vrot.slane %v1533, 5
      %v1536 = vor.u32 %v1532, %v1535
      %v1537 = vrot.slane %v1536, 4
      %v1539 = vshll.u32 %v250, 16
      %v1541 = vrot.slane %v1539, 5
      %v1542 = vsel %vm255, %v1537, %v1541
      %v1543 = vshrl.u32 %v250, 16
      %v1545 = vrot.slane %v1543, 4
      %v1546 = vor.u32 %v1545, %v1541
      %v1547 = vrot.slane %v1546, 4
      %v1549 = vshll.u32 %v251, 16
      %v1551 = vrot.slane %v1549, 5
      %v1552 = vsel %vm255, %v1547, %v1551
      %s1553 = scalar_lea.vmem %s1, 14
      %v1554 = vld [vmem:[%s1553] sm:$0x3]
      %v1555 = vunpack.c.l.b16 %v1542
      %v1556 = vunpack.c.l.b16 %v1552
      %v1557 = vpack.c.b16 %v1556, %v1555
      %v1559 = vsel %vm474, %v1557, 0
      %v1562 = vsel %vm499, %v1554, 0
      %1564 = vmatprep.subr.bf16.mxu0 0
      %1565 = vmatpush1.bf16.msra.mxu0 %v1562
      %1566 = vmatprep.subr.bf16.mxu0 0
      %1567 = vmatpush1.bf16.msra.mxu0 0
      %1568 = vmatprep.subr.bf16.mxu0 0
      %1569 = vmatpush1.bf16.msra.mxu0 0
      %1570 = vmatprep.subr.bf16.mxu0 0
      %1571 = vmatpush1.bf16.msra.mxu0 0
      %1572 = vmatprep.subr.bf16.mxu0 0
      %1573 = vmatpush1.bf16.msra.mxu0 0
      %1574 = vmatprep.subr.bf16.mxu0 0
      %1575 = vmatpush1.bf16.msra.mxu0 0
      %1576 = vmatprep.subr.bf16.mxu0 0
      %1577 = vmatpush1.bf16.msra.mxu0 0
      %1578 = vmatprep.subr.bf16.mxu0 0
      %1579 = vmatpush1.bf16.msra.mxu0 0
      %1580 = vmatprep.subr.bf16.mxu0 0
      %1581 = vmatpush1.bf16.msra.mxu0 0
      %1582 = vmatprep.subr.bf16.mxu0 0
      %1583 = vmatpush1.bf16.msra.mxu0 0
      %1584 = vmatprep.subr.bf16.mxu0 0
      %1585 = vmatpush1.bf16.msra.mxu0 0
      %1586 = vmatprep.subr.bf16.mxu0 0
      %1587 = vmatpush1.bf16.msra.mxu0 0
      %1588 = vmatprep.subr.bf16.mxu0 0
      %1589 = vmatpush1.bf16.msra.mxu0 0
      %1590 = vmatprep.subr.bf16.mxu0 0
      %1591 = vmatpush1.bf16.msra.mxu0 0
      %1592 = vmatprep.subr.bf16.mxu0 0
      %1593 = vmatpush1.bf16.msra.mxu0 0
      %1594 = vmatprep.subr.bf16.mxu0 0
      %1595 = vmatpush1.bf16.msra.mxu0 0
      %1596 = vmatprep.mubr.bf16.mxu0 0
      %1597 = vmatmul.mubr.bf16.gmra.mrb[0].mxu0 %v482
      %v1598 = vpop.f32.mrb[0].mxu0
      %v1599 = vadd.f32 0.0, %v1598
      %v1600 = vpop.f32.mrb[0].mxu0
      %v1601 = vpop.f32.mrb[0].mxu0
      %v1602 = vadd.f32 0.0, %v1601
      %v1603 = vpop.f32.mrb[0].mxu0
      %1604 = vmatprep.mubr.bf16.mxu0 0
      %1605 = vmatmul.mubr.bf16.gmra.mrb[0].mxu0 %v485
      %v1606 = vpop.f32.mrb[0].mxu0
      %v1607 = vadd.f32 0.0, %v1606
      %v1608 = vpop.f32.mrb[0].mxu0
      %v1609 = vpop.f32.mrb[0].mxu0
      %v1610 = vadd.f32 0.0, %v1609
      %v1611 = vpop.f32.mrb[0].mxu0
      %1612 = vmatprep.mubr.bf16.mxu0 0
      %1613 = vmatmul.mubr.bf16.gmra.mrb[0].mxu0 %v488
      %v1614 = vpop.f32.mrb[0].mxu0
      %v1615 = vadd.f32 0.0, %v1614
      %v1616 = vpop.f32.mrb[0].mxu0
      %v1617 = vpop.f32.mrb[0].mxu0
      %v1618 = vadd.f32 0.0, %v1617
      %v1619 = vpop.f32.mrb[0].mxu0
      %1620 = vmatprep.mubr.bf16.mxu0 0
      %1621 = vmatmul.mubr.bf16.gmra.mrb[0].mxu0 %v491
      %v1622 = vpop.f32.mrb[0].mxu0
      %v1623 = vadd.f32 0.0, %v1622
      %v1624 = vpop.f32.mrb[0].mxu0
      %v1625 = vpop.f32.mrb[0].mxu0
      %v1626 = vadd.f32 0.0, %v1625
      %v1627 = vpop.f32.mrb[0].mxu0
      %1628 = vmatprep.mubr.bf16.mxu0 0
      %1629 = vmatmul.mubr.bf16.gmra.mrb[0].mxu0 %v494
      %v1630 = vpop.f32.mrb[0].mxu0
      %v1631 = vadd.f32 0.0, %v1630
      %v1632 = vpop.f32.mrb[0].mxu0
      %v1633 = vpop.f32.mrb[0].mxu0
      %v1634 = vadd.f32 0.0, %v1633
      %v1635 = vpop.f32.mrb[0].mxu0
      %1636 = vmatprep.mubr.bf16.mxu0 0
      %1637 = vmatmul.mubr.bf16.gmra.mrb[0].mxu0 %v497
      %v1638 = vpop.f32.mrb[0].mxu0
      %v1639 = vadd.f32 0.0, %v1638
      %v1640 = vpop.f32.mrb[0].mxu0
      %v1641 = vpop.f32.mrb[0].mxu0
      %v1642 = vadd.f32 0.0, %v1641
      %v1643 = vpop.f32.mrb[0].mxu0
      %1644 = vmatprep.mubr.bf16.mxu0 0
      %1645 = vmatmul.mubr.bf16.gmra.mrb[0].mxu0 %v1153
      %v1646 = vpop.f32.mrb[0].mxu0
      %v1647 = vadd.f32 0.0, %v1646
      %v1648 = vpop.f32.mrb[0].mxu0
      %v1649 = vpop.f32.mrb[0].mxu0
      %v1650 = vadd.f32 0.0, %v1649
      %v1651 = vpop.f32.mrb[0].mxu0
      %1652 = vmatprep.mubr.bf16.mxu0 0
      %1653 = vmatmul.mubr.bf16.gmra.mrb[0].mxu0 %v1559
      %v1654 = vpop.f32.mrb[0].mxu0
      %v1655 = vadd.f32 0.0, %v1654
      %v1656 = vpop.f32.mrb[0].mxu0
      %v1657 = vpop.f32.mrb[0].mxu0
      %v1658 = vadd.f32 0.0, %v1657
      %v1659 = vpop.f32.mrb[0].mxu0
      %1660 = vdwg.mxu0
      %v1661 = vadd.f32 %v1513, %v1599
      %v1662 = vadd.f32 %v1514, %v1602
      %v1663 = vadd.f32 %v1515, %v1607
      %v1664 = vadd.f32 %v1516, %v1610
      %v1665 = vadd.f32 %v1517, %v1615
      %v1666 = vadd.f32 %v1518, %v1618
      %v1667 = vadd.f32 %v1519, %v1623
      %v1668 = vadd.f32 %v1520, %v1626
      %v1669 = vadd.f32 %v1521, %v1631
      %v1670 = vadd.f32 %v1522, %v1634
      %v1671 = vadd.f32 %v1523, %v1639
      %v1672 = vadd.f32 %v1524, %v1642
      %v1673 = vadd.f32 %v1525, %v1647
      %v1674 = vadd.f32 %v1526, %v1650
      %v1675 = vadd.f32 %v1527, %v1655
      %v1676 = vadd.f32 %v1528, %v1658
      %v1678 = vrot.slane %v249, 5
      %v1679 = vrot.slane %v1678, 4
      %v1680 = vrot.slane %v250, 5
      %v1681 = vsel %vm774, %v1679, %v1680
      %v1682 = vrot.slane %v1680, 4
      %v1683 = vrot.slane %v251, 5
      %v1684 = vsel %vm774, %v1682, %v1683
      %s1685 = scalar_lea.vmem %s1, 16
      %v1686 = vld [vmem:[%s1685] sm:$0x3]
      %v1687 = vunpack.c.l.b16 %v1681
      %v1688 = vunpack.c.l.b16 %v1684
      %v1689 = vpack.c.b16 %v1688, %v1687
      %v1691 = vsel %vm474, %v1689, 0
      %v1694 = vsel %vm499, %v1686, 0
      %1696 = vmatprep.subr.bf16.mxu0 0
      %1697 = vmatpush1.bf16.msra.mxu0 %v1694
      %1698 = vmatprep.subr.bf16.mxu0 0
      %1699 = vmatpush1.bf16.msra.mxu0 0
      %1700 = vmatprep.subr.bf16.mxu0 0
      %1701 = vmatpush1.bf16.msra.mxu0 0
      %1702 = vmatprep.subr.bf16.mxu0 0
      %1703 = vmatpush1.bf16.msra.mxu0 0
      %1704 = vmatprep.subr.bf16.mxu0 0
      %1705 = vmatpush1.bf16.msra.mxu0 0
      %1706 = vmatprep.subr.bf16.mxu0 0
      %1707 = vmatpush1.bf16.msra.mxu0 0
      %1708 = vmatprep.subr.bf16.mxu0 0
      %1709 = vmatpush1.bf16.msra.mxu0 0
      %1710 = vmatprep.subr.bf16.mxu0 0
      %1711 = vmatpush1.bf16.msra.mxu0 0
      %1712 = vmatprep.subr.bf16.mxu0 0
      %1713 = vmatpush1.bf16.msra.mxu0 0
      %1714 = vmatprep.subr.bf16.mxu0 0
      %1715 = vmatpush1.bf16.msra.mxu0 0
      %1716 = vmatprep.subr.bf16.mxu0 0
      %1717 = vmatpush1.bf16.msra.mxu0 0
      %1718 = vmatprep.subr.bf16.mxu0 0
      %1719 = vmatpush1.bf16.msra.mxu0 0
      %1720 = vmatprep.subr.bf16.mxu0 0
      %1721 = vmatpush1.bf16.msra.mxu0 0
      %1722 = vmatprep.subr.bf16.mxu0 0
      %1723 = vmatpush1.bf16.msra.mxu0 0
      %1724 = vmatprep.subr.bf16.mxu0 0
      %1725 = vmatpush1.bf16.msra.mxu0 0
      %1726 = vmatprep.subr.bf16.mxu0 0
      %1727 = vmatpush1.bf16.msra.mxu0 0
      %1728 = vmatprep.mubr.bf16.mxu0 0
      %1729 = vmatmul.mubr.bf16.gmra.mrb[0].mxu0 %v864
      %v1730 = vpop.f32.mrb[0].mxu0
      %v1731 = vadd.f32 0.0, %v1730
      %v1732 = vpop.f32.mrb[0].mxu0
      %v1733 = vpop.f32.mrb[0].mxu0
      %v1734 = vadd.f32 0.0, %v1733
      %v1735 = vpop.f32.mrb[0].mxu0
      %1736 = vmatprep.mubr.bf16.mxu0 0
      %1737 = vmatmul.mubr.bf16.gmra.mrb[0].mxu0 %v867
      %v1738 = vpop.f32.mrb[0].mxu0
      %v1739 = vadd.f32 0.0, %v1738
      %v1740 = vpop.f32.mrb[0].mxu0
      %v1741 = vpop.f32.mrb[0].mxu0
      %v1742 = vadd.f32 0.0, %v1741
      %v1743 = vpop.f32.mrb[0].mxu0
      %1744 = vmatprep.mubr.bf16.mxu0 0
      %1745 = vmatmul.mubr.bf16.gmra.mrb[0].mxu0 %v870
      %v1746 = vpop.f32.mrb[0].mxu0
      %v1747 = vadd.f32 0.0, %v1746
      %v1748 = vpop.f32.mrb[0].mxu0
      %v1749 = vpop.f32.mrb[0].mxu0
      %v1750 = vadd.f32 0.0, %v1749
      %v1751 = vpop.f32.mrb[0].mxu0
      %1752 = vmatprep.mubr.bf16.mxu0 0
      %1753 = vmatmul.mubr.bf16.gmra.mrb[0].mxu0 %v873
      %v1754 = vpop.f32.mrb[0].mxu0
      %v1755 = vadd.f32 0.0, %v1754
      %v1756 = vpop.f32.mrb[0].mxu0
      %v1757 = vpop.f32.mrb[0].mxu0
      %v1758 = vadd.f32 0.0, %v1757
      %v1759 = vpop.f32.mrb[0].mxu0
      %1760 = vmatprep.mubr.bf16.mxu0 0
      %1761 = vmatmul.mubr.bf16.gmra.mrb[0].mxu0 %v876
      %v1762 = vpop.f32.mrb[0].mxu0
      %v1763 = vadd.f32 0.0, %v1762
      %v1764 = vpop.f32.mrb[0].mxu0
      %v1765 = vpop.f32.mrb[0].mxu0
      %v1766 = vadd.f32 0.0, %v1765
      %v1767 = vpop.f32.mrb[0].mxu0
      %1768 = vmatprep.mubr.bf16.mxu0 0
      %1769 = vmatmul.mubr.bf16.gmra.mrb[0].mxu0 %v879
      %v1770 = vpop.f32.mrb[0].mxu0
      %v1771 = vadd.f32 0.0, %v1770
      %v1772 = vpop.f32.mrb[0].mxu0
      %v1773 = vpop.f32.mrb[0].mxu0
      %v1774 = vadd.f32 0.0, %v1773
      %v1775 = vpop.f32.mrb[0].mxu0
      %1776 = vmatprep.mubr.bf16.mxu0 0
      %1777 = vmatmul.mubr.bf16.gmra.mrb[0].mxu0 %v1285
      %v1778 = vpop.f32.mrb[0].mxu0
      %v1779 = vadd.f32 0.0, %v1778
      %v1780 = vpop.f32.mrb[0].mxu0
      %v1781 = vpop.f32.mrb[0].mxu0
      %v1782 = vadd.f32 0.0, %v1781
      %v1783 = vpop.f32.mrb[0].mxu0
      %1784 = vmatprep.mubr.bf16.mxu0 0
      %1785 = vmatmul.mubr.bf16.gmra.mrb[0].mxu0 %v1691
      %v1786 = vpop.f32.mrb[0].mxu0
      %v1787 = vadd.f32 0.0, %v1786
      %v1788 = vpop.f32.mrb[0].mxu0
      %v1789 = vpop.f32.mrb[0].mxu0
      %v1790 = vadd.f32 0.0, %v1789
      %v1791 = vpop.f32.mrb[0].mxu0
      %1792 = vdwg.mxu0
      %v1793 = vadd.f32 %v1661, %v1731
      %v1794 = vadd.f32 %v1662, %v1734
      %v1795 = vadd.f32 %v1663, %v1739
      %v1796 = vadd.f32 %v1664, %v1742
      %v1797 = vadd.f32 %v1665, %v1747
      %v1798 = vadd.f32 %v1666, %v1750
      %v1799 = vadd.f32 %v1667, %v1755
      %v1800 = vadd.f32 %v1668, %v1758
      %v1801 = vadd.f32 %v1669, %v1763
      %v1802 = vadd.f32 %v1670, %v1766
      %v1803 = vadd.f32 %v1671, %v1771
      %v1804 = vadd.f32 %v1672, %v1774
      %v1805 = vadd.f32 %v1673, %v1779
      %v1806 = vadd.f32 %v1674, %v1782
      %v1807 = vadd.f32 %v1675, %v1787
      %v1808 = vadd.f32 %v1676, %v1790
      %v1809 = vpack.c.bf16 %v1794, %v1793
      %v1810 = vpack.c.bf16 %v1796, %v1795
      %v1811 = vpack.c.bf16 %v1798, %v1797
      %v1812 = vpack.c.bf16 %v1800, %v1799
      %v1813 = vpack.c.bf16 %v1802, %v1801
      %v1814 = vpack.c.bf16 %v1804, %v1803
      %v1815 = vpack.c.bf16 %v1806, %v1805
      %v1816 = vpack.c.bf16 %v1808, %v1807
      %v1825 = vunpack.c.l.b16 %v1809
      %v1826 = vunpack.c.h.b16 %v1809
      %v1827 = vunpack.c.l.b16 %v1810
      %v1828 = vunpack.c.h.b16 %v1810
      %v1829 = vunpack.c.l.b16 %v1811
      %v1830 = vunpack.c.h.b16 %v1811
      %v1831 = vunpack.c.l.b16 %v1812
      %v1832 = vunpack.c.h.b16 %v1812
      %v1833 = vunpack.c.l.b16 %v1813
      %v1834 = vunpack.c.h.b16 %v1813
      %v1835 = vunpack.c.l.b16 %v1814
      %v1836 = vunpack.c.h.b16 %v1814
      %v1837 = vunpack.c.l.b16 %v1815
      %v1838 = vunpack.c.h.b16 %v1815
      %v1839 = vunpack.c.l.b16 %v1816
      %v1840 = vunpack.c.h.b16 %v1816
      %v1841 = vpack.c.b16 %v1825, %v1825
      %v1842 = vpack.c.b16 %v1826, %v1826
      %v1843 = vpack.c.b16 %v1827, %v1827
      %v1844 = vpack.c.b16 %v1828, %v1828
      %v1845 = vpack.c.b16 %v1829, %v1829
      %v1846 = vpack.c.b16 %v1830, %v1830
      %v1847 = vpack.c.b16 %v1831, %v1831
      %v1848 = vpack.c.b16 %v1832, %v1832
      %v1849 = vpack.c.b16 %v1833, %v1833
      %v1850 = vpack.c.b16 %v1834, %v1834
      %v1851 = vpack.c.b16 %v1835, %v1835
      %v1852 = vpack.c.b16 %v1836, %v1836
      %v1853 = vpack.c.b16 %v1837, %v1837
      %v1854 = vpack.c.b16 %v1838, %v1838
      %v1855 = vpack.c.b16 %v1839, %v1839
      %v1856 = vpack.c.b16 %v1840, %v1840
      %vm1873 = vcmask 27648
      %1874 = vst.msk [vmem:[%s207] sm:$0xf] %vm1873, %v1841
      %1875 = vst.msk [vmem:[%s207 + $0x4] sm:$0xf] %vm1873, %v1842
      %1876 = vst.msk [vmem:[%s207 + $0x8] sm:$0xf] %vm1873, %v1843
      %1877 = vst.msk [vmem:[%s207 + $0xc] sm:$0xf] %vm1873, %v1844
      %1878 = vst.msk [vmem:[%s207 + $0x10] sm:$0xf] %vm1873, %v1845
      %1879 = vst.msk [vmem:[%s207 + $0x14] sm:$0xf] %vm1873, %v1846
      %1880 = vst.msk [vmem:[%s207 + $0x18] sm:$0xf] %vm1873, %v1847
      %1881 = vst.msk [vmem:[%s207 + $0x1c] sm:$0xf] %vm1873, %v1848
      %1882 = vst.msk [vmem:[%s207 + $0x20] sm:$0xf] %vm1873, %v1849
      %1883 = vst.msk [vmem:[%s207 + $0x24] sm:$0xf] %vm1873, %v1850
      %1884 = vst.msk [vmem:[%s207 + $0x28] sm:$0xf] %vm1873, %v1851
      %1885 = vst.msk [vmem:[%s207 + $0x2c] sm:$0xf] %vm1873, %v1852
      %1886 = vst.msk [vmem:[%s207 + $0x30] sm:$0xf] %vm1873, %v1853
      %1887 = vst.msk [vmem:[%s207 + $0x34] sm:$0xf] %vm1873, %v1854
      %1888 = vst.msk [vmem:[%s207 + $0x38] sm:$0xf] %vm1873, %v1855
      %1889 = vst.msk [vmem:[%s207 + $0x3c] sm:$0xf] %vm1873, %v1856
      %v1890 = vsel %vm474, %v1793, 0.0
      %v1891 = vsel %vm474, %v1794, 0.0
      %v1892 = vadd.f32 %v1890, %v1891
      %v1893 = vsel %vm474, %v1795, 0.0
      %v1894 = vadd.f32 %v1892, %v1893
      %v1895 = vsel %vm474, %v1796, 0.0
      %v1896 = vadd.f32 %v1894, %v1895
      %v1897 = vsel %vm474, %v1797, 0.0
      %v1898 = vadd.f32 %v1896, %v1897
      %v1899 = vsel %vm474, %v1798, 0.0
      %v1900 = vadd.f32 %v1898, %v1899
      %v1901 = vsel %vm474, %v1799, 0.0
      %v1902 = vadd.f32 %v1900, %v1901
      %v1903 = vsel %vm474, %v1800, 0.0
      %v1904 = vadd.f32 %v1902, %v1903
      %v1905 = vsel %vm474, %v1801, 0.0
      %v1906 = vadd.f32 %v1904, %v1905
      %v1907 = vsel %vm474, %v1802, 0.0
      %v1908 = vadd.f32 %v1906, %v1907
      %v1909 = vsel %vm474, %v1803, 0.0
      %v1910 = vadd.f32 %v1908, %v1909
      %v1911 = vsel %vm474, %v1804, 0.0
      %v1912 = vadd.f32 %v1910, %v1911
      %v1913 = vsel %vm474, %v1805, 0.0
      %v1914 = vadd.f32 %v1912, %v1913
      %v1915 = vsel %vm474, %v1806, 0.0
      %v1916 = vadd.f32 %v1914, %v1915
      %v1917 = vsel %vm474, %v1807, 0.0
      %v1918 = vadd.f32 %v1916, %v1917
      %v1919 = vsel %vm474, %v1808, 0.0
      %v1920 = vadd.f32 %v1918, %v1919
      %v1921 = vrot.slane %v1920, 4
      %v1922 = vadd.f32 %v1920, %v1921
      %v1923 = vrot.slane %v1922, 2
      %v1924 = vadd.f32 %v1922, %v1923
      %v1925 = vrot.slane %v1924, 1
      %v1926 = vadd.f32 %v1924, %v1925
      %vm1927 = vcmask 24576
      %1928 = vst.msk [vmem:[%s216] sm:$0x1] %vm1927, %v1926
      %v1929 = vmul.f32 %v1793, %v1793
      %v1930 = vmul.f32 %v1794, %v1794
      %v1931 = vmul.f32 %v1795, %v1795
      %v1932 = vmul.f32 %v1796, %v1796
      %v1933 = vmul.f32 %v1797, %v1797
      %v1934 = vmul.f32 %v1798, %v1798
      %v1935 = vmul.f32 %v1799, %v1799
      %v1936 = vmul.f32 %v1800, %v1800
      %v1937 = vmul.f32 %v1801, %v1801
      %v1938 = vmul.f32 %v1802, %v1802
      %v1939 = vmul.f32 %v1803, %v1803
      %v1940 = vmul.f32 %v1804, %v1804
      %v1941 = vmul.f32 %v1805, %v1805
      %v1942 = vmul.f32 %v1806, %v1806
      %v1943 = vmul.f32 %v1807, %v1807
      %v1944 = vmul.f32 %v1808, %v1808
      %v1945 = vsel %vm474, %v1929, 0.0
      %v1946 = vsel %vm474, %v1930, 0.0
      %v1947 = vadd.f32 %v1945, %v1946
      %v1948 = vsel %vm474, %v1931, 0.0
      %v1949 = vadd.f32 %v1947, %v1948
      %v1950 = vsel %vm474, %v1932, 0.0
      %v1951 = vadd.f32 %v1949, %v1950
      %v1952 = vsel %vm474, %v1933, 0.0
      %v1953 = vadd.f32 %v1951, %v1952
      %v1954 = vsel %vm474, %v1934, 0.0
      %v1955 = vadd.f32 %v1953, %v1954
      %v1956 = vsel %vm474, %v1935, 0.0
      %v1957 = vadd.f32 %v1955, %v1956
      %v1958 = vsel %vm474, %v1936, 0.0
      %v1959 = vadd.f32 %v1957, %v1958
      %v1960 = vsel %vm474, %v1937, 0.0
      %v1961 = vadd.f32 %v1959, %v1960
      %v1962 = vsel %vm474, %v1938, 0.0
      %v1963 = vadd.f32 %v1961, %v1962
      %v1964 = vsel %vm474, %v1939, 0.0
      %v1965 = vadd.f32 %v1963, %v1964
      %v1966 = vsel %vm474, %v1940, 0.0
      %v1967 = vadd.f32 %v1965, %v1966
      %v1968 = vsel %vm474, %v1941, 0.0
      %v1969 = vadd.f32 %v1967, %v1968
      %v1970 = vsel %vm474, %v1942, 0.0
      %v1971 = vadd.f32 %v1969, %v1970
      %v1972 = vsel %vm474, %v1943, 0.0
      %v1973 = vadd.f32 %v1971, %v1972
      %v1974 = vsel %vm474, %v1944, 0.0
      %v1975 = vadd.f32 %v1973, %v1974
      %v1976 = vrot.slane %v1975, 4
      %v1977 = vadd.f32 %v1975, %v1976
      %v1978 = vrot.slane %v1977, 2
      %v1979 = vadd.f32 %v1977, %v1978
      %v1980 = vrot.slane %v1979, 1
      %v1981 = vadd.f32 %v1979, %v1980
      %1982 = vst.msk [vmem:[%s216 + $0x1] sm:$0x1] %vm1927, %v1981
      %s1983 = smul.u32 8, %s20
      %p1984 = scmp.lt.s32.totalorder %s19, 1
      %s1985 = scalar_select %p1984, %s19, 1
      %p1986 = scmp.lt.s32.totalorder %s1983, 15
      %s1987 = scalar_select %p1986, %s1983, 15
      %s1988 = smul.addr %s1987, 2
      %s1989 = smul.addr %s1985, 32
      %s1990 = sadd.s32 %s1988, %s1989
      %s1991 = smul.addr %s1990, 4
      %s1992 = scalar_lea.vmem %s2, %s1991
      %p1993 = scmp.lt.s32.totalorder %s19, 1
      %s1994 = scalar_select %p1993, %s19, 1
      %p1995 = scmp.lt.s32.totalorder %s20, 1
      %s1996 = scalar_select %p1995, %s20, 1
      %s1997 = smul.addr %s1994, 2
      %s1998 = sadd.s32 %s1996, %s1997
      %s1999 = smul.addr %s1998, 2
      %s2000 = scalar_lea.vmem %s3, %s1999
      // Predicated region
      $region29: #{res_block.3} parent=27 // pred_check
        %p2001 = pneg %p94
      $region30: #{res_block.3} parent=27 // pred_check_branch
        %2003 = sbr.rel (%p2001) target = $region32
      $region31: #{res_block.3} parent=27 // pred_region
        %s2004 = smul.u32 8, %s20
      $region32: #{res_block.3} parent=27 // pred_fallthru
        _
      // Predicated region
      $region33: #{res_block.3} parent=27 // pred_check
        %p2005 = pneg %p122
      $region34: #{res_block.3} parent=27 // pred_check_branch
        %2007 = sbr.rel (%p2005) target = $region36
      $region35: #{res_block.3} parent=27 // pred_region
        _
      $region36: #{res_block.3} parent=27 // pred_fallthru
        _
    $region28: #{res_block.3} parent=5 // pred_fallthru
      _
    %p2008 = scmp.le.s32.totalorder 2, %s10
    // Predicated region
    $region37: #{res_block.3} parent=5 // pred_check
      %p2009 = pneg %p2008
    $region38: #{res_block.3} parent=5 // pred_check_branch
      %2011 = sbr.rel (%p2009) target = $region40
    $region39: #{res_block.3} parent=5 // pred_region
      %s2012 = ssub.s32 %s10, 2
      // Predicated region
      $region41: #{res_block.3} parent=39 // pred_check
        %p2013 = pneg %p100
      $region42: #{res_block.3} parent=39 // pred_check_branch
        %2015 = sbr.rel (%p2013) target = $region44
      $region43: #{res_block.3} parent=39 // pred_region
        %s2016 = smul.u32 8, %s22
        %p2017 = scmp.lt.s32.totalorder %s21, 1
        %s2018 = scalar_select %p2017, %s21, 1
        %p2019 = scmp.lt.s32.totalorder %s2016, 15
        %s2020 = scalar_select %p2019, %s2016, 15
        %s2021 = smul.addr %s2020, 2
        %s2022 = smul.addr %s2018, 32
        %s2023 = sadd.s32 %s2021, %s2022
        %s2024 = smul.addr %s2023, 4
        %s2025 = scalar_lea.vmem %s2, %s2024
      $region44: #{res_block.3} parent=39 // pred_fallthru
        _
      // Predicated region
      $region45: #{res_block.3} parent=39 // pred_check
        %p2026 = pneg %p128
      $region46: #{res_block.3} parent=39 // pred_check_branch
        %2028 = sbr.rel (%p2026) target = $region48
      $region47: #{res_block.3} parent=39 // pred_region
        %p2029 = scmp.lt.s32.totalorder %s21, 1
        %s2030 = scalar_select %p2029, %s21, 1
        %p2031 = scmp.lt.s32.totalorder %s22, 1
        %s2032 = scalar_select %p2031, %s22, 1
        %s2033 = smul.addr %s2030, 2
        %s2034 = sadd.s32 %s2032, %s2033
        %s2035 = smul.addr %s2034, 2
        %s2036 = scalar_lea.vmem %s3, %s2035
      $region48: #{res_block.3} parent=39 // pred_fallthru
        _
    $region40: #{res_block.3} parent=5 // pred_fallthru
      _
  $region6: #{res_block.3} parent=0 // loop_footer
    %s14 = sadd.s32 1, %s10
  $region7: #{res_block.3} parent=0 // loop_footer_branch
    %9 = sbr.rel target = $region3
  $region8: #{res_block.3} parent=0 // loop_exit
    _

</llo_original>
